<compile_context>
chip_gen: v6e
topology: v6e:2x2x1
jax: 0.10.0
libtpu: 0.0.40
codegen_flags: <defaults>
</compile_context>

<pallas_src>
import functools

import jax
import jax.numpy as jnp
from jax.experimental import pallas as pl
from jax.experimental.pallas import tpu as pltpu

MATMUL_DTYPE = jnp.float32  # set to jnp.bfloat16 on v6e/v7x for 2x MXU rate
BATCH_TILE = 8              # sublane tile for the batch dimension


# ---------------------------------------------------------------------------
# Small static helpers (trace-time Python ints only).
# ---------------------------------------------------------------------------
def _round_up(n, m):
    return (n + m - 1) // m * m


def _largest_divisor(n, cap):
    d = min(n, cap)
    while n % d:
        d -= 1
    return d


def _row_tile(rows, cap=512):
    # rows is always a multiple of 8 (batch padded); pick a multiple-of-8 tile.
    if rows <= cap:
        return rows
    best, d = 8, 8
    while d <= cap:
        if rows % d == 0:
            best = d
        d += 8
    return best


# ---------------------------------------------------------------------------
# Kernel 1: hoisted input projection  gi[g] = x @ Wih[g] + (bih[g] + bhh[g|r,z])
# x is flat (T*Bp, in); gi is gate-leading (3, T*Bp, H).
# ---------------------------------------------------------------------------
def input_proj_kernel(x_ref, wih_ref, bias_ref, gi_ref):
    x = x_ref[...].astype(wih_ref.dtype)
    for g in range(3):
        gi_ref[g] = (jnp.dot(x, wih_ref[g], preferred_element_type=jnp.float32)
                     + bias_ref[g])


def input_projection(x_flat, wih_g, bias_g):
    rows, in_sz = x_flat.shape
    hidden = wih_g.shape[2]
    rt = _row_tile(rows)
    return pl.pallas_call(
        input_proj_kernel,
        out_shape=jax.ShapeDtypeStruct((3, rows, hidden), jnp.float32),
        grid=(rows // rt,),
        in_specs=[
            pl.BlockSpec((rt, in_sz), lambda r: (r, 0)),
            pl.BlockSpec((3, in_sz, hidden), lambda r: (0, 0, 0)),
            pl.BlockSpec((3, 1, hidden), lambda r: (0, 0, 0)),
        ],
        out_specs=pl.BlockSpec((3, rt, hidden), lambda r: (0, r, 0)),
        compiler_params=pltpu.CompilerParams(
            dimension_semantics=("parallel",)),
    )(x_flat, wih_g, bias_g)


# ---------------------------------------------------------------------------
# Kernel 2: sequential GRU recurrence, time-blocked, batch-tiled.
# grid = (batch_tiles [parallel], time_blocks [arbitrary]); hidden state lives
# in VMEM scratch across the time axis.  Only h @ Whh is on the critical path.
# ---------------------------------------------------------------------------
def gru_recurrent_kernel(gi_ref, whh_ref, bhn_ref, h0_ref,
                         y_ref, hlast_ref, h_sc, *, tb):
    @pl.when(pl.program_id(1) == 0)
    def _():
        h_sc[...] = h0_ref[...]

    h = h_sc[...]
    cdt = whh_ref.dtype
    w_r = whh_ref[0]
    w_z = whh_ref[1]
    w_n = whh_ref[2]
    b_hn = bhn_ref[...]

    for i in range(tb):
        hc = h.astype(cdt)
        gh_r = jnp.dot(hc, w_r, preferred_element_type=jnp.float32)
        gh_z = jnp.dot(hc, w_z, preferred_element_type=jnp.float32)
        gh_n = jnp.dot(hc, w_n, preferred_element_type=jnp.float32)
        # gi already contains bih (all gates) + bhh (r, z only).
        r = jax.nn.sigmoid(gi_ref[0, i] + gh_r)
        z = jax.nn.sigmoid(gi_ref[1, i] + gh_z)
        n = jnp.tanh(gi_ref[2, i] + r * (gh_n + b_hn))
        h = (1.0 - z) * n + z * h
        y_ref[i] = h

    h_sc[...] = h

    @pl.when(pl.program_id(1) == pl.num_programs(1) - 1)
    def _():
        hlast_ref[...] = h


def gru_recurrence(gi4, whh_g, bhh_n, h0):
    _, seq, bp, hidden = gi4.shape
    tb = _largest_divisor(seq, 16)
    bt = BATCH_TILE
    nb = bp // bt
    return pl.pallas_call(
        functools.partial(gru_recurrent_kernel, tb=tb),
        out_shape=(jax.ShapeDtypeStruct((seq, bp, hidden), jnp.float32),
                   jax.ShapeDtypeStruct((bp, hidden), jnp.float32)),
        grid_spec=pltpu.PrefetchScalarGridSpec(
            num_scalar_prefetch=0,
            grid=(nb, seq // tb),
            in_specs=[
                pl.BlockSpec((3, tb, bt, hidden), lambda b, t: (0, t, b, 0)),
                pl.BlockSpec((3, hidden, hidden), lambda b, t: (0, 0, 0)),
                pl.BlockSpec((1, hidden), lambda b, t: (0, 0)),
                pl.BlockSpec((bt, hidden), lambda b, t: (b, 0)),
            ],
            out_specs=[
                pl.BlockSpec((tb, bt, hidden), lambda b, t: (t, b, 0)),
                pl.BlockSpec((bt, hidden), lambda b, t: (b, 0)),
            ],
            scratch_shapes=[pltpu.VMEM((bt, hidden), jnp.float32)],
        ),
        compiler_params=pltpu.CompilerParams(
            dimension_semantics=("parallel", "arbitrary")),
    )(gi4, whh_g, bhh_n, h0)


# ---------------------------------------------------------------------------
# Kernel 3: fc1 + softmax over the sequence axis + last-timestep selection.
# Output is lane-dense (O padded to 128); probabilities for the last row only.
# ---------------------------------------------------------------------------
def fc_softmax_last_kernel(y_ref, w_ref, b_ref, out_ref):
    logits = jnp.einsum("tbh,ho->tbo", y_ref[...].astype(w_ref.dtype),
                        w_ref[...],
                        preferred_element_type=jnp.float32) + b_ref[...]
    m = jnp.max(logits, axis=0, keepdims=True)
    e = jnp.exp(logits - m)
    s = jnp.sum(e, axis=0)
    out_ref[...] = e[-1] / s


def fc_softmax_last(y3, w_pad, b_pad):
    seq, bp, hidden = y3.shape
    o_pad = w_pad.shape[1]
    return pl.pallas_call(
        fc_softmax_last_kernel,
        out_shape=jax.ShapeDtypeStruct((bp, o_pad), jnp.float32),
        grid=(1,),
        in_specs=[
            pl.BlockSpec((seq, bp, hidden), lambda i: (0, 0, 0)),
            pl.BlockSpec((hidden, o_pad), lambda i: (0, 0)),
            pl.BlockSpec((1, o_pad), lambda i: (0, 0)),
        ],
        out_specs=pl.BlockSpec((bp, o_pad), lambda i: (0, 0)),
    )(y3, w_pad, b_pad)


# ---------------------------------------------------------------------------
# Full model forward (matches GRU.forward of the PyTorch module).
# ---------------------------------------------------------------------------
def gru_model_forward(x, states, params):
    """x: (B, T, I) batch-first, states: (L, B, H).  Returns (probs_last, h)."""
    batch, seq, in_sz = x.shape
    num_layers, _, hidden = states.shape
    out_sz = params["output_size"]
    bp = _round_up(batch, BATCH_TILE)

    x = x.astype(jnp.float32)
    states = states.astype(jnp.float32)
    x_p = jnp.pad(x, ((0, bp - batch), (0, 0), (0, 0)))
    st_p = jnp.pad(states, ((0, 0), (0, bp - batch), (0, 0)))

    # Time-major flat rows: row index = t * bp + b.
    layer_in = jnp.transpose(x_p, (1, 0, 2)).reshape(seq * bp, in_sz)

    h_finals = []
    y3 = None
    for l, p in enumerate(params["gru_layers"]):
        gi = input_projection(layer_in, p["wih_g"], p["bias_g"])   # (3, T*Bp, H)
        gi4 = gi.reshape(3, seq, bp, hidden)
        y3, h_l = gru_recurrence(gi4, p["whh_g"], p["bhh_n"], st_p[l])
        # TODO(synk): nn.GRU inter-layer dropout is train-mode only (identity in eval); not applied.
        layer_in = y3.reshape(seq * bp, hidden)
        h_finals.append(h_l)

    h = jnp.stack(h_finals, axis=0)[:, :batch, :]                  # (L, B, H)
    probs_pad = fc_softmax_last(y3, params["fc_w_pad"], params["fc_b_pad"])
    return probs_pad[:batch, :out_sz], h


# ---------------------------------------------------------------------------
# Parameter construction (PyTorch nn.GRU / nn.Linear layout + init).
# ---------------------------------------------------------------------------
def _prepare_gru_layer(wih, whh, bih, bhh, hidden):
    # PyTorch gate order along rows: [r | z | n].
    wih_g = jnp.transpose(wih.reshape(3, hidden, -1), (0, 2, 1))   # (3, in, H)
    whh_g = jnp.transpose(whh.reshape(3, hidden, hidden), (0, 2, 1))  # (3, H, H)
    bih_g = bih.reshape(3, 1, hidden)
    bhh_g = bhh.reshape(3, 1, hidden)
    # Fold b_hr, b_hz into the hoisted projection bias; keep b_hn separate
    # because n = tanh(gi_n + r * (gh_n + b_hn)).
    bias_g = bih_g + bhh_g.at[2].set(0.0)
    return dict(wih_g=wih_g.astype(MATMUL_DTYPE),
                whh_g=whh_g.astype(MATMUL_DTYPE),
                bias_g=bias_g.astype(jnp.float32),
                bhh_n=bhh_g[2].astype(jnp.float32))                # (1, H)


def init_params(key, input_size, hidden_size, num_layers, output_size):
    bound = 1.0 / (hidden_size ** 0.5)
    layers = []
    for l in range(num_layers):
        in_sz = input_size if l == 0 else hidden_size
        key, k1, k2, k3, k4 = jax.random.split(key, 5)
        wih = jax.random.uniform(k1, (3 * hidden_size, in_sz), jnp.float32, -bound, bound)
        whh = jax.random.uniform(k2, (3 * hidden_size, hidden_size), jnp.float32, -bound, bound)
        bih = jax.random.uniform(k3, (3 * hidden_size,), jnp.float32, -bound, bound)
        bhh = jax.random.uniform(k4, (3 * hidden_size,), jnp.float32, -bound, bound)
        layers.append(_prepare_gru_layer(wih, whh, bih, bhh, hidden_size))

    key, k5, k6 = jax.random.split(key, 3)
    fb = 1.0 / (hidden_size ** 0.5)
    fc_w = jax.random.uniform(k5, (output_size, hidden_size), jnp.float32, -fb, fb)
    fc_b = jax.random.uniform(k6, (output_size,), jnp.float32, -fb, fb)

    o_pad = _round_up(output_size, 128)   # lane-dense fc output, sliced in wrapper
    fc_w_pad = jnp.zeros((hidden_size, o_pad), jnp.float32).at[:, :output_size].set(fc_w.T)
    fc_b_pad = jnp.zeros((1, o_pad), jnp.float32).at[:, :output_size].set(fc_b)
    return dict(gru_layers=layers,
                fc_w_pad=fc_w_pad.astype(MATMUL_DTYPE),
                fc_b_pad=fc_b_pad,
                output_size=output_size)


if __name__ == "__main__":
    input_size = 16
    hidden_size = 32
    num_layers = 2
    output_size = 4
    batch = 2
    seq = 8

    key = jax.random.PRNGKey(0)
    key, kx = jax.random.split(key)
    x = jax.random.normal(kx, (batch, seq, input_size), jnp.float32)
    states = jnp.zeros((num_layers, batch, hidden_size), jnp.float32)  # init_hidden_states

    params = init_params(key, input_size, hidden_size, num_layers, output_size)

    fwd = jax.jit(functools.partial(gru_model_forward, params=params))
    probs_last, h = fwd(x, states)
    jax.block_until_ready((probs_last, h))

    assert probs_last.shape == (batch, output_size)
    assert h.shape == (num_layers, batch, hidden_size)
    assert bool(jnp.all(jnp.isfinite(probs_last))) and bool(jnp.all(jnp.isfinite(h)))
    print("KERNEL_OK")
</pallas_src>

<mosaic_0001>
module attributes {stable_mosaic.version = 11 : i64} {
  func.func @input_proj_kernel(%arg0: i32, %arg1: memref<64x16xf32, #tpu.memory_space<vmem>>, %arg2: memref<3x16x32xf32, #tpu.memory_space<vmem>>, %arg3: memref<3x1x32xf32, #tpu.memory_space<vmem>>, %arg4: memref<3x64x32xf32, #tpu.memory_space<vmem>>) attributes {dimension_semantics = [#tpu.dimension_semantics<parallel>], iteration_bounds = array<i64: 1>, scalar_prefetch = 0 : i64, scratch_operands = 0 : i64, tpu.core_type = #tpu.core_type<tc>, window_params = [{transform_indices = @transform_0, window_bounds = array<i64: 64, 16>}, {pipeline_mode = #tpu.pipeline_mode<synchronous>, transform_indices = @transform_1, window_bounds = array<i64: 3, 16, 32>}, {pipeline_mode = #tpu.pipeline_mode<synchronous>, transform_indices = @transform_2, window_bounds = array<i64: 3, 1, 32>}, {transform_indices = @transform_3, window_bounds = array<i64: 3, 64, 32>}]} {
    %c0 = arith.constant 0 : index
    %c0_0 = arith.constant 0 : index
    %0 = vector.load %arg1[%c0, %c0_0] : memref<64x16xf32, #tpu.memory_space<vmem>>, vector<64x16xf32>
    %c0_1 = arith.constant 0 : index
    %c0_2 = arith.constant 0 : index
    %c0_3 = arith.constant 0 : index
    %1 = vector.load %arg2[%c0_1, %c0_2, %c0_3] : memref<3x16x32xf32, #tpu.memory_space<vmem>>, vector<1x16x32xf32>
    %2 = vector.shape_cast %1 : vector<1x16x32xf32> to vector<16x32xf32>
    %cst = arith.constant dense<0.000000e+00> : vector<64x32xf32>
    %3 = tpu.matmul %0, %2, %cst {dimension_numbers = #tpu.dot_dimension_numbers<[1], [0], [0], [1], [0, 0, 1, 1], [], []>} : vector<64x16xf32>, vector<16x32xf32>, vector<64x32xf32> -> vector<64x32xf32>
    %c0_4 = arith.constant 0 : index
    %c0_5 = arith.constant 0 : index
    %c0_6 = arith.constant 0 : index
    %4 = vector.load %arg3[%c0_4, %c0_5, %c0_6] : memref<3x1x32xf32, #tpu.memory_space<vmem>>, vector<1x1x32xf32>
    %5 = vector.shape_cast %4 : vector<1x1x32xf32> to vector<1x32xf32>
    %6 = vector.broadcast %5 : vector<1x32xf32> to vector<64x32xf32>
    %7 = arith.addf %3, %6 : vector<64x32xf32>
    %c0_7 = arith.constant 0 : index
    %c0_8 = arith.constant 0 : index
    %c0_9 = arith.constant 0 : index
    %8 = vector.load %arg4[%c0_7, %c0_8, %c0_9] : memref<3x64x32xf32, #tpu.memory_space<vmem>>, vector<1x64x32xf32>
    %9 = vector.shape_cast %8 : vector<1x64x32xf32> to vector<64x32xf32>
    %10 = vector.shape_cast %7 : vector<64x32xf32> to vector<1x64x32xf32>
    tpu.vector_store %arg4[%c0_7, %c0_8, %c0_9], %10 {strides = array<i32>} : memref<3x64x32xf32, #tpu.memory_space<vmem>>, vector<1x64x32xf32>,
    %c1 = arith.constant 1 : index
    %c0_10 = arith.constant 0 : index
    %c0_11 = arith.constant 0 : index
    %11 = vector.load %arg2[%c1, %c0_10, %c0_11] : memref<3x16x32xf32, #tpu.memory_space<vmem>>, vector<1x16x32xf32>
    %12 = vector.shape_cast %11 : vector<1x16x32xf32> to vector<16x32xf32>
    %cst_12 = arith.constant dense<0.000000e+00> : vector<64x32xf32>
    %13 = tpu.matmul %0, %12, %cst_12 {dimension_numbers = #tpu.dot_dimension_numbers<[1], [0], [0], [1], [0, 0, 1, 1], [], []>} : vector<64x16xf32>, vector<16x32xf32>, vector<64x32xf32> -> vector<64x32xf32>
    %c1_13 = arith.constant 1 : index
    %c0_14 = arith.constant 0 : index
    %c0_15 = arith.constant 0 : index
    %14 = vector.load %arg3[%c1_13, %c0_14, %c0_15] : memref<3x1x32xf32, #tpu.memory_space<vmem>>, vector<1x1x32xf32>
    %15 = vector.shape_cast %14 : vector<1x1x32xf32> to vector<1x32xf32>
    %16 = vector.broadcast %15 : vector<1x32xf32> to vector<64x32xf32>
    %17 = arith.addf %13, %16 : vector<64x32xf32>
    %c1_16 = arith.constant 1 : index
    %c0_17 = arith.constant 0 : index
    %c0_18 = arith.constant 0 : index
    %18 = vector.load %arg4[%c1_16, %c0_17, %c0_18] : memref<3x64x32xf32, #tpu.memory_space<vmem>>, vector<1x64x32xf32>
    %19 = vector.shape_cast %18 : vector<1x64x32xf32> to vector<64x32xf32>
    %20 = vector.shape_cast %17 : vector<64x32xf32> to vector<1x64x32xf32>
    tpu.vector_store %arg4[%c1_16, %c0_17, %c0_18], %20 {strides = array<i32>} : memref<3x64x32xf32, #tpu.memory_space<vmem>>, vector<1x64x32xf32>,
    %c2 = arith.constant 2 : index
    %c0_19 = arith.constant 0 : index
    %c0_20 = arith.constant 0 : index
    %21 = vector.load %arg2[%c2, %c0_19, %c0_20] : memref<3x16x32xf32, #tpu.memory_space<vmem>>, vector<1x16x32xf32>
    %22 = vector.shape_cast %21 : vector<1x16x32xf32> to vector<16x32xf32>
    %cst_21 = arith.constant dense<0.000000e+00> : vector<64x32xf32>
    %23 = tpu.matmul %0, %22, %cst_21 {dimension_numbers = #tpu.dot_dimension_numbers<[1], [0], [0], [1], [0, 0, 1, 1], [], []>} : vector<64x16xf32>, vector<16x32xf32>, vector<64x32xf32> -> vector<64x32xf32>
    %c2_22 = arith.constant 2 : index
    %c0_23 = arith.constant 0 : index
    %c0_24 = arith.constant 0 : index
    %24 = vector.load %arg3[%c2_22, %c0_23, %c0_24] : memref<3x1x32xf32, #tpu.memory_space<vmem>>, vector<1x1x32xf32>
    %25 = vector.shape_cast %24 : vector<1x1x32xf32> to vector<1x32xf32>
    %26 = vector.broadcast %25 : vector<1x32xf32> to vector<64x32xf32>
    %27 = arith.addf %23, %26 : vector<64x32xf32>
    %c2_25 = arith.constant 2 : index
    %c0_26 = arith.constant 0 : index
    %c0_27 = arith.constant 0 : index
    %28 = vector.load %arg4[%c2_25, %c0_26, %c0_27] : memref<3x64x32xf32, #tpu.memory_space<vmem>>, vector<1x64x32xf32>
    %29 = vector.shape_cast %28 : vector<1x64x32xf32> to vector<64x32xf32>
    %30 = vector.shape_cast %27 : vector<64x32xf32> to vector<1x64x32xf32>
    tpu.vector_store %arg4[%c2_25, %c0_26, %c0_27], %30 {strides = array<i32>} : memref<3x64x32xf32, #tpu.memory_space<vmem>>, vector<1x64x32xf32>,
    return
  }
  func.func @transform_0(%arg0: i32) -> (i32, i32) {
    %c0_i32 = arith.constant 0 : i32
    %c0_i32_0 = arith.constant 0 : i32
    return %arg0, %c0_i32 : i32, i32
  }
  func.func @transform_1(%arg0: i32) -> (i32, i32, i32) {
    %c0_i32 = arith.constant 0 : i32
    %c0_i32_0 = arith.constant 0 : i32
    %c0_i32_1 = arith.constant 0 : i32
    %c0_i32_2 = arith.constant 0 : i32
    return %c0_i32, %c0_i32_0, %c0_i32_1 : i32, i32, i32
  }
  func.func @transform_2(%arg0: i32) -> (i32, i32, i32) {
    %c0_i32 = arith.constant 0 : i32
    %c0_i32_0 = arith.constant 0 : i32
    %c0_i32_1 = arith.constant 0 : i32
    %c0_i32_2 = arith.constant 0 : i32
    return %c0_i32, %c0_i32_0, %c0_i32_1 : i32, i32, i32
  }
  func.func @transform_3(%arg0: i32) -> (i32, i32, i32) {
    %c0_i32 = arith.constant 0 : i32
    %c0_i32_0 = arith.constant 0 : i32
    %c0_i32_1 = arith.constant 0 : i32
    return %c0_i32, %arg0, %c0_i32_0 : i32, i32, i32
  }
}

module attributes {stable_mosaic.version = 11 : i64} {
  func.func @fc_softmax_last_kernel(%arg0: i32, %arg1: memref<8x8x32xf32, #tpu.memory_space<vmem>>, %arg2: memref<32x128xf32, #tpu.memory_space<vmem>>, %arg3: memref<1x128xf32, #tpu.memory_space<vmem>>, %arg4: memref<8x128xf32, #tpu.memory_space<vmem>>) attributes {dimension_semantics = [#tpu.dimension_semantics<arbitrary>], iteration_bounds = array<i64: 1>, scalar_prefetch = 0 : i64, scratch_operands = 0 : i64, tpu.core_type = #tpu.core_type<tc>, window_params = [{pipeline_mode = #tpu.pipeline_mode<synchronous>, transform_indices = @transform_0, window_bounds = array<i64: 8, 8, 32>}, {pipeline_mode = #tpu.pipeline_mode<synchronous>, transform_indices = @transform_1, window_bounds = array<i64: 32, 128>}, {pipeline_mode = #tpu.pipeline_mode<synchronous>, transform_indices = @transform_2, window_bounds = array<i64: 1, 128>}, {pipeline_mode = #tpu.pipeline_mode<synchronous>, transform_indices = @transform_3, window_bounds = array<i64: 8, 128>}]} {
    %c0 = arith.constant 0 : index
    %c0_0 = arith.constant 0 : index
    %c0_1 = arith.constant 0 : index
    %0 = vector.load %arg1[%c0, %c0_0, %c0_1] : memref<8x8x32xf32, #tpu.memory_space<vmem>>, vector<8x8x32xf32>
    %c0_2 = arith.constant 0 : index
    %c0_3 = arith.constant 0 : index
    %1 = vector.load %arg2[%c0_2, %c0_3] : memref<32x128xf32, #tpu.memory_space<vmem>>, vector<32x128xf32>
    "tpu.trace_start"() <{level = 10 : i32, message = "tbh,ho->tbo"}> : () -> ()
    %cst = arith.constant dense<0.000000e+00> : vector<8x8x128xf32>
    %2 = tpu.matmul %0, %1, %cst {dimension_numbers = #tpu.dot_dimension_numbers<[2], [0], [0, 1], [1], [0, 0, 0, 1, 1, 1], [], []>} : vector<8x8x32xf32>, vector<32x128xf32>, vector<8x8x128xf32> -> vector<8x8x128xf32>
    "tpu.trace_stop"() : () -> ()
    %c0_4 = arith.constant 0 : index
    %c0_5 = arith.constant 0 : index
    %3 = vector.load %arg3[%c0_4, %c0_5] : memref<1x128xf32, #tpu.memory_space<vmem>>, vector<1x128xf32>
    %4 = vector.shape_cast %3 : vector<1x128xf32> to vector<1x1x128xf32>
    %5 = vector.broadcast %4 : vector<1x1x128xf32> to vector<8x8x128xf32>
    %6 = arith.addf %2, %5 : vector<8x8x128xf32>
    %cst_6 = arith.constant dense<0xFF800000> : vector<8x128xf32>
    %7 = vector.multi_reduction <maximumf>, %6, %cst_6 [0] : vector<8x8x128xf32> to vector<8x128xf32>
    %8 = vector.shape_cast %7 : vector<8x128xf32> to vector<1x8x128xf32>
    %9 = vector.broadcast %8 : vector<1x8x128xf32> to vector<8x8x128xf32>
    %10 = arith.subf %6, %9 : vector<8x8x128xf32>
    %11 = math.exp %10 : vector<8x8x128xf32>
    %cst_7 = arith.constant dense<0.000000e+00> : vector<8x128xf32>
    %12 = vector.multi_reduction <add>, %11, %cst_7 [0] : vector<8x8x128xf32> to vector<8x128xf32>
    %13 = vector.extract_strided_slice %11 {offsets = [7, 0, 0], sizes = [1, 8, 128], strides = [1, 1, 1]} : vector<8x8x128xf32> to vector<1x8x128xf32>
    %14 = vector.shape_cast %13 : vector<1x8x128xf32> to vector<8x128xf32>
    %15 = arith.divf %14, %12 : vector<8x128xf32>
    %c0_8 = arith.constant 0 : index
    %c0_9 = arith.constant 0 : index
    %16 = vector.load %arg4[%c0_8, %c0_9] : memref<8x128xf32, #tpu.memory_space<vmem>>, vector<8x128xf32>
    tpu.vector_store %arg4[%c0_8, %c0_9], %15 {strides = array<i32>} : memref<8x128xf32, #tpu.memory_space<vmem>>, vector<8x128xf32>,
    return
  }
  func.func @transform_0(%arg0: i32) -> (i32, i32, i32) {
    %c0_i32 = arith.constant 0 : i32
    %c0_i32_0 = arith.constant 0 : i32
    %c0_i32_1 = arith.constant 0 : i32
    %c0_i32_2 = arith.constant 0 : i32
    return %c0_i32, %c0_i32_0, %c0_i32_1 : i32, i32, i32
  }
  func.func @transform_1(%arg0: i32) -> (i32, i32) {
    %c0_i32 = arith.constant 0 : i32
    %c0_i32_0 = arith.constant 0 : i32
    %c0_i32_1 = arith.constant 0 : i32
    return %c0_i32, %c0_i32_0 : i32, i32
  }
  func.func @transform_2(%arg0: i32) -> (i32, i32) {
    %c0_i32 = arith.constant 0 : i32
    %c0_i32_0 = arith.constant 0 : i32
    %c0_i32_1 = arith.constant 0 : i32
    return %c0_i32, %c0_i32_0 : i32, i32
  }
  func.func @transform_3(%arg0: i32) -> (i32, i32) {
    %c0_i32 = arith.constant 0 : i32
    %c0_i32_0 = arith.constant 0 : i32
    %c0_i32_1 = arith.constant 0 : i32
    return %c0_i32, %c0_i32_0 : i32, i32
  }
}

module attributes {stable_mosaic.version = 11 : i64} {
  func.func @input_proj_kernel(%arg0: i32, %arg1: memref<64x32xf32, #tpu.memory_space<vmem>>, %arg2: memref<3x32x32xf32, #tpu.memory_space<vmem>>, %arg3: memref<3x1x32xf32, #tpu.memory_space<vmem>>, %arg4: memref<3x64x32xf32, #tpu.memory_space<vmem>>) attributes {dimension_semantics = [#tpu.dimension_semantics<parallel>], iteration_bounds = array<i64: 1>, scalar_prefetch = 0 : i64, scratch_operands = 0 : i64, tpu.core_type = #tpu.core_type<tc>, window_params = [{transform_indices = @transform_0, window_bounds = array<i64: 64, 32>}, {pipeline_mode = #tpu.pipeline_mode<synchronous>, transform_indices = @transform_1, window_bounds = array<i64: 3, 32, 32>}, {pipeline_mode = #tpu.pipeline_mode<synchronous>, transform_indices = @transform_2, window_bounds = array<i64: 3, 1, 32>}, {transform_indices = @transform_3, window_bounds = array<i64: 3, 64, 32>}]} {
    %c0 = arith.constant 0 : index
    %c0_0 = arith.constant 0 : index
    %0 = vector.load %arg1[%c0, %c0_0] : memref<64x32xf32, #tpu.memory_space<vmem>>, vector<64x32xf32>
    %c0_1 = arith.constant 0 : index
    %c0_2 = arith.constant 0 : index
    %c0_3 = arith.constant 0 : index
    %1 = vector.load %arg2[%c0_1, %c0_2, %c0_3] : memref<3x32x32xf32, #tpu.memory_space<vmem>>, vector<1x32x32xf32>
    %2 = vector.shape_cast %1 : vector<1x32x32xf32> to vector<32x32xf32>
    %cst = arith.constant dense<0.000000e+00> : vector<64x32xf32>
    %3 = tpu.matmul %0, %2, %cst {dimension_numbers = #tpu.dot_dimension_numbers<[1], [0], [0], [1], [0, 0, 1, 1], [], []>} : vector<64x32xf32>, vector<32x32xf32>, vector<64x32xf32> -> vector<64x32xf32>
    %c0_4 = arith.constant 0 : index
    %c0_5 = arith.constant 0 : index
    %c0_6 = arith.constant 0 : index
    %4 = vector.load %arg3[%c0_4, %c0_5, %c0_6] : memref<3x1x32xf32, #tpu.memory_space<vmem>>, vector<1x1x32xf32>
    %5 = vector.shape_cast %4 : vector<1x1x32xf32> to vector<1x32xf32>
    %6 = vector.broadcast %5 : vector<1x32xf32> to vector<64x32xf32>
    %7 = arith.addf %3, %6 : vector<64x32xf32>
    %c0_7 = arith.constant 0 : index
    %c0_8 = arith.constant 0 : index
    %c0_9 = arith.constant 0 : index
    %8 = vector.load %arg4[%c0_7, %c0_8, %c0_9] : memref<3x64x32xf32, #tpu.memory_space<vmem>>, vector<1x64x32xf32>
    %9 = vector.shape_cast %8 : vector<1x64x32xf32> to vector<64x32xf32>
    %10 = vector.shape_cast %7 : vector<64x32xf32> to vector<1x64x32xf32>
    tpu.vector_store %arg4[%c0_7, %c0_8, %c0_9], %10 {strides = array<i32>} : memref<3x64x32xf32, #tpu.memory_space<vmem>>, vector<1x64x32xf32>,
    %c1 = arith.constant 1 : index
    %c0_10 = arith.constant 0 : index
    %c0_11 = arith.constant 0 : index
    %11 = vector.load %arg2[%c1, %c0_10, %c0_11] : memref<3x32x32xf32, #tpu.memory_space<vmem>>, vector<1x32x32xf32>
    %12 = vector.shape_cast %11 : vector<1x32x32xf32> to vector<32x32xf32>
    %cst_12 = arith.constant dense<0.000000e+00> : vector<64x32xf32>
    %13 = tpu.matmul %0, %12, %cst_12 {dimension_numbers = #tpu.dot_dimension_numbers<[1], [0], [0], [1], [0, 0, 1, 1], [], []>} : vector<64x32xf32>, vector<32x32xf32>, vector<64x32xf32> -> vector<64x32xf32>
    %c1_13 = arith.constant 1 : index
    %c0_14 = arith.constant 0 : index
    %c0_15 = arith.constant 0 : index
    %14 = vector.load %arg3[%c1_13, %c0_14, %c0_15] : memref<3x1x32xf32, #tpu.memory_space<vmem>>, vector<1x1x32xf32>
    %15 = vector.shape_cast %14 : vector<1x1x32xf32> to vector<1x32xf32>
    %16 = vector.broadcast %15 : vector<1x32xf32> to vector<64x32xf32>
    %17 = arith.addf %13, %16 : vector<64x32xf32>
    %c1_16 = arith.constant 1 : index
    %c0_17 = arith.constant 0 : index
    %c0_18 = arith.constant 0 : index
    %18 = vector.load %arg4[%c1_16, %c0_17, %c0_18] : memref<3x64x32xf32, #tpu.memory_space<vmem>>, vector<1x64x32xf32>
    %19 = vector.shape_cast %18 : vector<1x64x32xf32> to vector<64x32xf32>
    %20 = vector.shape_cast %17 : vector<64x32xf32> to vector<1x64x32xf32>
    tpu.vector_store %arg4[%c1_16, %c0_17, %c0_18], %20 {strides = array<i32>} : memref<3x64x32xf32, #tpu.memory_space<vmem>>, vector<1x64x32xf32>,
    %c2 = arith.constant 2 : index
    %c0_19 = arith.constant 0 : index
    %c0_20 = arith.constant 0 : index
    %21 = vector.load %arg2[%c2, %c0_19, %c0_20] : memref<3x32x32xf32, #tpu.memory_space<vmem>>, vector<1x32x32xf32>
    %22 = vector.shape_cast %21 : vector<1x32x32xf32> to vector<32x32xf32>
    %cst_21 = arith.constant dense<0.000000e+00> : vector<64x32xf32>
    %23 = tpu.matmul %0, %22, %cst_21 {dimension_numbers = #tpu.dot_dimension_numbers<[1], [0], [0], [1], [0, 0, 1, 1], [], []>} : vector<64x32xf32>, vector<32x32xf32>, vector<64x32xf32> -> vector<64x32xf32>
    %c2_22 = arith.constant 2 : index
    %c0_23 = arith.constant 0 : index
    %c0_24 = arith.constant 0 : index
    %24 = vector.load %arg3[%c2_22, %c0_23, %c0_24] : memref<3x1x32xf32, #tpu.memory_space<vmem>>, vector<1x1x32xf32>
    %25 = vector.shape_cast %24 : vector<1x1x32xf32> to vector<1x32xf32>
    %26 = vector.broadcast %25 : vector<1x32xf32> to vector<64x32xf32>
    %27 = arith.addf %23, %26 : vector<64x32xf32>
    %c2_25 = arith.constant 2 : index
    %c0_26 = arith.constant 0 : index
    %c0_27 = arith.constant 0 : index
    %28 = vector.load %arg4[%c2_25, %c0_26, %c0_27] : memref<3x64x32xf32, #tpu.memory_space<vmem>>, vector<1x64x32xf32>
    %29 = vector.shape_cast %28 : vector<1x64x32xf32> to vector<64x32xf32>
    %30 = vector.shape_cast %27 : vector<64x32xf32> to vector<1x64x32xf32>
    tpu.vector_store %arg4[%c2_25, %c0_26, %c0_27], %30 {strides = array<i32>} : memref<3x64x32xf32, #tpu.memory_space<vmem>>, vector<1x64x32xf32>,
    return
  }
  func.func @transform_0(%arg0: i32) -> (i32, i32) {
    %c0_i32 = arith.constant 0 : i32
    %c0_i32_0 = arith.constant 0 : i32
    return %arg0, %c0_i32 : i32, i32
  }
  func.func @transform_1(%arg0: i32) -> (i32, i32, i32) {
    %c0_i32 = arith.constant 0 : i32
    %c0_i32_0 = arith.constant 0 : i32
    %c0_i32_1 = arith.constant 0 : i32
    %c0_i32_2 = arith.constant 0 : i32
    return %c0_i32, %c0_i32_0, %c0_i32_1 : i32, i32, i32
  }
  func.func @transform_2(%arg0: i32) -> (i32, i32, i32) {
    %c0_i32 = arith.constant 0 : i32
    %c0_i32_0 = arith.constant 0 : i32
    %c0_i32_1 = arith.constant 0 : i32
    %c0_i32_2 = arith.constant 0 : i32
    return %c0_i32, %c0_i32_0, %c0_i32_1 : i32, i32, i32
  }
  func.func @transform_3(%arg0: i32) -> (i32, i32, i32) {
    %c0_i32 = arith.constant 0 : i32
    %c0_i32_0 = arith.constant 0 : i32
    %c0_i32_1 = arith.constant 0 : i32
    return %c0_i32, %arg0, %c0_i32_0 : i32, i32, i32
  }
}

module attributes {stable_mosaic.version = 11 : i64} {
  func.func @gru_recurrent_kernel(%arg0: i32, %arg1: i32, %arg2: memref<3x8x8x32xf32, #tpu.memory_space<vmem>>, %arg3: memref<3x32x32xf32, #tpu.memory_space<vmem>>, %arg4: memref<1x32xf32, #tpu.memory_space<vmem>>, %arg5: memref<8x32xf32, #tpu.memory_space<vmem>>, %arg6: memref<8x8x32xf32, #tpu.memory_space<vmem>>, %arg7: memref<8x32xf32, #tpu.memory_space<vmem>>, %arg8: memref<8x32xf32, #tpu.memory_space<vmem>>) attributes {dimension_semantics = [#tpu.dimension_semantics<parallel>, #tpu.dimension_semantics<arbitrary>], iteration_bounds = array<i64: 1, 1>, scalar_prefetch = 0 : i64, scratch_operands = 1 : i64, tpu.core_type = #tpu.core_type<tc>, window_params = [{transform_indices = @transform_0, window_bounds = array<i64: 3, 8, 8, 32>}, {pipeline_mode = #tpu.pipeline_mode<synchronous>, transform_indices = @transform_1, window_bounds = array<i64: 3, 32, 32>}, {pipeline_mode = #tpu.pipeline_mode<synchronous>, transform_indices = @transform_2, window_bounds = array<i64: 1, 32>}, {transform_indices = @transform_3, window_bounds = array<i64: 8, 32>}, {transform_indices = @transform_4, window_bounds = array<i64: 8, 8, 32>}, {transform_indices = @transform_5, window_bounds = array<i64: 8, 32>}]} {
    %c0_i32 = arith.constant 0 : i32
    %0 = arith.cmpi eq, %arg1, %c0_i32 : i32
    %1 = arith.extui %0 : i1 to i32
    %c0_i32_0 = arith.constant 0 : i32
    %2 = arith.cmpi ne, %1, %c0_i32_0 : i32
    scf.if %2 {
      %c0_177 = arith.constant 0 : index
      %c0_178 = arith.constant 0 : index
      %287 = vector.load %arg5[%c0_177, %c0_178] : memref<8x32xf32, #tpu.memory_space<vmem>>, vector<8x32xf32>
      %c0_179 = arith.constant 0 : index
      %c0_180 = arith.constant 0 : index
      %288 = vector.load %arg8[%c0_179, %c0_180] : memref<8x32xf32, #tpu.memory_space<vmem>>, vector<8x32xf32>
      tpu.vector_store %arg8[%c0_179, %c0_180], %287 {strides = array<i32>} : memref<8x32xf32, #tpu.memory_space<vmem>>, vector<8x32xf32>,
    } else {
    }
    %c0 = arith.constant 0 : index
    %c0_1 = arith.constant 0 : index
    %3 = vector.load %arg8[%c0, %c0_1] : memref<8x32xf32, #tpu.memory_space<vmem>>, vector<8x32xf32>
    %c0_2 = arith.constant 0 : index
    %c0_3 = arith.constant 0 : index
    %c0_4 = arith.constant 0 : index
    %4 = vector.load %arg3[%c0_2, %c0_3, %c0_4] : memref<3x32x32xf32, #tpu.memory_space<vmem>>, vector<1x32x32xf32>
    %5 = vector.shape_cast %4 : vector<1x32x32xf32> to vector<32x32xf32>
    %c1 = arith.constant 1 : index
    %c0_5 = arith.constant 0 : index
    %c0_6 = arith.constant 0 : index
    %6 = vector.load %arg3[%c1, %c0_5, %c0_6] : memref<3x32x32xf32, #tpu.memory_space<vmem>>, vector<1x32x32xf32>
    %7 = vector.shape_cast %6 : vector<1x32x32xf32> to vector<32x32xf32>
    %c2 = arith.constant 2 : index
    %c0_7 = arith.constant 0 : index
    %c0_8 = arith.constant 0 : index
    %8 = vector.load %arg3[%c2, %c0_7, %c0_8] : memref<3x32x32xf32, #tpu.memory_space<vmem>>, vector<1x32x32xf32>
    %9 = vector.shape_cast %8 : vector<1x32x32xf32> to vector<32x32xf32>
    %c0_9 = arith.constant 0 : index
    %c0_10 = arith.constant 0 : index
    %10 = vector.load %arg4[%c0_9, %c0_10] : memref<1x32xf32, #tpu.memory_space<vmem>>, vector<1x32xf32>
    %cst = arith.constant dense<0.000000e+00> : vector<8x32xf32>
    %11 = tpu.matmul %3, %5, %cst {dimension_numbers = #tpu.dot_dimension_numbers<[1], [0], [0], [1], [0, 0, 1, 1], [], []>} : vector<8x32xf32>, vector<32x32xf32>, vector<8x32xf32> -> vector<8x32xf32>
    %cst_11 = arith.constant dense<0.000000e+00> : vector<8x32xf32>
    %12 = tpu.matmul %3, %7, %cst_11 {dimension_numbers = #tpu.dot_dimension_numbers<[1], [0], [0], [1], [0, 0, 1, 1], [], []>} : vector<8x32xf32>, vector<32x32xf32>, vector<8x32xf32> -> vector<8x32xf32>
    %cst_12 = arith.constant dense<0.000000e+00> : vector<8x32xf32>
    %13 = tpu.matmul %3, %9, %cst_12 {dimension_numbers = #tpu.dot_dimension_numbers<[1], [0], [0], [1], [0, 0, 1, 1], [], []>} : vector<8x32xf32>, vector<32x32xf32>, vector<8x32xf32> -> vector<8x32xf32>
    %c0_13 = arith.constant 0 : index
    %c0_14 = arith.constant 0 : index
    %c0_15 = arith.constant 0 : index
    %c0_16 = arith.constant 0 : index
    %14 = vector.load %arg2[%c0_13, %c0_14, %c0_15, %c0_16] : memref<3x8x8x32xf32, #tpu.memory_space<vmem>>, vector<1x1x8x32xf32>
    %15 = vector.shape_cast %14 : vector<1x1x8x32xf32> to vector<8x32xf32>
    %16 = arith.addf %15, %11 : vector<8x32xf32>
    %17 = arith.negf %16 : vector<8x32xf32>
    %18 = math.exp %17 : vector<8x32xf32>
    %cst_17 = arith.constant 1.000000e+00 : f32
    %19 = vector.broadcast %cst_17 : f32 to vector<8x32xf32>
    %20 = arith.addf %19, %18 : vector<8x32xf32>
    %21 = arith.divf %19, %20 : vector<8x32xf32>
    %c1_18 = arith.constant 1 : index
    %c0_19 = arith.constant 0 : index
    %c0_20 = arith.constant 0 : index
    %c0_21 = arith.constant 0 : index
    %22 = vector.load %arg2[%c1_18, %c0_19, %c0_20, %c0_21] : memref<3x8x8x32xf32, #tpu.memory_space<vmem>>, vector<1x1x8x32xf32>
    %23 = vector.shape_cast %22 : vector<1x1x8x32xf32> to vector<8x32xf32>
    %24 = arith.addf %23, %12 : vector<8x32xf32>
    %25 = arith.negf %24 : vector<8x32xf32>
    %26 = math.exp %25 : vector<8x32xf32>
    %cst_22 = arith.constant 1.000000e+00 : f32
    %27 = vector.broadcast %cst_22 : f32 to vector<8x32xf32>
    %28 = arith.addf %27, %26 : vector<8x32xf32>
    %29 = arith.divf %27, %28 : vector<8x32xf32>
    %c2_23 = arith.constant 2 : index
    %c0_24 = arith.constant 0 : index
    %c0_25 = arith.constant 0 : index
    %c0_26 = arith.constant 0 : index
    %30 = vector.load %arg2[%c2_23, %c0_24, %c0_25, %c0_26] : memref<3x8x8x32xf32, #tpu.memory_space<vmem>>, vector<1x1x8x32xf32>
    %31 = vector.shape_cast %30 : vector<1x1x8x32xf32> to vector<8x32xf32>
    %32 = vector.broadcast %10 : vector<1x32xf32> to vector<8x32xf32>
    %33 = arith.addf %13, %32 : vector<8x32xf32>
    %34 = arith.mulf %21, %33 : vector<8x32xf32>
    %35 = arith.addf %31, %34 : vector<8x32xf32>
    %36 = math.tanh %35 : vector<8x32xf32>
    %cst_27 = arith.constant 1.000000e+00 : f32
    %37 = vector.broadcast %cst_27 : f32 to vector<8x32xf32>
    %38 = arith.subf %37, %29 : vector<8x32xf32>
    %39 = arith.mulf %38, %36 : vector<8x32xf32>
    %40 = arith.mulf %29, %3 : vector<8x32xf32>
    %41 = arith.addf %39, %40 : vector<8x32xf32>
    %c0_28 = arith.constant 0 : index
    %c0_29 = arith.constant 0 : index
    %c0_30 = arith.constant 0 : index
    %42 = vector.load %arg6[%c0_28, %c0_29, %c0_30] : memref<8x8x32xf32, #tpu.memory_space<vmem>>, vector<1x8x32xf32>
    %43 = vector.shape_cast %42 : vector<1x8x32xf32> to vector<8x32xf32>
    %44 = vector.shape_cast %41 : vector<8x32xf32> to vector<1x8x32xf32>
    tpu.vector_store %arg6[%c0_28, %c0_29, %c0_30], %44 {strides = array<i32>} : memref<8x8x32xf32, #tpu.memory_space<vmem>>, vector<1x8x32xf32>,
    %cst_31 = arith.constant dense<0.000000e+00> : vector<8x32xf32>
    %45 = tpu.matmul %41, %5, %cst_31 {dimension_numbers = #tpu.dot_dimension_numbers<[1], [0], [0], [1], [0, 0, 1, 1], [], []>} : vector<8x32xf32>, vector<32x32xf32>, vector<8x32xf32> -> vector<8x32xf32>
    %cst_32 = arith.constant dense<0.000000e+00> : vector<8x32xf32>
    %46 = tpu.matmul %41, %7, %cst_32 {dimension_numbers = #tpu.dot_dimension_numbers<[1], [0], [0], [1], [0, 0, 1, 1], [], []>} : vector<8x32xf32>, vector<32x32xf32>, vector<8x32xf32> -> vector<8x32xf32>
    %cst_33 = arith.constant dense<0.000000e+00> : vector<8x32xf32>
    %47 = tpu.matmul %41, %9, %cst_33 {dimension_numbers = #tpu.dot_dimension_numbers<[1], [0], [0], [1], [0, 0, 1, 1], [], []>} : vector<8x32xf32>, vector<32x32xf32>, vector<8x32xf32> -> vector<8x32xf32>
    %c0_34 = arith.constant 0 : index
    %c1_35 = arith.constant 1 : index
    %c0_36 = arith.constant 0 : index
    %c0_37 = arith.constant 0 : index
    %48 = vector.load %arg2[%c0_34, %c1_35, %c0_36, %c0_37] : memref<3x8x8x32xf32, #tpu.memory_space<vmem>>, vector<1x1x8x32xf32>
    %49 = vector.shape_cast %48 : vector<1x1x8x32xf32> to vector<8x32xf32>
    %50 = arith.addf %49, %45 : vector<8x32xf32>
    %51 = arith.negf %50 : vector<8x32xf32>
    %52 = math.exp %51 : vector<8x32xf32>
    %cst_38 = arith.constant 1.000000e+00 : f32
    %53 = vector.broadcast %cst_38 : f32 to vector<8x32xf32>
    %54 = arith.addf %53, %52 : vector<8x32xf32>
    %55 = arith.divf %53, %54 : vector<8x32xf32>
    %c1_39 = arith.constant 1 : index
    %c1_40 = arith.constant 1 : index
    %c0_41 = arith.constant 0 : index
    %c0_42 = arith.constant 0 : index
    %56 = vector.load %arg2[%c1_39, %c1_40, %c0_41, %c0_42] : memref<3x8x8x32xf32, #tpu.memory_space<vmem>>, vector<1x1x8x32xf32>
    %57 = vector.shape_cast %56 : vector<1x1x8x32xf32> to vector<8x32xf32>
    %58 = arith.addf %57, %46 : vector<8x32xf32>
    %59 = arith.negf %58 : vector<8x32xf32>
    %60 = math.exp %59 : vector<8x32xf32>
    %cst_43 = arith.constant 1.000000e+00 : f32
    %61 = vector.broadcast %cst_43 : f32 to vector<8x32xf32>
    %62 = arith.addf %61, %60 : vector<8x32xf32>
    %63 = arith.divf %61, %62 : vector<8x32xf32>
    %c2_44 = arith.constant 2 : index
    %c1_45 = arith.constant 1 : index
    %c0_46 = arith.constant 0 : index
    %c0_47 = arith.constant 0 : index
    %64 = vector.load %arg2[%c2_44, %c1_45, %c0_46, %c0_47] : memref<3x8x8x32xf32, #tpu.memory_space<vmem>>, vector<1x1x8x32xf32>
    %65 = vector.shape_cast %64 : vector<1x1x8x32xf32> to vector<8x32xf32>
    %66 = vector.broadcast %10 : vector<1x32xf32> to vector<8x32xf32>
    %67 = arith.addf %47, %66 : vector<8x32xf32>
    %68 = arith.mulf %55, %67 : vector<8x32xf32>
    %69 = arith.addf %65, %68 : vector<8x32xf32>
    %70 = math.tanh %69 : vector<8x32xf32>
    %cst_48 = arith.constant 1.000000e+00 : f32
    %71 = vector.broadcast %cst_48 : f32 to vector<8x32xf32>
    %72 = arith.subf %71, %63 : vector<8x32xf32>
    %73 = arith.mulf %72, %70 : vector<8x32xf32>
    %74 = arith.mulf %63, %41 : vector<8x32xf32>
    %75 = arith.addf %73, %74 : vector<8x32xf32>
    %c1_49 = arith.constant 1 : index
    %c0_50 = arith.constant 0 : index
    %c0_51 = arith.constant 0 : index
    %76 = vector.load %arg6[%c1_49, %c0_50, %c0_51] : memref<8x8x32xf32, #tpu.memory_space<vmem>>, vector<1x8x32xf32>
    %77 = vector.shape_cast %76 : vector<1x8x32xf32> to vector<8x32xf32>
    %78 = vector.shape_cast %75 : vector<8x32xf32> to vector<1x8x32xf32>
    tpu.vector_store %arg6[%c1_49, %c0_50, %c0_51], %78 {strides = array<i32>} : memref<8x8x32xf32, #tpu.memory_space<vmem>>, vector<1x8x32xf32>,
    %cst_52 = arith.constant dense<0.000000e+00> : vector<8x32xf32>
    %79 = tpu.matmul %75, %5, %cst_52 {dimension_numbers = #tpu.dot_dimension_numbers<[1], [0], [0], [1], [0, 0, 1, 1], [], []>} : vector<8x32xf32>, vector<32x32xf32>, vector<8x32xf32> -> vector<8x32xf32>
    %cst_53 = arith.constant dense<0.000000e+00> : vector<8x32xf32>
    %80 = tpu.matmul %75, %7, %cst_53 {dimension_numbers = #tpu.dot_dimension_numbers<[1], [0], [0], [1], [0, 0, 1, 1], [], []>} : vector<8x32xf32>, vector<32x32xf32>, vector<8x32xf32> -> vector<8x32xf32>
    %cst_54 = arith.constant dense<0.000000e+00> : vector<8x32xf32>
    %81 = tpu.matmul %75, %9, %cst_54 {dimension_numbers = #tpu.dot_dimension_numbers<[1], [0], [0], [1], [0, 0, 1, 1], [], []>} : vector<8x32xf32>, vector<32x32xf32>, vector<8x32xf32> -> vector<8x32xf32>
    %c0_55 = arith.constant 0 : index
    %c2_56 = arith.constant 2 : index
    %c0_57 = arith.constant 0 : index
    %c0_58 = arith.constant 0 : index
    %82 = vector.load %arg2[%c0_55, %c2_56, %c0_57, %c0_58] : memref<3x8x8x32xf32, #tpu.memory_space<vmem>>, vector<1x1x8x32xf32>
    %83 = vector.shape_cast %82 : vector<1x1x8x32xf32> to vector<8x32xf32>
    %84 = arith.addf %83, %79 : vector<8x32xf32>
    %85 = arith.negf %84 : vector<8x32xf32>
    %86 = math.exp %85 : vector<8x32xf32>
    %cst_59 = arith.constant 1.000000e+00 : f32
    %87 = vector.broadcast %cst_59 : f32 to vector<8x32xf32>
    %88 = arith.addf %87, %86 : vector<8x32xf32>
    %89 = arith.divf %87, %88 : vector<8x32xf32>
    %c1_60 = arith.constant 1 : index
    %c2_61 = arith.constant 2 : index
    %c0_62 = arith.constant 0 : index
    %c0_63 = arith.constant 0 : index
    %90 = vector.load %arg2[%c1_60, %c2_61, %c0_62, %c0_63] : memref<3x8x8x32xf32, #tpu.memory_space<vmem>>, vector<1x1x8x32xf32>
    %91 = vector.shape_cast %90 : vector<1x1x8x32xf32> to vector<8x32xf32>
    %92 = arith.addf %91, %80 : vector<8x32xf32>
    %93 = arith.negf %92 : vector<8x32xf32>
    %94 = math.exp %93 : vector<8x32xf32>
    %cst_64 = arith.constant 1.000000e+00 : f32
    %95 = vector.broadcast %cst_64 : f32 to vector<8x32xf32>
    %96 = arith.addf %95, %94 : vector<8x32xf32>
    %97 = arith.divf %95, %96 : vector<8x32xf32>
    %c2_65 = arith.constant 2 : index
    %c2_66 = arith.constant 2 : index
    %c0_67 = arith.constant 0 : index
    %c0_68 = arith.constant 0 : index
    %98 = vector.load %arg2[%c2_65, %c2_66, %c0_67, %c0_68] : memref<3x8x8x32xf32, #tpu.memory_space<vmem>>, vector<1x1x8x32xf32>
    %99 = vector.shape_cast %98 : vector<1x1x8x32xf32> to vector<8x32xf32>
    %100 = vector.broadcast %10 : vector<1x32xf32> to vector<8x32xf32>
    %101 = arith.addf %81, %100 : vector<8x32xf32>
    %102 = arith.mulf %89, %101 : vector<8x32xf32>
    %103 = arith.addf %99, %102 : vector<8x32xf32>
    %104 = math.tanh %103 : vector<8x32xf32>
    %cst_69 = arith.constant 1.000000e+00 : f32
    %105 = vector.broadcast %cst_69 : f32 to vector<8x32xf32>
    %106 = arith.subf %105, %97 : vector<8x32xf32>
    %107 = arith.mulf %106, %104 : vector<8x32xf32>
    %108 = arith.mulf %97, %75 : vector<8x32xf32>
    %109 = arith.addf %107, %108 : vector<8x32xf32>
    %c2_70 = arith.constant 2 : index
    %c0_71 = arith.constant 0 : index
    %c0_72 = arith.constant 0 : index
    %110 = vector.load %arg6[%c2_70, %c0_71, %c0_72] : memref<8x8x32xf32, #tpu.memory_space<vmem>>, vector<1x8x32xf32>
    %111 = vector.shape_cast %110 : vector<1x8x32xf32> to vector<8x32xf32>
    %112 = vector.shape_cast %109 : vector<8x32xf32> to vector<1x8x32xf32>
    tpu.vector_store %arg6[%c2_70, %c0_71, %c0_72], %112 {strides = array<i32>} : memref<8x8x32xf32, #tpu.memory_space<vmem>>, vector<1x8x32xf32>,
    %cst_73 = arith.constant dense<0.000000e+00> : vector<8x32xf32>
    %113 = tpu.matmul %109, %5, %cst_73 {dimension_numbers = #tpu.dot_dimension_numbers<[1], [0], [0], [1], [0, 0, 1, 1], [], []>} : vector<8x32xf32>, vector<32x32xf32>, vector<8x32xf32> -> vector<8x32xf32>
    %cst_74 = arith.constant dense<0.000000e+00> : vector<8x32xf32>
    %114 = tpu.matmul %109, %7, %cst_74 {dimension_numbers = #tpu.dot_dimension_numbers<[1], [0], [0], [1], [0, 0, 1, 1], [], []>} : vector<8x32xf32>, vector<32x32xf32>, vector<8x32xf32> -> vector<8x32xf32>
    %cst_75 = arith.constant dense<0.000000e+00> : vector<8x32xf32>
    %115 = tpu.matmul %109, %9, %cst_75 {dimension_numbers = #tpu.dot_dimension_numbers<[1], [0], [0], [1], [0, 0, 1, 1], [], []>} : vector<8x32xf32>, vector<32x32xf32>, vector<8x32xf32> -> vector<8x32xf32>
    %c0_76 = arith.constant 0 : index
    %c3 = arith.constant 3 : index
    %c0_77 = arith.constant 0 : index
    %c0_78 = arith.constant 0 : index
    %116 = vector.load %arg2[%c0_76, %c3, %c0_77, %c0_78] : memref<3x8x8x32xf32, #tpu.memory_space<vmem>>, vector<1x1x8x32xf32>
    %117 = vector.shape_cast %116 : vector<1x1x8x32xf32> to vector<8x32xf32>
    %118 = arith.addf %117, %113 : vector<8x32xf32>
    %119 = arith.negf %118 : vector<8x32xf32>
    %120 = math.exp %119 : vector<8x32xf32>
    %cst_79 = arith.constant 1.000000e+00 : f32
    %121 = vector.broadcast %cst_79 : f32 to vector<8x32xf32>
    %122 = arith.addf %121, %120 : vector<8x32xf32>
    %123 = arith.divf %121, %122 : vector<8x32xf32>
    %c1_80 = arith.constant 1 : index
    %c3_81 = arith.constant 3 : index
    %c0_82 = arith.constant 0 : index
    %c0_83 = arith.constant 0 : index
    %124 = vector.load %arg2[%c1_80, %c3_81, %c0_82, %c0_83] : memref<3x8x8x32xf32, #tpu.memory_space<vmem>>, vector<1x1x8x32xf32>
    %125 = vector.shape_cast %124 : vector<1x1x8x32xf32> to vector<8x32xf32>
    %126 = arith.addf %125, %114 : vector<8x32xf32>
    %127 = arith.negf %126 : vector<8x32xf32>
    %128 = math.exp %127 : vector<8x32xf32>
    %cst_84 = arith.constant 1.000000e+00 : f32
    %129 = vector.broadcast %cst_84 : f32 to vector<8x32xf32>
    %130 = arith.addf %129, %128 : vector<8x32xf32>
    %131 = arith.divf %129, %130 : vector<8x32xf32>
    %c2_85 = arith.constant 2 : index
    %c3_86 = arith.constant 3 : index
    %c0_87 = arith.constant 0 : index
    %c0_88 = arith.constant 0 : index
    %132 = vector.load %arg2[%c2_85, %c3_86, %c0_87, %c0_88] : memref<3x8x8x32xf32, #tpu.memory_space<vmem>>, vector<1x1x8x32xf32>
    %133 = vector.shape_cast %132 : vector<1x1x8x32xf32> to vector<8x32xf32>
    %134 = vector.broadcast %10 : vector<1x32xf32> to vector<8x32xf32>
    %135 = arith.addf %115, %134 : vector<8x32xf32>
    %136 = arith.mulf %123, %135 : vector<8x32xf32>
    %137 = arith.addf %133, %136 : vector<8x32xf32>
    %138 = math.tanh %137 : vector<8x32xf32>
    %cst_89 = arith.constant 1.000000e+00 : f32
    %139 = vector.broadcast %cst_89 : f32 to vector<8x32xf32>
    %140 = arith.subf %139, %131 : vector<8x32xf32>
    %141 = arith.mulf %140, %138 : vector<8x32xf32>
    %142 = arith.mulf %131, %109 : vector<8x32xf32>
    %143 = arith.addf %141, %142 : vector<8x32xf32>
    %c3_90 = arith.constant 3 : index
    %c0_91 = arith.constant 0 : index
    %c0_92 = arith.constant 0 : index
    %144 = vector.load %arg6[%c3_90, %c0_91, %c0_92] : memref<8x8x32xf32, #tpu.memory_space<vmem>>, vector<1x8x32xf32>
    %145 = vector.shape_cast %144 : vector<1x8x32xf32> to vector<8x32xf32>
    %146 = vector.shape_cast %143 : vector<8x32xf32> to vector<1x8x32xf32>
    tpu.vector_store %arg6[%c3_90, %c0_91, %c0_92], %146 {strides = array<i32>} : memref<8x8x32xf32, #tpu.memory_space<vmem>>, vector<1x8x32xf32>,
    %cst_93 = arith.constant dense<0.000000e+00> : vector<8x32xf32>
    %147 = tpu.matmul %143, %5, %cst_93 {dimension_numbers = #tpu.dot_dimension_numbers<[1], [0], [0], [1], [0, 0, 1, 1], [], []>} : vector<8x32xf32>, vector<32x32xf32>, vector<8x32xf32> -> vector<8x32xf32>
    %cst_94 = arith.constant dense<0.000000e+00> : vector<8x32xf32>
    %148 = tpu.matmul %143, %7, %cst_94 {dimension_numbers = #tpu.dot_dimension_numbers<[1], [0], [0], [1], [0, 0, 1, 1], [], []>} : vector<8x32xf32>, vector<32x32xf32>, vector<8x32xf32> -> vector<8x32xf32>
    %cst_95 = arith.constant dense<0.000000e+00> : vector<8x32xf32>
    %149 = tpu.matmul %143, %9, %cst_95 {dimension_numbers = #tpu.dot_dimension_numbers<[1], [0], [0], [1], [0, 0, 1, 1], [], []>} : vector<8x32xf32>, vector<32x32xf32>, vector<8x32xf32> -> vector<8x32xf32>
    %c0_96 = arith.constant 0 : index
    %c4 = arith.constant 4 : index
    %c0_97 = arith.constant 0 : index
    %c0_98 = arith.constant 0 : index
    %150 = vector.load %arg2[%c0_96, %c4, %c0_97, %c0_98] : memref<3x8x8x32xf32, #tpu.memory_space<vmem>>, vector<1x1x8x32xf32>
    %151 = vector.shape_cast %150 : vector<1x1x8x32xf32> to vector<8x32xf32>
    %152 = arith.addf %151, %147 : vector<8x32xf32>
    %153 = arith.negf %152 : vector<8x32xf32>
    %154 = math.exp %153 : vector<8x32xf32>
    %cst_99 = arith.constant 1.000000e+00 : f32
    %155 = vector.broadcast %cst_99 : f32 to vector<8x32xf32>
    %156 = arith.addf %155, %154 : vector<8x32xf32>
    %157 = arith.divf %155, %156 : vector<8x32xf32>
    %c1_100 = arith.constant 1 : index
    %c4_101 = arith.constant 4 : index
    %c0_102 = arith.constant 0 : index
    %c0_103 = arith.constant 0 : index
    %158 = vector.load %arg2[%c1_100, %c4_101, %c0_102, %c0_103] : memref<3x8x8x32xf32, #tpu.memory_space<vmem>>, vector<1x1x8x32xf32>
    %159 = vector.shape_cast %158 : vector<1x1x8x32xf32> to vector<8x32xf32>
    %160 = arith.addf %159, %148 : vector<8x32xf32>
    %161 = arith.negf %160 : vector<8x32xf32>
    %162 = math.exp %161 : vector<8x32xf32>
    %cst_104 = arith.constant 1.000000e+00 : f32
    %163 = vector.broadcast %cst_104 : f32 to vector<8x32xf32>
    %164 = arith.addf %163, %162 : vector<8x32xf32>
    %165 = arith.divf %163, %164 : vector<8x32xf32>
    %c2_105 = arith.constant 2 : index
    %c4_106 = arith.constant 4 : index
    %c0_107 = arith.constant 0 : index
    %c0_108 = arith.constant 0 : index
    %166 = vector.load %arg2[%c2_105, %c4_106, %c0_107, %c0_108] : memref<3x8x8x32xf32, #tpu.memory_space<vmem>>, vector<1x1x8x32xf32>
    %167 = vector.shape_cast %166 : vector<1x1x8x32xf32> to vector<8x32xf32>
    %168 = vector.broadcast %10 : vector<1x32xf32> to vector<8x32xf32>
    %169 = arith.addf %149, %168 : vector<8x32xf32>
    %170 = arith.mulf %157, %169 : vector<8x32xf32>
    %171 = arith.addf %167, %170 : vector<8x32xf32>
    %172 = math.tanh %171 : vector<8x32xf32>
    %cst_109 = arith.constant 1.000000e+00 : f32
    %173 = vector.broadcast %cst_109 : f32 to vector<8x32xf32>
    %174 = arith.subf %173, %165 : vector<8x32xf32>
    %175 = arith.mulf %174, %172 : vector<8x32xf32>
    %176 = arith.mulf %165, %143 : vector<8x32xf32>
    %177 = arith.addf %175, %176 : vector<8x32xf32>
    %c4_110 = arith.constant 4 : index
    %c0_111 = arith.constant 0 : index
    %c0_112 = arith.constant 0 : index
    %178 = vector.load %arg6[%c4_110, %c0_111, %c0_112] : memref<8x8x32xf32, #tpu.memory_space<vmem>>, vector<1x8x32xf32>
    %179 = vector.shape_cast %178 : vector<1x8x32xf32> to vector<8x32xf32>
    %180 = vector.shape_cast %177 : vector<8x32xf32> to vector<1x8x32xf32>
    tpu.vector_store %arg6[%c4_110, %c0_111, %c0_112], %180 {strides = array<i32>} : memref<8x8x32xf32, #tpu.memory_space<vmem>>, vector<1x8x32xf32>,
    %cst_113 = arith.constant dense<0.000000e+00> : vector<8x32xf32>
    %181 = tpu.matmul %177, %5, %cst_113 {dimension_numbers = #tpu.dot_dimension_numbers<[1], [0], [0], [1], [0, 0, 1, 1], [], []>} : vector<8x32xf32>, vector<32x32xf32>, vector<8x32xf32> -> vector<8x32xf32>
    %cst_114 = arith.constant dense<0.000000e+00> : vector<8x32xf32>
    %182 = tpu.matmul %177, %7, %cst_114 {dimension_numbers = #tpu.dot_dimension_numbers<[1], [0], [0], [1], [0, 0, 1, 1], [], []>} : vector<8x32xf32>, vector<32x32xf32>, vector<8x32xf32> -> vector<8x32xf32>
    %cst_115 = arith.constant dense<0.000000e+00> : vector<8x32xf32>
    %183 = tpu.matmul %177, %9, %cst_115 {dimension_numbers = #tpu.dot_dimension_numbers<[1], [0], [0], [1], [0, 0, 1, 1], [], []>} : vector<8x32xf32>, vector<32x32xf32>, vector<8x32xf32> -> vector<8x32xf32>
    %c0_116 = arith.constant 0 : index
    %c5 = arith.constant 5 : index
    %c0_117 = arith.constant 0 : index
    %c0_118 = arith.constant 0 : index
    %184 = vector.load %arg2[%c0_116, %c5, %c0_117, %c0_118] : memref<3x8x8x32xf32, #tpu.memory_space<vmem>>, vector<1x1x8x32xf32>
    %185 = vector.shape_cast %184 : vector<1x1x8x32xf32> to vector<8x32xf32>
    %186 = arith.addf %185, %181 : vector<8x32xf32>
    %187 = arith.negf %186 : vector<8x32xf32>
    %188 = math.exp %187 : vector<8x32xf32>
    %cst_119 = arith.constant 1.000000e+00 : f32
    %189 = vector.broadcast %cst_119 : f32 to vector<8x32xf32>
    %190 = arith.addf %189, %188 : vector<8x32xf32>
    %191 = arith.divf %189, %190 : vector<8x32xf32>
    %c1_120 = arith.constant 1 : index
    %c5_121 = arith.constant 5 : index
    %c0_122 = arith.constant 0 : index
    %c0_123 = arith.constant 0 : index
    %192 = vector.load %arg2[%c1_120, %c5_121, %c0_122, %c0_123] : memref<3x8x8x32xf32, #tpu.memory_space<vmem>>, vector<1x1x8x32xf32>
    %193 = vector.shape_cast %192 : vector<1x1x8x32xf32> to vector<8x32xf32>
    %194 = arith.addf %193, %182 : vector<8x32xf32>
    %195 = arith.negf %194 : vector<8x32xf32>
    %196 = math.exp %195 : vector<8x32xf32>
    %cst_124 = arith.constant 1.000000e+00 : f32
    %197 = vector.broadcast %cst_124 : f32 to vector<8x32xf32>
    %198 = arith.addf %197, %196 : vector<8x32xf32>
    %199 = arith.divf %197, %198 : vector<8x32xf32>
    %c2_125 = arith.constant 2 : index
    %c5_126 = arith.constant 5 : index
    %c0_127 = arith.constant 0 : index
    %c0_128 = arith.constant 0 : index
    %200 = vector.load %arg2[%c2_125, %c5_126, %c0_127, %c0_128] : memref<3x8x8x32xf32, #tpu.memory_space<vmem>>, vector<1x1x8x32xf32>
    %201 = vector.shape_cast %200 : vector<1x1x8x32xf32> to vector<8x32xf32>
    %202 = vector.broadcast %10 : vector<1x32xf32> to vector<8x32xf32>
    %203 = arith.addf %183, %202 : vector<8x32xf32>
    %204 = arith.mulf %191, %203 : vector<8x32xf32>
    %205 = arith.addf %201, %204 : vector<8x32xf32>
    %206 = math.tanh %205 : vector<8x32xf32>
    %cst_129 = arith.constant 1.000000e+00 : f32
    %207 = vector.broadcast %cst_129 : f32 to vector<8x32xf32>
    %208 = arith.subf %207, %199 : vector<8x32xf32>
    %209 = arith.mulf %208, %206 : vector<8x32xf32>
    %210 = arith.mulf %199, %177 : vector<8x32xf32>
    %211 = arith.addf %209, %210 : vector<8x32xf32>
    %c5_130 = arith.constant 5 : index
    %c0_131 = arith.constant 0 : index
    %c0_132 = arith.constant 0 : index
    %212 = vector.load %arg6[%c5_130, %c0_131, %c0_132] : memref<8x8x32xf32, #tpu.memory_space<vmem>>, vector<1x8x32xf32>
    %213 = vector.shape_cast %212 : vector<1x8x32xf32> to vector<8x32xf32>
    %214 = vector.shape_cast %211 : vector<8x32xf32> to vector<1x8x32xf32>
    tpu.vector_store %arg6[%c5_130, %c0_131, %c0_132], %214 {strides = array<i32>} : memref<8x8x32xf32, #tpu.memory_space<vmem>>, vector<1x8x32xf32>,
    %cst_133 = arith.constant dense<0.000000e+00> : vector<8x32xf32>
    %215 = tpu.matmul %211, %5, %cst_133 {dimension_numbers = #tpu.dot_dimension_numbers<[1], [0], [0], [1], [0, 0, 1, 1], [], []>} : vector<8x32xf32>, vector<32x32xf32>, vector<8x32xf32> -> vector<8x32xf32>
    %cst_134 = arith.constant dense<0.000000e+00> : vector<8x32xf32>
    %216 = tpu.matmul %211, %7, %cst_134 {dimension_numbers = #tpu.dot_dimension_numbers<[1], [0], [0], [1], [0, 0, 1, 1], [], []>} : vector<8x32xf32>, vector<32x32xf32>, vector<8x32xf32> -> vector<8x32xf32>
    %cst_135 = arith.constant dense<0.000000e+00> : vector<8x32xf32>
    %217 = tpu.matmul %211, %9, %cst_135 {dimension_numbers = #tpu.dot_dimension_numbers<[1], [0], [0], [1], [0, 0, 1, 1], [], []>} : vector<8x32xf32>, vector<32x32xf32>, vector<8x32xf32> -> vector<8x32xf32>
    %c0_136 = arith.constant 0 : index
    %c6 = arith.constant 6 : index
    %c0_137 = arith.constant 0 : index
    %c0_138 = arith.constant 0 : index
    %218 = vector.load %arg2[%c0_136, %c6, %c0_137, %c0_138] : memref<3x8x8x32xf32, #tpu.memory_space<vmem>>, vector<1x1x8x32xf32>
    %219 = vector.shape_cast %218 : vector<1x1x8x32xf32> to vector<8x32xf32>
    %220 = arith.addf %219, %215 : vector<8x32xf32>
    %221 = arith.negf %220 : vector<8x32xf32>
    %222 = math.exp %221 : vector<8x32xf32>
    %cst_139 = arith.constant 1.000000e+00 : f32
    %223 = vector.broadcast %cst_139 : f32 to vector<8x32xf32>
    %224 = arith.addf %223, %222 : vector<8x32xf32>
    %225 = arith.divf %223, %224 : vector<8x32xf32>
    %c1_140 = arith.constant 1 : index
    %c6_141 = arith.constant 6 : index
    %c0_142 = arith.constant 0 : index
    %c0_143 = arith.constant 0 : index
    %226 = vector.load %arg2[%c1_140, %c6_141, %c0_142, %c0_143] : memref<3x8x8x32xf32, #tpu.memory_space<vmem>>, vector<1x1x8x32xf32>
    %227 = vector.shape_cast %226 : vector<1x1x8x32xf32> to vector<8x32xf32>
    %228 = arith.addf %227, %216 : vector<8x32xf32>
    %229 = arith.negf %228 : vector<8x32xf32>
    %230 = math.exp %229 : vector<8x32xf32>
    %cst_144 = arith.constant 1.000000e+00 : f32
    %231 = vector.broadcast %cst_144 : f32 to vector<8x32xf32>
    %232 = arith.addf %231, %230 : vector<8x32xf32>
    %233 = arith.divf %231, %232 : vector<8x32xf32>
    %c2_145 = arith.constant 2 : index
    %c6_146 = arith.constant 6 : index
    %c0_147 = arith.constant 0 : index
    %c0_148 = arith.constant 0 : index
    %234 = vector.load %arg2[%c2_145, %c6_146, %c0_147, %c0_148] : memref<3x8x8x32xf32, #tpu.memory_space<vmem>>, vector<1x1x8x32xf32>
    %235 = vector.shape_cast %234 : vector<1x1x8x32xf32> to vector<8x32xf32>
    %236 = vector.broadcast %10 : vector<1x32xf32> to vector<8x32xf32>
    %237 = arith.addf %217, %236 : vector<8x32xf32>
    %238 = arith.mulf %225, %237 : vector<8x32xf32>
    %239 = arith.addf %235, %238 : vector<8x32xf32>
    %240 = math.tanh %239 : vector<8x32xf32>
    %cst_149 = arith.constant 1.000000e+00 : f32
    %241 = vector.broadcast %cst_149 : f32 to vector<8x32xf32>
    %242 = arith.subf %241, %233 : vector<8x32xf32>
    %243 = arith.mulf %242, %240 : vector<8x32xf32>
    %244 = arith.mulf %233, %211 : vector<8x32xf32>
    %245 = arith.addf %243, %244 : vector<8x32xf32>
    %c6_150 = arith.constant 6 : index
    %c0_151 = arith.constant 0 : index
    %c0_152 = arith.constant 0 : index
    %246 = vector.load %arg6[%c6_150, %c0_151, %c0_152] : memref<8x8x32xf32, #tpu.memory_space<vmem>>, vector<1x8x32xf32>
    %247 = vector.shape_cast %246 : vector<1x8x32xf32> to vector<8x32xf32>
    %248 = vector.shape_cast %245 : vector<8x32xf32> to vector<1x8x32xf32>
    tpu.vector_store %arg6[%c6_150, %c0_151, %c0_152], %248 {strides = array<i32>} : memref<8x8x32xf32, #tpu.memory_space<vmem>>, vector<1x8x32xf32>,
    %cst_153 = arith.constant dense<0.000000e+00> : vector<8x32xf32>
    %249 = tpu.matmul %245, %5, %cst_153 {dimension_numbers = #tpu.dot_dimension_numbers<[1], [0], [0], [1], [0, 0, 1, 1], [], []>} : vector<8x32xf32>, vector<32x32xf32>, vector<8x32xf32> -> vector<8x32xf32>
    %cst_154 = arith.constant dense<0.000000e+00> : vector<8x32xf32>
    %250 = tpu.matmul %245, %7, %cst_154 {dimension_numbers = #tpu.dot_dimension_numbers<[1], [0], [0], [1], [0, 0, 1, 1], [], []>} : vector<8x32xf32>, vector<32x32xf32>, vector<8x32xf32> -> vector<8x32xf32>
    %cst_155 = arith.constant dense<0.000000e+00> : vector<8x32xf32>
    %251 = tpu.matmul %245, %9, %cst_155 {dimension_numbers = #tpu.dot_dimension_numbers<[1], [0], [0], [1], [0, 0, 1, 1], [], []>} : vector<8x32xf32>, vector<32x32xf32>, vector<8x32xf32> -> vector<8x32xf32>
    %c0_156 = arith.constant 0 : index
    %c7 = arith.constant 7 : index
    %c0_157 = arith.constant 0 : index
    %c0_158 = arith.constant 0 : index
    %252 = vector.load %arg2[%c0_156, %c7, %c0_157, %c0_158] : memref<3x8x8x32xf32, #tpu.memory_space<vmem>>, vector<1x1x8x32xf32>
    %253 = vector.shape_cast %252 : vector<1x1x8x32xf32> to vector<8x32xf32>
    %254 = arith.addf %253, %249 : vector<8x32xf32>
    %255 = arith.negf %254 : vector<8x32xf32>
    %256 = math.exp %255 : vector<8x32xf32>
    %cst_159 = arith.constant 1.000000e+00 : f32
    %257 = vector.broadcast %cst_159 : f32 to vector<8x32xf32>
    %258 = arith.addf %257, %256 : vector<8x32xf32>
    %259 = arith.divf %257, %258 : vector<8x32xf32>
    %c1_160 = arith.constant 1 : index
    %c7_161 = arith.constant 7 : index
    %c0_162 = arith.constant 0 : index
    %c0_163 = arith.constant 0 : index
    %260 = vector.load %arg2[%c1_160, %c7_161, %c0_162, %c0_163] : memref<3x8x8x32xf32, #tpu.memory_space<vmem>>, vector<1x1x8x32xf32>
    %261 = vector.shape_cast %260 : vector<1x1x8x32xf32> to vector<8x32xf32>
    %262 = arith.addf %261, %250 : vector<8x32xf32>
    %263 = arith.negf %262 : vector<8x32xf32>
    %264 = math.exp %263 : vector<8x32xf32>
    %cst_164 = arith.constant 1.000000e+00 : f32
    %265 = vector.broadcast %cst_164 : f32 to vector<8x32xf32>
    %266 = arith.addf %265, %264 : vector<8x32xf32>
    %267 = arith.divf %265, %266 : vector<8x32xf32>
    %c2_165 = arith.constant 2 : index
    %c7_166 = arith.constant 7 : index
    %c0_167 = arith.constant 0 : index
    %c0_168 = arith.constant 0 : index
    %268 = vector.load %arg2[%c2_165, %c7_166, %c0_167, %c0_168] : memref<3x8x8x32xf32, #tpu.memory_space<vmem>>, vector<1x1x8x32xf32>
    %269 = vector.shape_cast %268 : vector<1x1x8x32xf32> to vector<8x32xf32>
    %270 = vector.broadcast %10 : vector<1x32xf32> to vector<8x32xf32>
    %271 = arith.addf %251, %270 : vector<8x32xf32>
    %272 = arith.mulf %259, %271 : vector<8x32xf32>
    %273 = arith.addf %269, %272 : vector<8x32xf32>
    %274 = math.tanh %273 : vector<8x32xf32>
    %cst_169 = arith.constant 1.000000e+00 : f32
    %275 = vector.broadcast %cst_169 : f32 to vector<8x32xf32>
    %276 = arith.subf %275, %267 : vector<8x32xf32>
    %277 = arith.mulf %276, %274 : vector<8x32xf32>
    %278 = arith.mulf %267, %245 : vector<8x32xf32>
    %279 = arith.addf %277, %278 : vector<8x32xf32>
    %c7_170 = arith.constant 7 : index
    %c0_171 = arith.constant 0 : index
    %c0_172 = arith.constant 0 : index
    %280 = vector.load %arg6[%c7_170, %c0_171, %c0_172] : memref<8x8x32xf32, #tpu.memory_space<vmem>>, vector<1x8x32xf32>
    %281 = vector.shape_cast %280 : vector<1x8x32xf32> to vector<8x32xf32>
    %282 = vector.shape_cast %279 : vector<8x32xf32> to vector<1x8x32xf32>
    tpu.vector_store %arg6[%c7_170, %c0_171, %c0_172], %282 {strides = array<i32>} : memref<8x8x32xf32, #tpu.memory_space<vmem>>, vector<1x8x32xf32>,
    %c0_173 = arith.constant 0 : index
    %c0_174 = arith.constant 0 : index
    %283 = vector.load %arg8[%c0_173, %c0_174] : memref<8x32xf32, #tpu.memory_space<vmem>>, vector<8x32xf32>
    tpu.vector_store %arg8[%c0_173, %c0_174], %279 {strides = array<i32>} : memref<8x32xf32, #tpu.memory_space<vmem>>, vector<8x32xf32>,
    %c0_i32_175 = arith.constant 0 : i32
    %284 = arith.cmpi eq, %arg1, %c0_i32_175 : i32
    %285 = arith.extui %284 : i1 to i32
    %c0_i32_176 = arith.constant 0 : i32
    %286 = arith.cmpi ne, %285, %c0_i32_176 : i32
    scf.if %286 {
      %c0_177 = arith.constant 0 : index
      %c0_178 = arith.constant 0 : index
      %287 = vector.load %arg7[%c0_177, %c0_178] : memref<8x32xf32, #tpu.memory_space<vmem>>, vector<8x32xf32>
      tpu.vector_store %arg7[%c0_177, %c0_178], %279 {strides = array<i32>} : memref<8x32xf32, #tpu.memory_space<vmem>>, vector<8x32xf32>,
    } else {
    }
    return
  }
  func.func @transform_0(%arg0: i32, %arg1: i32) -> (i32, i32, i32, i32) {
    %c0_i32 = arith.constant 0 : i32
    %c0_i32_0 = arith.constant 0 : i32
    %c0_i32_1 = arith.constant 0 : i32
    return %c0_i32, %arg1, %arg0, %c0_i32_0 : i32, i32, i32, i32
  }
  func.func @transform_1(%arg0: i32, %arg1: i32) -> (i32, i32, i32) {
    %c0_i32 = arith.constant 0 : i32
    %c0_i32_0 = arith.constant 0 : i32
    %c0_i32_1 = arith.constant 0 : i32
    %c0_i32_2 = arith.constant 0 : i32
    return %c0_i32, %c0_i32_0, %c0_i32_1 : i32, i32, i32
  }
  func.func @transform_2(%arg0: i32, %arg1: i32) -> (i32, i32) {
    %c0_i32 = arith.constant 0 : i32
    %c0_i32_0 = arith.constant 0 : i32
    %c0_i32_1 = arith.constant 0 : i32
    return %c0_i32, %c0_i32_0 : i32, i32
  }
  func.func @transform_3(%arg0: i32, %arg1: i32) -> (i32, i32) {
    %c0_i32 = arith.constant 0 : i32
    %c0_i32_0 = arith.constant 0 : i32
    return %arg0, %c0_i32 : i32, i32
  }
  func.func @transform_4(%arg0: i32, %arg1: i32) -> (i32, i32, i32) {
    %c0_i32 = arith.constant 0 : i32
    %c0_i32_0 = arith.constant 0 : i32
    return %arg1, %arg0, %c0_i32 : i32, i32, i32
  }
  func.func @transform_5(%arg0: i32, %arg1: i32) -> (i32, i32) {
    %c0_i32 = arith.constant 0 : i32
    %c0_i32_0 = arith.constant 0 : i32
    return %arg0, %c0_i32 : i32, i32
  }
}

</mosaic_0001>

<llo_original>
// kernel: gru_model_forward.5
$region0: #{gru_model_forward.5}
  #allocation0 [shape = 'u32[]', space=smem, size = 0x4, offset = 0x4, fixed_abs, tag = 'smem constant byte address 0x4 - core index']
  #allocation1 [shape = 'u32[144,128]{1,0:T(1,128)}', space=vmem, size = 0x12000, scoped, tag = 'internal scratch']
  %s0 = inlined_call_operand.vmem [shape: f32[64,16], index: 0, kind: input, shape index: {}]
  %s1 = inlined_call_operand.vmem [shape: f32[3,16,32], index: 1, kind: input, shape index: {}]
  %s2 = inlined_call_operand.vmem [shape: f32[3,1,32], index: 2, kind: input, shape index: {}]
  %s3 = inlined_call_operand.vmem [shape: f32[3,64,32], index: 3, kind: output, shape index: {}]
  %s4 = sld [smem:[#allocation0]]
  $region22: #{gru_model_forward.5} parent=0
    _
  %s6 = ssub.s32 1, %s4
  %s7 = scalar_select 0, %s6, %s4
  // Predicated region
  $region2: #{gru_model_forward.5} parent=0 // pred_check
    _
  $region3: #{gru_model_forward.5} parent=0 // pred_check_branch
    %9 = sbr.rel (0) target = $region5
  $region4: #{gru_model_forward.5} parent=0 // pred_region
    _
  $region5: #{gru_model_forward.5} parent=0 // pred_fallthru
    _
  // Predicated region
  $region6: #{gru_model_forward.5} parent=0 // pred_check
    _
  $region7: #{gru_model_forward.5} parent=0 // pred_check_branch
    %11 = sbr.rel (0) target = $region9
  $region8: #{gru_model_forward.5} parent=0 // pred_region
    _
  $region9: #{gru_model_forward.5} parent=0 // pred_fallthru
    _
  // Predicated region
  $region10: #{gru_model_forward.5} parent=0 // pred_check
    _
  $region11: #{gru_model_forward.5} parent=0 // pred_check_branch
    %13 = sbr.rel (0) target = $region13
  $region12: #{gru_model_forward.5} parent=0 // pred_region
    _
  $region13: #{gru_model_forward.5} parent=0 // pred_fallthru
    _
  %v14 = vld [vmem:[%s0] sm:$0xff]
  %v15 = vld [vmem:[%s0 + $0x8] sm:$0xff]
  %v16 = vld [vmem:[%s0 + $0x10] sm:$0xff]
  %v17 = vld [vmem:[%s0 + $0x18] sm:$0xff]
  %v18 = vld [vmem:[%s0 + $0x20] sm:$0xff]
  %v19 = vld [vmem:[%s0 + $0x28] sm:$0xff]
  %v20 = vld [vmem:[%s0 + $0x30] sm:$0xff]
  %v21 = vld [vmem:[%s0 + $0x38] sm:$0xff]
  %v22 = vld [vmem:[%s1] sm:$0xff]
  %v23 = vld [vmem:[%s1 + $0x8] sm:$0xff]
  %v24 = vld [vmem:[%s2] sm:$0x1]
  %v26 = vlaneseq
  %v27 = vshrl.u32 %v26, 7
  %v28 = vsub.s32 0, %v27
  %v29 = vrot.slane %v24, %v28
  %vm31 = vcmask 130048
  %v33 = vsel %vm31, %v14, 0
  %v36 = vsel %vm31, %v15, 0
  %v39 = vsel %vm31, %v16, 0
  %v42 = vsel %vm31, %v17, 0
  %v45 = vsel %vm31, %v18, 0
  %v48 = vsel %vm31, %v19, 0
  %v51 = vsel %vm31, %v20, 0
  %v54 = vsel %vm31, %v21, 0
  %56 = vmatprep.subr.mxu0 0.0
  %57 = vmatpush1.msra.mxu0 0.0
  %58 = vmatprep.subr.mxu0 0.0
  %59 = vmatpush1.msra.mxu0 0.0
  %60 = vmatprep.subr.mxu0 0.0
  %61 = vmatpush1.msra.mxu0 0.0
  %62 = vmatprep.subr.mxu0 0.0
  %63 = vmatpush1.msra.mxu0 0.0
  %64 = vmatprep.subr.mxu0 0.0
  %65 = vmatpush1.msra.mxu0 0.0
  %66 = vmatprep.subr.mxu0 0.0
  %67 = vmatpush1.msra.mxu0 0.0
  %68 = vmatprep.subr.mxu0 0.0
  %69 = vmatpush1.msra.mxu0 0.0
  %70 = vmatprep.subr.mxu0 0.0
  %71 = vmatpush1.msra.mxu0 0.0
  %72 = vmatprep.subr.mxu0 0.0
  %73 = vmatpush1.msra.mxu0 0.0
  %74 = vmatprep.subr.mxu0 0.0
  %75 = vmatpush1.msra.mxu0 0.0
  %76 = vmatprep.subr.mxu0 0.0
  %77 = vmatpush1.msra.mxu0 0.0
  %78 = vmatprep.subr.mxu0 0.0
  %79 = vmatpush1.msra.mxu0 0.0
  %80 = vmatprep.subr.mxu0 0.0
  %81 = vmatpush1.msra.mxu0 0.0
  %82 = vmatprep.subr.mxu0 0.0
  %83 = vmatpush1.msra.mxu0 0.0
  %84 = vmatprep.subr.mxu0 0.0
  %85 = vmatpush1.msra.mxu0 %v23
  %86 = vmatprep.subr.mxu0 0.0
  %87 = vmatpush1.msra.mxu0 %v22
  %88 = vmatprep.subr.mxu0 0.0
  %89 = vmatpush2.msra.mxu0 0.0
  %90 = vmatprep.subr.mxu0 0.0
  %91 = vmatpush2.msra.mxu0 0.0
  %92 = vmatprep.subr.mxu0 0.0
  %93 = vmatpush2.msra.mxu0 0.0
  %94 = vmatprep.subr.mxu0 0.0
  %95 = vmatpush2.msra.mxu0 0.0
  %96 = vmatprep.subr.mxu0 0.0
  %97 = vmatpush2.msra.mxu0 0.0
  %98 = vmatprep.subr.mxu0 0.0
  %99 = vmatpush2.msra.mxu0 0.0
  %100 = vmatprep.subr.mxu0 0.0
  %101 = vmatpush2.msra.mxu0 0.0
  %102 = vmatprep.subr.mxu0 0.0
  %103 = vmatpush2.msra.mxu0 0.0
  %104 = vmatprep.subr.mxu0 0.0
  %105 = vmatpush2.msra.mxu0 0.0
  %106 = vmatprep.subr.mxu0 0.0
  %107 = vmatpush2.msra.mxu0 0.0
  %108 = vmatprep.subr.mxu0 0.0
  %109 = vmatpush2.msra.mxu0 0.0
  %110 = vmatprep.subr.mxu0 0.0
  %111 = vmatpush2.msra.mxu0 0.0
  %112 = vmatprep.subr.mxu0 0.0
  %113 = vmatpush2.msra.mxu0 0.0
  %114 = vmatprep.subr.mxu0 0.0
  %115 = vmatpush2.msra.mxu0 0.0
  %116 = vmatprep.subr.mxu0 0.0
  %117 = vmatpush2.msra.mxu0 0.0
  %118 = vmatprep.subr.mxu0 0.0
  %119 = vmatpush2.msra.mxu0 0.0
  %120 = vmatprep.mubr.f32.mxu0 0.0
  %121 = vmatmul.mubr.f32.gmra.mxu0 %v33
  %v122 = vpop.f32.mrf.mxu0
  %v123 = vadd.f32 %v29, %v122
  %v124 = vpop.f32.mrf.mxu0
  %125 = vmatprep.mubr.f32.mxu0 0.0
  %126 = vmatmul.mubr.f32.gmra.mxu0 %v36
  %v127 = vpop.f32.mrf.mxu0
  %v128 = vadd.f32 %v29, %v127
  %v129 = vpop.f32.mrf.mxu0
  %130 = vmatprep.mubr.f32.mxu0 0.0
  %131 = vmatmul.mubr.f32.gmra.mxu0 %v39
  %v132 = vpop.f32.mrf.mxu0
  %v133 = vadd.f32 %v29, %v132
  %v134 = vpop.f32.mrf.mxu0
  %135 = vmatprep.mubr.f32.mxu0 0.0
  %136 = vmatmul.mubr.f32.gmra.mxu0 %v42
  %v137 = vpop.f32.mrf.mxu0
  %v138 = vadd.f32 %v29, %v137
  %v139 = vpop.f32.mrf.mxu0
  %140 = vmatprep.mubr.f32.mxu0 0.0
  %141 = vmatmul.mubr.f32.gmra.mxu0 %v45
  %v142 = vpop.f32.mrf.mxu0
  %v143 = vadd.f32 %v29, %v142
  %v144 = vpop.f32.mrf.mxu0
  %145 = vmatprep.mubr.f32.mxu0 0.0
  %146 = vmatmul.mubr.f32.gmra.mxu0 %v48
  %v147 = vpop.f32.mrf.mxu0
  %v148 = vadd.f32 %v29, %v147
  %v149 = vpop.f32.mrf.mxu0
  %150 = vmatprep.mubr.f32.mxu0 0.0
  %151 = vmatmul.mubr.f32.gmra.mxu0 %v51
  %v152 = vpop.f32.mrf.mxu0
  %v153 = vadd.f32 %v29, %v152
  %v154 = vpop.f32.mrf.mxu0
  %155 = vmatprep.mubr.f32.mxu0 0.0
  %156 = vmatmul.mubr.f32.gmra.mxu0 %v54
  %v157 = vpop.f32.mrf.mxu0
  %v158 = vadd.f32 %v29, %v157
  %v159 = vpop.f32.mrf.mxu0
  %160 = vdwg.mxu0
  %vm161 = vcmask 261120
  %162 = vst.msk [vmem:[%s3] sm:$0xff] %vm161, %v123
  %163 = vst.msk [vmem:[%s3 + $0x8] sm:$0xff] %vm161, %v128
  %164 = vst.msk [vmem:[%s3 + $0x10] sm:$0xff] %vm161, %v133
  %165 = vst.msk [vmem:[%s3 + $0x18] sm:$0xff] %vm161, %v138
  %166 = vst.msk [vmem:[%s3 + $0x20] sm:$0xff] %vm161, %v143
  %167 = vst.msk [vmem:[%s3 + $0x28] sm:$0xff] %vm161, %v148
  %168 = vst.msk [vmem:[%s3 + $0x30] sm:$0xff] %vm161, %v153
  %169 = vst.msk [vmem:[%s3 + $0x38] sm:$0xff] %vm161, %v158
  %s170 = scalar_lea.vmem %s1, 16
  %v171 = vld [vmem:[%s170] sm:$0xff]
  %v172 = vld [vmem:[%s170 + $0x8] sm:$0xff]
  %s173 = scalar_lea.vmem %s2, 1
  %v174 = vld [vmem:[%s173] sm:$0x1]
  %v176 = vlaneseq
  %v177 = vshrl.u32 %v176, 7
  %v178 = vsub.s32 0, %v177
  %v179 = vrot.slane %v174, %v178
  %181 = vmatprep.subr.mxu0 0.0
  %182 = vmatpush1.msra.mxu0 0.0
  %183 = vmatprep.subr.mxu0 0.0
  %184 = vmatpush1.msra.mxu0 0.0
  %185 = vmatprep.subr.mxu0 0.0
  %186 = vmatpush1.msra.mxu0 0.0
  %187 = vmatprep.subr.mxu0 0.0
  %188 = vmatpush1.msra.mxu0 0.0
  %189 = vmatprep.subr.mxu0 0.0
  %190 = vmatpush1.msra.mxu0 0.0
  %191 = vmatprep.subr.mxu0 0.0
  %192 = vmatpush1.msra.mxu0 0.0
  %193 = vmatprep.subr.mxu0 0.0
  %194 = vmatpush1.msra.mxu0 0.0
  %195 = vmatprep.subr.mxu0 0.0
  %196 = vmatpush1.msra.mxu0 0.0
  %197 = vmatprep.subr.mxu0 0.0
  %198 = vmatpush1.msra.mxu0 0.0
  %199 = vmatprep.subr.mxu0 0.0
  %200 = vmatpush1.msra.mxu0 0.0
  %201 = vmatprep.subr.mxu0 0.0
  %202 = vmatpush1.msra.mxu0 0.0
  %203 = vmatprep.subr.mxu0 0.0
  %204 = vmatpush1.msra.mxu0 0.0
  %205 = vmatprep.subr.mxu0 0.0
  %206 = vmatpush1.msra.mxu0 0.0
  %207 = vmatprep.subr.mxu0 0.0
  %208 = vmatpush1.msra.mxu0 0.0
  %209 = vmatprep.subr.mxu0 0.0
  %210 = vmatpush1.msra.mxu0 %v172
  %211 = vmatprep.subr.mxu0 0.0
  %212 = vmatpush1.msra.mxu0 %v171
  %213 = vmatprep.subr.mxu0 0.0
  %214 = vmatpush2.msra.mxu0 0.0
  %215 = vmatprep.subr.mxu0 0.0
  %216 = vmatpush2.msra.mxu0 0.0
  %217 = vmatprep.subr.mxu0 0.0
  %218 = vmatpush2.msra.mxu0 0.0
  %219 = vmatprep.subr.mxu0 0.0
  %220 = vmatpush2.msra.mxu0 0.0
  %221 = vmatprep.subr.mxu0 0.0
  %222 = vmatpush2.msra.mxu0 0.0
  %223 = vmatprep.subr.mxu0 0.0
  %224 = vmatpush2.msra.mxu0 0.0
  %225 = vmatprep.subr.mxu0 0.0
  %226 = vmatpush2.msra.mxu0 0.0
  %227 = vmatprep.subr.mxu0 0.0
  %228 = vmatpush2.msra.mxu0 0.0
  %229 = vmatprep.subr.mxu0 0.0
  %230 = vmatpush2.msra.mxu0 0.0
  %231 = vmatprep.subr.mxu0 0.0
  %232 = vmatpush2.msra.mxu0 0.0
  %233 = vmatprep.subr.mxu0 0.0
  %234 = vmatpush2.msra.mxu0 0.0
  %235 = vmatprep.subr.mxu0 0.0
  %236 = vmatpush2.msra.mxu0 0.0
  %237 = vmatprep.subr.mxu0 0.0
  %238 = vmatpush2.msra.mxu0 0.0
  %239 = vmatprep.subr.mxu0 0.0
  %240 = vmatpush2.msra.mxu0 0.0
  %241 = vmatprep.subr.mxu0 0.0
  %242 = vmatpush2.msra.mxu0 0.0
  %243 = vmatprep.subr.mxu0 0.0
  %244 = vmatpush2.msra.mxu0 0.0
  %245 = vmatprep.mubr.f32.mxu0 0.0
  %246 = vmatmul.mubr.f32.gmra.mxu0 %v33
  %v247 = vpop.f32.mrf.mxu0
  %v248 = vadd.f32 %v179, %v247
  %v249 = vpop.f32.mrf.mxu0
  %250 = vmatprep.mubr.f32.mxu0 0.0
  %251 = vmatmul.mubr.f32.gmra.mxu0 %v36
  %v252 = vpop.f32.mrf.mxu0
  %v253 = vadd.f32 %v179, %v252
  %v254 = vpop.f32.mrf.mxu0
  %255 = vmatprep.mubr.f32.mxu0 0.0
  %256 = vmatmul.mubr.f32.gmra.mxu0 %v39
  %v257 = vpop.f32.mrf.mxu0
  %v258 = vadd.f32 %v179, %v257
  %v259 = vpop.f32.mrf.mxu0
  %260 = vmatprep.mubr.f32.mxu0 0.0
  %261 = vmatmul.mubr.f32.gmra.mxu0 %v42
  %v262 = vpop.f32.mrf.mxu0
  %v263 = vadd.f32 %v179, %v262
  %v264 = vpop.f32.mrf.mxu0
  %265 = vmatprep.mubr.f32.mxu0 0.0
  %266 = vmatmul.mubr.f32.gmra.mxu0 %v45
  %v267 = vpop.f32.mrf.mxu0
  %v268 = vadd.f32 %v179, %v267
  %v269 = vpop.f32.mrf.mxu0
  %270 = vmatprep.mubr.f32.mxu0 0.0
  %271 = vmatmul.mubr.f32.gmra.mxu0 %v48
  %v272 = vpop.f32.mrf.mxu0
  %v273 = vadd.f32 %v179, %v272
  %v274 = vpop.f32.mrf.mxu0
  %275 = vmatprep.mubr.f32.mxu0 0.0
  %276 = vmatmul.mubr.f32.gmra.mxu0 %v51
  %v277 = vpop.f32.mrf.mxu0
  %v278 = vadd.f32 %v179, %v277
  %v279 = vpop.f32.mrf.mxu0
  %280 = vmatprep.mubr.f32.mxu0 0.0
  %281 = vmatmul.mubr.f32.gmra.mxu0 %v54
  %v282 = vpop.f32.mrf.mxu0
  %v283 = vadd.f32 %v179, %v282
  %v284 = vpop.f32.mrf.mxu0
  %285 = vdwg.mxu0
  %s286 = scalar_lea.vmem %s3, 64
  %287 = vst.msk [vmem:[%s286] sm:$0xff] %vm161, %v248
  %288 = vst.msk [vmem:[%s286 + $0x8] sm:$0xff] %vm161, %v253
  %289 = vst.msk [vmem:[%s286 + $0x10] sm:$0xff] %vm161, %v258
  %290 = vst.msk [vmem:[%s286 + $0x18] sm:$0xff] %vm161, %v263
  %291 = vst.msk [vmem:[%s286 + $0x20] sm:$0xff] %vm161, %v268
  %292 = vst.msk [vmem:[%s286 + $0x28] sm:$0xff] %vm161, %v273
  %293 = vst.msk [vmem:[%s286 + $0x30] sm:$0xff] %vm161, %v278
  %294 = vst.msk [vmem:[%s286 + $0x38] sm:$0xff] %vm161, %v283
  %s295 = scalar_lea.vmem %s1, 32
  %v296 = vld [vmem:[%s295] sm:$0xff]
  %v297 = vld [vmem:[%s295 + $0x8] sm:$0xff]
  %s298 = scalar_lea.vmem %s2, 2
  %v299 = vld [vmem:[%s298] sm:$0x1]
  %v301 = vlaneseq
  %v302 = vshrl.u32 %v301, 7
  %v303 = vsub.s32 0, %v302
  %v304 = vrot.slane %v299, %v303
  %306 = vmatprep.subr.mxu0 0.0
  %307 = vmatpush1.msra.mxu0 0.0
  %308 = vmatprep.subr.mxu0 0.0
  %309 = vmatpush1.msra.mxu0 0.0
  %310 = vmatprep.subr.mxu0 0.0
  %311 = vmatpush1.msra.mxu0 0.0
  %312 = vmatprep.subr.mxu0 0.0
  %313 = vmatpush1.msra.mxu0 0.0
  %314 = vmatprep.subr.mxu0 0.0
  %315 = vmatpush1.msra.mxu0 0.0
  %316 = vmatprep.subr.mxu0 0.0
  %317 = vmatpush1.msra.mxu0 0.0
  %318 = vmatprep.subr.mxu0 0.0
  %319 = vmatpush1.msra.mxu0 0.0
  %320 = vmatprep.subr.mxu0 0.0
  %321 = vmatpush1.msra.mxu0 0.0
  %322 = vmatprep.subr.mxu0 0.0
  %323 = vmatpush1.msra.mxu0 0.0
  %324 = vmatprep.subr.mxu0 0.0
  %325 = vmatpush1.msra.mxu0 0.0
  %326 = vmatprep.subr.mxu0 0.0
  %327 = vmatpush1.msra.mxu0 0.0
  %328 = vmatprep.subr.mxu0 0.0
  %329 = vmatpush1.msra.mxu0 0.0
  %330 = vmatprep.subr.mxu0 0.0
  %331 = vmatpush1.msra.mxu0 0.0
  %332 = vmatprep.subr.mxu0 0.0
  %333 = vmatpush1.msra.mxu0 0.0
  %334 = vmatprep.subr.mxu0 0.0
  %335 = vmatpush1.msra.mxu0 %v297
  %336 = vmatprep.subr.mxu0 0.0
  %337 = vmatpush1.msra.mxu0 %v296
  %338 = vmatprep.subr.mxu0 0.0
  %339 = vmatpush2.msra.mxu0 0.0
  %340 = vmatprep.subr.mxu0 0.0
  %341 = vmatpush2.msra.mxu0 0.0
  %342 = vmatprep.subr.mxu0 0.0
  %343 = vmatpush2.msra.mxu0 0.0
  %344 = vmatprep.subr.mxu0 0.0
  %345 = vmatpush2.msra.mxu0 0.0
  %346 = vmatprep.subr.mxu0 0.0
  %347 = vmatpush2.msra.mxu0 0.0
  %348 = vmatprep.subr.mxu0 0.0
  %349 = vmatpush2.msra.mxu0 0.0
  %350 = vmatprep.subr.mxu0 0.0
  %351 = vmatpush2.msra.mxu0 0.0
  %352 = vmatprep.subr.mxu0 0.0
  %353 = vmatpush2.msra.mxu0 0.0
  %354 = vmatprep.subr.mxu0 0.0
  %355 = vmatpush2.msra.mxu0 0.0
  %356 = vmatprep.subr.mxu0 0.0
  %357 = vmatpush2.msra.mxu0 0.0
  %358 = vmatprep.subr.mxu0 0.0
  %359 = vmatpush2.msra.mxu0 0.0
  %360 = vmatprep.subr.mxu0 0.0
  %361 = vmatpush2.msra.mxu0 0.0
  %362 = vmatprep.subr.mxu0 0.0
  %363 = vmatpush2.msra.mxu0 0.0
  %364 = vmatprep.subr.mxu0 0.0
  %365 = vmatpush2.msra.mxu0 0.0
  %366 = vmatprep.subr.mxu0 0.0
  %367 = vmatpush2.msra.mxu0 0.0
  %368 = vmatprep.subr.mxu0 0.0
  %369 = vmatpush2.msra.mxu0 0.0
  %370 = vmatprep.mubr.f32.mxu0 0.0
  %371 = vmatmul.mubr.f32.gmra.mxu0 %v33
  %v372 = vpop.f32.mrf.mxu0
  %v373 = vadd.f32 %v304, %v372
  %v374 = vpop.f32.mrf.mxu0
  %375 = vmatprep.mubr.f32.mxu0 0.0
  %376 = vmatmul.mubr.f32.gmra.mxu0 %v36
  %v377 = vpop.f32.mrf.mxu0
  %v378 = vadd.f32 %v304, %v377
  %v379 = vpop.f32.mrf.mxu0
  %380 = vmatprep.mubr.f32.mxu0 0.0
  %381 = vmatmul.mubr.f32.gmra.mxu0 %v39
  %v382 = vpop.f32.mrf.mxu0
  %v383 = vadd.f32 %v304, %v382
  %v384 = vpop.f32.mrf.mxu0
  %385 = vmatprep.mubr.f32.mxu0 0.0
  %386 = vmatmul.mubr.f32.gmra.mxu0 %v42
  %v387 = vpop.f32.mrf.mxu0
  %v388 = vadd.f32 %v304, %v387
  %v389 = vpop.f32.mrf.mxu0
  %390 = vmatprep.mubr.f32.mxu0 0.0
  %391 = vmatmul.mubr.f32.gmra.mxu0 %v45
  %v392 = vpop.f32.mrf.mxu0
  %v393 = vadd.f32 %v304, %v392
  %v394 = vpop.f32.mrf.mxu0
  %395 = vmatprep.mubr.f32.mxu0 0.0
  %396 = vmatmul.mubr.f32.gmra.mxu0 %v48
  %v397 = vpop.f32.mrf.mxu0
  %v398 = vadd.f32 %v304, %v397
  %v399 = vpop.f32.mrf.mxu0
  %400 = vmatprep.mubr.f32.mxu0 0.0
  %401 = vmatmul.mubr.f32.gmra.mxu0 %v51
  %v402 = vpop.f32.mrf.mxu0
  %v403 = vadd.f32 %v304, %v402
  %v404 = vpop.f32.mrf.mxu0
  %405 = vmatprep.mubr.f32.mxu0 0.0
  %406 = vmatmul.mubr.f32.gmra.mxu0 %v54
  %v407 = vpop.f32.mrf.mxu0
  %v408 = vadd.f32 %v304, %v407
  %v409 = vpop.f32.mrf.mxu0
  %410 = vdwg.mxu0
  %s411 = scalar_lea.vmem %s3, 128
  %412 = vst.msk [vmem:[%s411] sm:$0xff] %vm161, %v373
  %413 = vst.msk [vmem:[%s411 + $0x8] sm:$0xff] %vm161, %v378
  %414 = vst.msk [vmem:[%s411 + $0x10] sm:$0xff] %vm161, %v383
  %415 = vst.msk [vmem:[%s411 + $0x18] sm:$0xff] %vm161, %v388
  %416 = vst.msk [vmem:[%s411 + $0x20] sm:$0xff] %vm161, %v393
  %417 = vst.msk [vmem:[%s411 + $0x28] sm:$0xff] %vm161, %v398
  %418 = vst.msk [vmem:[%s411 + $0x30] sm:$0xff] %vm161, %v403
  %419 = vst.msk [vmem:[%s411 + $0x38] sm:$0xff] %vm161, %v408
  // Predicated region
  $region14: #{gru_model_forward.5} parent=0 // pred_check
    _
  $region15: #{gru_model_forward.5} parent=0 // pred_check_branch
    %421 = sbr.rel (0) target = $region17
  $region16: #{gru_model_forward.5} parent=0 // pred_region
    _
  $region17: #{gru_model_forward.5} parent=0 // pred_fallthru
    _
  // Predicated region
  $region18: #{gru_model_forward.5} parent=0 // pred_check
    _
  $region19: #{gru_model_forward.5} parent=0 // pred_check_branch
    %423 = sbr.rel (0) target = $region21
  $region20: #{gru_model_forward.5} parent=0 // pred_region
    _
  $region21: #{gru_model_forward.5} parent=0 // pred_fallthru
    _

// kernel: gru_model_forward.9
$region0: #{gru_model_forward.9}
  #allocation0 [shape = 'u32[]', space=smem, size = 0x4, offset = 0x4, fixed_abs, tag = 'smem constant byte address 0x4 - core index']
  #allocation1 [shape = 'u32[144,128]{1,0:T(1,128)}', space=vmem, size = 0x12000, scoped, tag = 'internal scratch']
  %s0 = inlined_call_operand.vmem [shape: f32[8,8,32], index: 0, kind: input, shape index: {}]
  %s1 = inlined_call_operand.vmem [shape: f32[32,128], index: 1, kind: input, shape index: {}]
  %s2 = inlined_call_operand.vmem [shape: f32[1,128], index: 2, kind: input, shape index: {}]
  %s3 = inlined_call_operand.vmem [shape: f32[8,128], index: 3, kind: output, shape index: {}]
  %s4 = sld [smem:[#allocation0]]
  $region22: #{gru_model_forward.9} parent=0
    _
  %s6 = ssub.s32 1, %s4
  %s7 = scalar_select 0, %s6, %s4
  // Predicated region
  $region2: #{gru_model_forward.9} parent=0 // pred_check
    _
  $region3: #{gru_model_forward.9} parent=0 // pred_check_branch
    %9 = sbr.rel (0) target = $region5
  $region4: #{gru_model_forward.9} parent=0 // pred_region
    _
  $region5: #{gru_model_forward.9} parent=0 // pred_fallthru
    _
  // Predicated region
  $region6: #{gru_model_forward.9} parent=0 // pred_check
    _
  $region7: #{gru_model_forward.9} parent=0 // pred_check_branch
    %11 = sbr.rel (0) target = $region9
  $region8: #{gru_model_forward.9} parent=0 // pred_region
    _
  $region9: #{gru_model_forward.9} parent=0 // pred_fallthru
    _
  // Predicated region
  $region10: #{gru_model_forward.9} parent=0 // pred_check
    _
  $region11: #{gru_model_forward.9} parent=0 // pred_check_branch
    %13 = sbr.rel (0) target = $region13
  $region12: #{gru_model_forward.9} parent=0 // pred_region
    _
  $region13: #{gru_model_forward.9} parent=0 // pred_fallthru
    _
  %v14 = vld [vmem:[%s0] sm:$0xff]
  %v15 = vld [vmem:[%s0 + $0x8] sm:$0xff]
  %v16 = vld [vmem:[%s0 + $0x10] sm:$0xff]
  %v17 = vld [vmem:[%s0 + $0x18] sm:$0xff]
  %v18 = vld [vmem:[%s0 + $0x20] sm:$0xff]
  %v19 = vld [vmem:[%s0 + $0x28] sm:$0xff]
  %v20 = vld [vmem:[%s0 + $0x30] sm:$0xff]
  %v21 = vld [vmem:[%s0 + $0x38] sm:$0xff]
  %v22 = vld [vmem:[%s1] sm:$0xff]
  %v23 = vld [vmem:[%s1 + $0x8] sm:$0xff]
  %v24 = vld [vmem:[%s1 + $0x10] sm:$0xff]
  %v25 = vld [vmem:[%s1 + $0x18] sm:$0xff]
  %v26 = vld [vmem:[%s2] sm:$0x1]
  %v28 = vlaneseq
  %v29 = vshrl.u32 %v28, 7
  %v30 = vsub.s32 0, %v29
  %v31 = vrot.slane %v26, %v30
  %vm33 = vcmask 261120
  %v35 = vsel %vm33, %v14, 0
  %v38 = vsel %vm33, %v15, 0
  %v41 = vsel %vm33, %v16, 0
  %v44 = vsel %vm33, %v17, 0
  %v47 = vsel %vm33, %v18, 0
  %v50 = vsel %vm33, %v19, 0
  %v53 = vsel %vm33, %v20, 0
  %v56 = vsel %vm33, %v21, 0
  %58 = vmatprep.subr.mxu0 0.0
  %59 = vmatpush1.msra.mxu0 0.0
  %60 = vmatprep.subr.mxu0 0.0
  %61 = vmatpush1.msra.mxu0 0.0
  %62 = vmatprep.subr.mxu0 0.0
  %63 = vmatpush1.msra.mxu0 0.0
  %64 = vmatprep.subr.mxu0 0.0
  %65 = vmatpush1.msra.mxu0 0.0
  %66 = vmatprep.subr.mxu0 0.0
  %67 = vmatpush1.msra.mxu0 0.0
  %68 = vmatprep.subr.mxu0 0.0
  %69 = vmatpush1.msra.mxu0 0.0
  %70 = vmatprep.subr.mxu0 0.0
  %71 = vmatpush1.msra.mxu0 0.0
  %72 = vmatprep.subr.mxu0 0.0
  %73 = vmatpush1.msra.mxu0 0.0
  %74 = vmatprep.subr.mxu0 0.0
  %75 = vmatpush1.msra.mxu0 0.0
  %76 = vmatprep.subr.mxu0 0.0
  %77 = vmatpush1.msra.mxu0 0.0
  %78 = vmatprep.subr.mxu0 0.0
  %79 = vmatpush1.msra.mxu0 0.0
  %80 = vmatprep.subr.mxu0 0.0
  %81 = vmatpush1.msra.mxu0 0.0
  %82 = vmatprep.subr.mxu0 0.0
  %83 = vmatpush1.msra.mxu0 %v25
  %84 = vmatprep.subr.mxu0 0.0
  %85 = vmatpush1.msra.mxu0 %v24
  %86 = vmatprep.subr.mxu0 0.0
  %87 = vmatpush1.msra.mxu0 %v23
  %88 = vmatprep.subr.mxu0 0.0
  %89 = vmatpush1.msra.mxu0 %v22
  %90 = vmatprep.subr.mxu0 0.0
  %91 = vmatpush2.msra.mxu0 0.0
  %92 = vmatprep.subr.mxu0 0.0
  %93 = vmatpush2.msra.mxu0 0.0
  %94 = vmatprep.subr.mxu0 0.0
  %95 = vmatpush2.msra.mxu0 0.0
  %96 = vmatprep.subr.mxu0 0.0
  %97 = vmatpush2.msra.mxu0 0.0
  %98 = vmatprep.subr.mxu0 0.0
  %99 = vmatpush2.msra.mxu0 0.0
  %100 = vmatprep.subr.mxu0 0.0
  %101 = vmatpush2.msra.mxu0 0.0
  %102 = vmatprep.subr.mxu0 0.0
  %103 = vmatpush2.msra.mxu0 0.0
  %104 = vmatprep.subr.mxu0 0.0
  %105 = vmatpush2.msra.mxu0 0.0
  %106 = vmatprep.subr.mxu0 0.0
  %107 = vmatpush2.msra.mxu0 0.0
  %108 = vmatprep.subr.mxu0 0.0
  %109 = vmatpush2.msra.mxu0 0.0
  %110 = vmatprep.subr.mxu0 0.0
  %111 = vmatpush2.msra.mxu0 0.0
  %112 = vmatprep.subr.mxu0 0.0
  %113 = vmatpush2.msra.mxu0 0.0
  %114 = vmatprep.subr.mxu0 0.0
  %115 = vmatpush2.msra.mxu0 0.0
  %116 = vmatprep.subr.mxu0 0.0
  %117 = vmatpush2.msra.mxu0 0.0
  %118 = vmatprep.subr.mxu0 0.0
  %119 = vmatpush2.msra.mxu0 0.0
  %120 = vmatprep.subr.mxu0 0.0
  %121 = vmatpush2.msra.mxu0 0.0
  %122 = vmatprep.mubr.f32.mxu0 0.0
  %123 = vmatmul.mubr.f32.gmra.mxu0 %v35
  %v124 = vpop.f32.mrf.mxu0
  %v125 = vadd.f32 %v31, %v124
  %v126 = vpop.f32.mrf.mxu0
  %127 = vmatprep.mubr.f32.mxu0 0.0
  %128 = vmatmul.mubr.f32.gmra.mxu0 %v38
  %v129 = vpop.f32.mrf.mxu0
  %v130 = vadd.f32 %v31, %v129
  %v131 = vpop.f32.mrf.mxu0
  %132 = vmatprep.mubr.f32.mxu0 0.0
  %133 = vmatmul.mubr.f32.gmra.mxu0 %v41
  %v134 = vpop.f32.mrf.mxu0
  %v135 = vadd.f32 %v31, %v134
  %v136 = vpop.f32.mrf.mxu0
  %137 = vmatprep.mubr.f32.mxu0 0.0
  %138 = vmatmul.mubr.f32.gmra.mxu0 %v44
  %v139 = vpop.f32.mrf.mxu0
  %v140 = vadd.f32 %v31, %v139
  %v141 = vpop.f32.mrf.mxu0
  %142 = vmatprep.mubr.f32.mxu0 0.0
  %143 = vmatmul.mubr.f32.gmra.mxu0 %v47
  %v144 = vpop.f32.mrf.mxu0
  %v145 = vadd.f32 %v31, %v144
  %v146 = vpop.f32.mrf.mxu0
  %147 = vmatprep.mubr.f32.mxu0 0.0
  %148 = vmatmul.mubr.f32.gmra.mxu0 %v50
  %v149 = vpop.f32.mrf.mxu0
  %v150 = vadd.f32 %v31, %v149
  %v151 = vpop.f32.mrf.mxu0
  %152 = vmatprep.mubr.f32.mxu0 0.0
  %153 = vmatmul.mubr.f32.gmra.mxu0 %v53
  %v154 = vpop.f32.mrf.mxu0
  %v155 = vadd.f32 %v31, %v154
  %v156 = vpop.f32.mrf.mxu0
  %157 = vmatprep.mubr.f32.mxu0 0.0
  %158 = vmatmul.mubr.f32.gmra.mxu0 %v56
  %v159 = vpop.f32.mrf.mxu0
  %v160 = vadd.f32 %v31, %v159
  %v161 = vpop.f32.mrf.mxu0
  %162 = vdwg.mxu0
  %v163 = vmax.f32 %v125, %v145
  %v164 = vmax.f32 %v130, %v150
  %v165 = vmax.f32 %v135, %v155
  %v166 = vmax.f32 %v140, %v160
  %v167 = vmax.f32 %v163, %v164
  %v168 = vmax.f32 %v165, %v166
  %v169 = vmax.f32 %v167, %v168
  %v170 = vsub.f32 %v125, %v169
  %v171 = vsub.f32 %v130, %v169
  %v172 = vsub.f32 %v135, %v169
  %v173 = vsub.f32 %v140, %v169
  %v174 = vsub.f32 %v145, %v169
  %v175 = vsub.f32 %v150, %v169
  %v176 = vsub.f32 %v155, %v169
  %v177 = vsub.f32 %v160, %v169
  %v178 = vmul.f32 %v170, 1.442695
  %v179 = vpow.pop %v178
  %v180 = vmul.f32 %v171, 1.442695
  %v181 = vpow.pop %v180
  %v182 = vmul.f32 %v172, 1.442695
  %v183 = vpow.pop %v182
  %v184 = vmul.f32 %v173, 1.442695
  %v185 = vpow.pop %v184
  %v186 = vmul.f32 %v174, 1.442695
  %v187 = vpow.pop %v186
  %v188 = vmul.f32 %v175, 1.442695
  %v189 = vpow.pop %v188
  %v190 = vmul.f32 %v176, 1.442695
  %v191 = vpow.pop %v190
  %v192 = vmul.f32 %v177, 1.442695
  %v193 = vpow.pop %v192
  %v194 = vadd.f32 %v179, %v181
  %v195 = vadd.f32 %v194, %v183
  %v196 = vadd.f32 %v195, %v185
  %v197 = vadd.f32 %v196, %v187
  %v198 = vadd.f32 %v197, %v189
  %v199 = vadd.f32 %v198, %v191
  %v200 = vadd.f32 %v199, %v193
  %v201 = vrcp.pop %v200
  %v202 = vmul.f32 %v193, %v201
  %203 = vst [vmem:[%s3] sm:$0xff] %v202
  // Predicated region
  $region14: #{gru_model_forward.9} parent=0 // pred_check
    _
  $region15: #{gru_model_forward.9} parent=0 // pred_check_branch
    %205 = sbr.rel (0) target = $region17
  $region16: #{gru_model_forward.9} parent=0 // pred_region
    _
  $region17: #{gru_model_forward.9} parent=0 // pred_fallthru
    _
  // Predicated region
  $region18: #{gru_model_forward.9} parent=0 // pred_check
    _
  $region19: #{gru_model_forward.9} parent=0 // pred_check_branch
    %207 = sbr.rel (0) target = $region21
  $region20: #{gru_model_forward.9} parent=0 // pred_region
    _
  $region21: #{gru_model_forward.9} parent=0 // pred_fallthru
    _

// kernel: gru_model_forward.7
$region0: #{gru_model_forward.7}
  #allocation0 [shape = 'u32[]', space=smem, size = 0x4, offset = 0x4, fixed_abs, tag = 'smem constant byte address 0x4 - core index']
  #allocation1 [shape = 'u32[144,128]{1,0:T(1,128)}', space=vmem, size = 0x12000, scoped, tag = 'internal scratch']
  %s0 = inlined_call_operand.vmem [shape: f32[64,32], index: 0, kind: input, shape index: {}]
  %s1 = inlined_call_operand.vmem [shape: f32[3,32,32], index: 1, kind: input, shape index: {}]
  %s2 = inlined_call_operand.vmem [shape: f32[3,1,32], index: 2, kind: input, shape index: {}]
  %s3 = inlined_call_operand.vmem [shape: f32[3,64,32], index: 3, kind: output, shape index: {}]
  %s4 = sld [smem:[#allocation0]]
  $region22: #{gru_model_forward.7} parent=0
    _
  %s6 = ssub.s32 1, %s4
  %s7 = scalar_select 0, %s6, %s4
  // Predicated region
  $region2: #{gru_model_forward.7} parent=0 // pred_check
    _
  $region3: #{gru_model_forward.7} parent=0 // pred_check_branch
    %9 = sbr.rel (0) target = $region5
  $region4: #{gru_model_forward.7} parent=0 // pred_region
    _
  $region5: #{gru_model_forward.7} parent=0 // pred_fallthru
    _
  // Predicated region
  $region6: #{gru_model_forward.7} parent=0 // pred_check
    _
  $region7: #{gru_model_forward.7} parent=0 // pred_check_branch
    %11 = sbr.rel (0) target = $region9
  $region8: #{gru_model_forward.7} parent=0 // pred_region
    _
  $region9: #{gru_model_forward.7} parent=0 // pred_fallthru
    _
  // Predicated region
  $region10: #{gru_model_forward.7} parent=0 // pred_check
    _
  $region11: #{gru_model_forward.7} parent=0 // pred_check_branch
    %13 = sbr.rel (0) target = $region13
  $region12: #{gru_model_forward.7} parent=0 // pred_region
    _
  $region13: #{gru_model_forward.7} parent=0 // pred_fallthru
    _
  %v14 = vld [vmem:[%s0] sm:$0xff]
  %v15 = vld [vmem:[%s0 + $0x8] sm:$0xff]
  %v16 = vld [vmem:[%s0 + $0x10] sm:$0xff]
  %v17 = vld [vmem:[%s0 + $0x18] sm:$0xff]
  %v18 = vld [vmem:[%s0 + $0x20] sm:$0xff]
  %v19 = vld [vmem:[%s0 + $0x28] sm:$0xff]
  %v20 = vld [vmem:[%s0 + $0x30] sm:$0xff]
  %v21 = vld [vmem:[%s0 + $0x38] sm:$0xff]
  %v22 = vld [vmem:[%s1] sm:$0xff]
  %v23 = vld [vmem:[%s1 + $0x8] sm:$0xff]
  %v24 = vld [vmem:[%s1 + $0x10] sm:$0xff]
  %v25 = vld [vmem:[%s1 + $0x18] sm:$0xff]
  %v26 = vld [vmem:[%s2] sm:$0x1]
  %v28 = vlaneseq
  %v29 = vshrl.u32 %v28, 7
  %v30 = vsub.s32 0, %v29
  %v31 = vrot.slane %v26, %v30
  %vm33 = vcmask 261120
  %v35 = vsel %vm33, %v14, 0
  %v38 = vsel %vm33, %v15, 0
  %v41 = vsel %vm33, %v16, 0
  %v44 = vsel %vm33, %v17, 0
  %v47 = vsel %vm33, %v18, 0
  %v50 = vsel %vm33, %v19, 0
  %v53 = vsel %vm33, %v20, 0
  %v56 = vsel %vm33, %v21, 0
  %58 = vmatprep.subr.mxu0 0.0
  %59 = vmatpush1.msra.mxu0 0.0
  %60 = vmatprep.subr.mxu0 0.0
  %61 = vmatpush1.msra.mxu0 0.0
  %62 = vmatprep.subr.mxu0 0.0
  %63 = vmatpush1.msra.mxu0 0.0
  %64 = vmatprep.subr.mxu0 0.0
  %65 = vmatpush1.msra.mxu0 0.0
  %66 = vmatprep.subr.mxu0 0.0
  %67 = vmatpush1.msra.mxu0 0.0
  %68 = vmatprep.subr.mxu0 0.0
  %69 = vmatpush1.msra.mxu0 0.0
  %70 = vmatprep.subr.mxu0 0.0
  %71 = vmatpush1.msra.mxu0 0.0
  %72 = vmatprep.subr.mxu0 0.0
  %73 = vmatpush1.msra.mxu0 0.0
  %74 = vmatprep.subr.mxu0 0.0
  %75 = vmatpush1.msra.mxu0 0.0
  %76 = vmatprep.subr.mxu0 0.0
  %77 = vmatpush1.msra.mxu0 0.0
  %78 = vmatprep.subr.mxu0 0.0
  %79 = vmatpush1.msra.mxu0 0.0
  %80 = vmatprep.subr.mxu0 0.0
  %81 = vmatpush1.msra.mxu0 0.0
  %82 = vmatprep.subr.mxu0 0.0
  %83 = vmatpush1.msra.mxu0 %v25
  %84 = vmatprep.subr.mxu0 0.0
  %85 = vmatpush1.msra.mxu0 %v24
  %86 = vmatprep.subr.mxu0 0.0
  %87 = vmatpush1.msra.mxu0 %v23
  %88 = vmatprep.subr.mxu0 0.0
  %89 = vmatpush1.msra.mxu0 %v22
  %90 = vmatprep.subr.mxu0 0.0
  %91 = vmatpush2.msra.mxu0 0.0
  %92 = vmatprep.subr.mxu0 0.0
  %93 = vmatpush2.msra.mxu0 0.0
  %94 = vmatprep.subr.mxu0 0.0
  %95 = vmatpush2.msra.mxu0 0.0
  %96 = vmatprep.subr.mxu0 0.0
  %97 = vmatpush2.msra.mxu0 0.0
  %98 = vmatprep.subr.mxu0 0.0
  %99 = vmatpush2.msra.mxu0 0.0
  %100 = vmatprep.subr.mxu0 0.0
  %101 = vmatpush2.msra.mxu0 0.0
  %102 = vmatprep.subr.mxu0 0.0
  %103 = vmatpush2.msra.mxu0 0.0
  %104 = vmatprep.subr.mxu0 0.0
  %105 = vmatpush2.msra.mxu0 0.0
  %106 = vmatprep.subr.mxu0 0.0
  %107 = vmatpush2.msra.mxu0 0.0
  %108 = vmatprep.subr.mxu0 0.0
  %109 = vmatpush2.msra.mxu0 0.0
  %110 = vmatprep.subr.mxu0 0.0
  %111 = vmatpush2.msra.mxu0 0.0
  %112 = vmatprep.subr.mxu0 0.0
  %113 = vmatpush2.msra.mxu0 0.0
  %114 = vmatprep.subr.mxu0 0.0
  %115 = vmatpush2.msra.mxu0 0.0
  %116 = vmatprep.subr.mxu0 0.0
  %117 = vmatpush2.msra.mxu0 0.0
  %118 = vmatprep.subr.mxu0 0.0
  %119 = vmatpush2.msra.mxu0 0.0
  %120 = vmatprep.subr.mxu0 0.0
  %121 = vmatpush2.msra.mxu0 0.0
  %122 = vmatprep.mubr.f32.mxu0 0.0
  %123 = vmatmul.mubr.f32.gmra.mxu0 %v35
  %v124 = vpop.f32.mrf.mxu0
  %v125 = vadd.f32 %v31, %v124
  %v126 = vpop.f32.mrf.mxu0
  %127 = vmatprep.mubr.f32.mxu0 0.0
  %128 = vmatmul.mubr.f32.gmra.mxu0 %v38
  %v129 = vpop.f32.mrf.mxu0
  %v130 = vadd.f32 %v31, %v129
  %v131 = vpop.f32.mrf.mxu0
  %132 = vmatprep.mubr.f32.mxu0 0.0
  %133 = vmatmul.mubr.f32.gmra.mxu0 %v41
  %v134 = vpop.f32.mrf.mxu0
  %v135 = vadd.f32 %v31, %v134
  %v136 = vpop.f32.mrf.mxu0
  %137 = vmatprep.mubr.f32.mxu0 0.0
  %138 = vmatmul.mubr.f32.gmra.mxu0 %v44
  %v139 = vpop.f32.mrf.mxu0
  %v140 = vadd.f32 %v31, %v139
  %v141 = vpop.f32.mrf.mxu0
  %142 = vmatprep.mubr.f32.mxu0 0.0
  %143 = vmatmul.mubr.f32.gmra.mxu0 %v47
  %v144 = vpop.f32.mrf.mxu0
  %v145 = vadd.f32 %v31, %v144
  %v146 = vpop.f32.mrf.mxu0
  %147 = vmatprep.mubr.f32.mxu0 0.0
  %148 = vmatmul.mubr.f32.gmra.mxu0 %v50
  %v149 = vpop.f32.mrf.mxu0
  %v150 = vadd.f32 %v31, %v149
  %v151 = vpop.f32.mrf.mxu0
  %152 = vmatprep.mubr.f32.mxu0 0.0
  %153 = vmatmul.mubr.f32.gmra.mxu0 %v53
  %v154 = vpop.f32.mrf.mxu0
  %v155 = vadd.f32 %v31, %v154
  %v156 = vpop.f32.mrf.mxu0
  %157 = vmatprep.mubr.f32.mxu0 0.0
  %158 = vmatmul.mubr.f32.gmra.mxu0 %v56
  %v159 = vpop.f32.mrf.mxu0
  %v160 = vadd.f32 %v31, %v159
  %v161 = vpop.f32.mrf.mxu0
  %162 = vdwg.mxu0
  %163 = vst.msk [vmem:[%s3] sm:$0xff] %vm33, %v125
  %164 = vst.msk [vmem:[%s3 + $0x8] sm:$0xff] %vm33, %v130
  %165 = vst.msk [vmem:[%s3 + $0x10] sm:$0xff] %vm33, %v135
  %166 = vst.msk [vmem:[%s3 + $0x18] sm:$0xff] %vm33, %v140
  %167 = vst.msk [vmem:[%s3 + $0x20] sm:$0xff] %vm33, %v145
  %168 = vst.msk [vmem:[%s3 + $0x28] sm:$0xff] %vm33, %v150
  %169 = vst.msk [vmem:[%s3 + $0x30] sm:$0xff] %vm33, %v155
  %170 = vst.msk [vmem:[%s3 + $0x38] sm:$0xff] %vm33, %v160
  %s171 = scalar_lea.vmem %s1, 32
  %v172 = vld [vmem:[%s171] sm:$0xff]
  %v173 = vld [vmem:[%s171 + $0x8] sm:$0xff]
  %v174 = vld [vmem:[%s171 + $0x10] sm:$0xff]
  %v175 = vld [vmem:[%s171 + $0x18] sm:$0xff]
  %s176 = scalar_lea.vmem %s2, 1
  %v177 = vld [vmem:[%s176] sm:$0x1]
  %v179 = vlaneseq
  %v180 = vshrl.u32 %v179, 7
  %v181 = vsub.s32 0, %v180
  %v182 = vrot.slane %v177, %v181
  %184 = vmatprep.subr.mxu0 0.0
  %185 = vmatpush1.msra.mxu0 0.0
  %186 = vmatprep.subr.mxu0 0.0
  %187 = vmatpush1.msra.mxu0 0.0
  %188 = vmatprep.subr.mxu0 0.0
  %189 = vmatpush1.msra.mxu0 0.0
  %190 = vmatprep.subr.mxu0 0.0
  %191 = vmatpush1.msra.mxu0 0.0
  %192 = vmatprep.subr.mxu0 0.0
  %193 = vmatpush1.msra.mxu0 0.0
  %194 = vmatprep.subr.mxu0 0.0
  %195 = vmatpush1.msra.mxu0 0.0
  %196 = vmatprep.subr.mxu0 0.0
  %197 = vmatpush1.msra.mxu0 0.0
  %198 = vmatprep.subr.mxu0 0.0
  %199 = vmatpush1.msra.mxu0 0.0
  %200 = vmatprep.subr.mxu0 0.0
  %201 = vmatpush1.msra.mxu0 0.0
  %202 = vmatprep.subr.mxu0 0.0
  %203 = vmatpush1.msra.mxu0 0.0
  %204 = vmatprep.subr.mxu0 0.0
  %205 = vmatpush1.msra.mxu0 0.0
  %206 = vmatprep.subr.mxu0 0.0
  %207 = vmatpush1.msra.mxu0 0.0
  %208 = vmatprep.subr.mxu0 0.0
  %209 = vmatpush1.msra.mxu0 %v175
  %210 = vmatprep.subr.mxu0 0.0
  %211 = vmatpush1.msra.mxu0 %v174
  %212 = vmatprep.subr.mxu0 0.0
  %213 = vmatpush1.msra.mxu0 %v173
  %214 = vmatprep.subr.mxu0 0.0
  %215 = vmatpush1.msra.mxu0 %v172
  %216 = vmatprep.subr.mxu0 0.0
  %217 = vmatpush2.msra.mxu0 0.0
  %218 = vmatprep.subr.mxu0 0.0
  %219 = vmatpush2.msra.mxu0 0.0
  %220 = vmatprep.subr.mxu0 0.0
  %221 = vmatpush2.msra.mxu0 0.0
  %222 = vmatprep.subr.mxu0 0.0
  %223 = vmatpush2.msra.mxu0 0.0
  %224 = vmatprep.subr.mxu0 0.0
  %225 = vmatpush2.msra.mxu0 0.0
  %226 = vmatprep.subr.mxu0 0.0
  %227 = vmatpush2.msra.mxu0 0.0
  %228 = vmatprep.subr.mxu0 0.0
  %229 = vmatpush2.msra.mxu0 0.0
  %230 = vmatprep.subr.mxu0 0.0
  %231 = vmatpush2.msra.mxu0 0.0
  %232 = vmatprep.subr.mxu0 0.0
  %233 = vmatpush2.msra.mxu0 0.0
  %234 = vmatprep.subr.mxu0 0.0
  %235 = vmatpush2.msra.mxu0 0.0
  %236 = vmatprep.subr.mxu0 0.0
  %237 = vmatpush2.msra.mxu0 0.0
  %238 = vmatprep.subr.mxu0 0.0
  %239 = vmatpush2.msra.mxu0 0.0
  %240 = vmatprep.subr.mxu0 0.0
  %241 = vmatpush2.msra.mxu0 0.0
  %242 = vmatprep.subr.mxu0 0.0
  %243 = vmatpush2.msra.mxu0 0.0
  %244 = vmatprep.subr.mxu0 0.0
  %245 = vmatpush2.msra.mxu0 0.0
  %246 = vmatprep.subr.mxu0 0.0
  %247 = vmatpush2.msra.mxu0 0.0
  %248 = vmatprep.mubr.f32.mxu0 0.0
  %249 = vmatmul.mubr.f32.gmra.mxu0 %v35
  %v250 = vpop.f32.mrf.mxu0
  %v251 = vadd.f32 %v182, %v250
  %v252 = vpop.f32.mrf.mxu0
  %253 = vmatprep.mubr.f32.mxu0 0.0
  %254 = vmatmul.mubr.f32.gmra.mxu0 %v38
  %v255 = vpop.f32.mrf.mxu0
  %v256 = vadd.f32 %v182, %v255
  %v257 = vpop.f32.mrf.mxu0
  %258 = vmatprep.mubr.f32.mxu0 0.0
  %259 = vmatmul.mubr.f32.gmra.mxu0 %v41
  %v260 = vpop.f32.mrf.mxu0
  %v261 = vadd.f32 %v182, %v260
  %v262 = vpop.f32.mrf.mxu0
  %263 = vmatprep.mubr.f32.mxu0 0.0
  %264 = vmatmul.mubr.f32.gmra.mxu0 %v44
  %v265 = vpop.f32.mrf.mxu0
  %v266 = vadd.f32 %v182, %v265
  %v267 = vpop.f32.mrf.mxu0
  %268 = vmatprep.mubr.f32.mxu0 0.0
  %269 = vmatmul.mubr.f32.gmra.mxu0 %v47
  %v270 = vpop.f32.mrf.mxu0
  %v271 = vadd.f32 %v182, %v270
  %v272 = vpop.f32.mrf.mxu0
  %273 = vmatprep.mubr.f32.mxu0 0.0
  %274 = vmatmul.mubr.f32.gmra.mxu0 %v50
  %v275 = vpop.f32.mrf.mxu0
  %v276 = vadd.f32 %v182, %v275
  %v277 = vpop.f32.mrf.mxu0
  %278 = vmatprep.mubr.f32.mxu0 0.0
  %279 = vmatmul.mubr.f32.gmra.mxu0 %v53
  %v280 = vpop.f32.mrf.mxu0
  %v281 = vadd.f32 %v182, %v280
  %v282 = vpop.f32.mrf.mxu0
  %283 = vmatprep.mubr.f32.mxu0 0.0
  %284 = vmatmul.mubr.f32.gmra.mxu0 %v56
  %v285 = vpop.f32.mrf.mxu0
  %v286 = vadd.f32 %v182, %v285
  %v287 = vpop.f32.mrf.mxu0
  %288 = vdwg.mxu0
  %s289 = scalar_lea.vmem %s3, 64
  %290 = vst.msk [vmem:[%s289] sm:$0xff] %vm33, %v251
  %291 = vst.msk [vmem:[%s289 + $0x8] sm:$0xff] %vm33, %v256
  %292 = vst.msk [vmem:[%s289 + $0x10] sm:$0xff] %vm33, %v261
  %293 = vst.msk [vmem:[%s289 + $0x18] sm:$0xff] %vm33, %v266
  %294 = vst.msk [vmem:[%s289 + $0x20] sm:$0xff] %vm33, %v271
  %295 = vst.msk [vmem:[%s289 + $0x28] sm:$0xff] %vm33, %v276
  %296 = vst.msk [vmem:[%s289 + $0x30] sm:$0xff] %vm33, %v281
  %297 = vst.msk [vmem:[%s289 + $0x38] sm:$0xff] %vm33, %v286
  %s298 = scalar_lea.vmem %s1, 64
  %v299 = vld [vmem:[%s298] sm:$0xff]
  %v300 = vld [vmem:[%s298 + $0x8] sm:$0xff]
  %v301 = vld [vmem:[%s298 + $0x10] sm:$0xff]
  %v302 = vld [vmem:[%s298 + $0x18] sm:$0xff]
  %s303 = scalar_lea.vmem %s2, 2
  %v304 = vld [vmem:[%s303] sm:$0x1]
  %v306 = vlaneseq
  %v307 = vshrl.u32 %v306, 7
  %v308 = vsub.s32 0, %v307
  %v309 = vrot.slane %v304, %v308
  %311 = vmatprep.subr.mxu0 0.0
  %312 = vmatpush1.msra.mxu0 0.0
  %313 = vmatprep.subr.mxu0 0.0
  %314 = vmatpush1.msra.mxu0 0.0
  %315 = vmatprep.subr.mxu0 0.0
  %316 = vmatpush1.msra.mxu0 0.0
  %317 = vmatprep.subr.mxu0 0.0
  %318 = vmatpush1.msra.mxu0 0.0
  %319 = vmatprep.subr.mxu0 0.0
  %320 = vmatpush1.msra.mxu0 0.0
  %321 = vmatprep.subr.mxu0 0.0
  %322 = vmatpush1.msra.mxu0 0.0
  %323 = vmatprep.subr.mxu0 0.0
  %324 = vmatpush1.msra.mxu0 0.0
  %325 = vmatprep.subr.mxu0 0.0
  %326 = vmatpush1.msra.mxu0 0.0
  %327 = vmatprep.subr.mxu0 0.0
  %328 = vmatpush1.msra.mxu0 0.0
  %329 = vmatprep.subr.mxu0 0.0
  %330 = vmatpush1.msra.mxu0 0.0
  %331 = vmatprep.subr.mxu0 0.0
  %332 = vmatpush1.msra.mxu0 0.0
  %333 = vmatprep.subr.mxu0 0.0
  %334 = vmatpush1.msra.mxu0 0.0
  %335 = vmatprep.subr.mxu0 0.0
  %336 = vmatpush1.msra.mxu0 %v302
  %337 = vmatprep.subr.mxu0 0.0
  %338 = vmatpush1.msra.mxu0 %v301
  %339 = vmatprep.subr.mxu0 0.0
  %340 = vmatpush1.msra.mxu0 %v300
  %341 = vmatprep.subr.mxu0 0.0
  %342 = vmatpush1.msra.mxu0 %v299
  %343 = vmatprep.subr.mxu0 0.0
  %344 = vmatpush2.msra.mxu0 0.0
  %345 = vmatprep.subr.mxu0 0.0
  %346 = vmatpush2.msra.mxu0 0.0
  %347 = vmatprep.subr.mxu0 0.0
  %348 = vmatpush2.msra.mxu0 0.0
  %349 = vmatprep.subr.mxu0 0.0
  %350 = vmatpush2.msra.mxu0 0.0
  %351 = vmatprep.subr.mxu0 0.0
  %352 = vmatpush2.msra.mxu0 0.0
  %353 = vmatprep.subr.mxu0 0.0
  %354 = vmatpush2.msra.mxu0 0.0
  %355 = vmatprep.subr.mxu0 0.0
  %356 = vmatpush2.msra.mxu0 0.0
  %357 = vmatprep.subr.mxu0 0.0
  %358 = vmatpush2.msra.mxu0 0.0
  %359 = vmatprep.subr.mxu0 0.0
  %360 = vmatpush2.msra.mxu0 0.0
  %361 = vmatprep.subr.mxu0 0.0
  %362 = vmatpush2.msra.mxu0 0.0
  %363 = vmatprep.subr.mxu0 0.0
  %364 = vmatpush2.msra.mxu0 0.0
  %365 = vmatprep.subr.mxu0 0.0
  %366 = vmatpush2.msra.mxu0 0.0
  %367 = vmatprep.subr.mxu0 0.0
  %368 = vmatpush2.msra.mxu0 0.0
  %369 = vmatprep.subr.mxu0 0.0
  %370 = vmatpush2.msra.mxu0 0.0
  %371 = vmatprep.subr.mxu0 0.0
  %372 = vmatpush2.msra.mxu0 0.0
  %373 = vmatprep.subr.mxu0 0.0
  %374 = vmatpush2.msra.mxu0 0.0
  %375 = vmatprep.mubr.f32.mxu0 0.0
  %376 = vmatmul.mubr.f32.gmra.mxu0 %v35
  %v377 = vpop.f32.mrf.mxu0
  %v378 = vadd.f32 %v309, %v377
  %v379 = vpop.f32.mrf.mxu0
  %380 = vmatprep.mubr.f32.mxu0 0.0
  %381 = vmatmul.mubr.f32.gmra.mxu0 %v38
  %v382 = vpop.f32.mrf.mxu0
  %v383 = vadd.f32 %v309, %v382
  %v384 = vpop.f32.mrf.mxu0
  %385 = vmatprep.mubr.f32.mxu0 0.0
  %386 = vmatmul.mubr.f32.gmra.mxu0 %v41
  %v387 = vpop.f32.mrf.mxu0
  %v388 = vadd.f32 %v309, %v387
  %v389 = vpop.f32.mrf.mxu0
  %390 = vmatprep.mubr.f32.mxu0 0.0
  %391 = vmatmul.mubr.f32.gmra.mxu0 %v44
  %v392 = vpop.f32.mrf.mxu0
  %v393 = vadd.f32 %v309, %v392
  %v394 = vpop.f32.mrf.mxu0
  %395 = vmatprep.mubr.f32.mxu0 0.0
  %396 = vmatmul.mubr.f32.gmra.mxu0 %v47
  %v397 = vpop.f32.mrf.mxu0
  %v398 = vadd.f32 %v309, %v397
  %v399 = vpop.f32.mrf.mxu0
  %400 = vmatprep.mubr.f32.mxu0 0.0
  %401 = vmatmul.mubr.f32.gmra.mxu0 %v50
  %v402 = vpop.f32.mrf.mxu0
  %v403 = vadd.f32 %v309, %v402
  %v404 = vpop.f32.mrf.mxu0
  %405 = vmatprep.mubr.f32.mxu0 0.0
  %406 = vmatmul.mubr.f32.gmra.mxu0 %v53
  %v407 = vpop.f32.mrf.mxu0
  %v408 = vadd.f32 %v309, %v407
  %v409 = vpop.f32.mrf.mxu0
  %410 = vmatprep.mubr.f32.mxu0 0.0
  %411 = vmatmul.mubr.f32.gmra.mxu0 %v56
  %v412 = vpop.f32.mrf.mxu0
  %v413 = vadd.f32 %v309, %v412
  %v414 = vpop.f32.mrf.mxu0
  %415 = vdwg.mxu0
  %s416 = scalar_lea.vmem %s3, 128
  %417 = vst.msk [vmem:[%s416] sm:$0xff] %vm33, %v378
  %418 = vst.msk [vmem:[%s416 + $0x8] sm:$0xff] %vm33, %v383
  %419 = vst.msk [vmem:[%s416 + $0x10] sm:$0xff] %vm33, %v388
  %420 = vst.msk [vmem:[%s416 + $0x18] sm:$0xff] %vm33, %v393
  %421 = vst.msk [vmem:[%s416 + $0x20] sm:$0xff] %vm33, %v398
  %422 = vst.msk [vmem:[%s416 + $0x28] sm:$0xff] %vm33, %v403
  %423 = vst.msk [vmem:[%s416 + $0x30] sm:$0xff] %vm33, %v408
  %424 = vst.msk [vmem:[%s416 + $0x38] sm:$0xff] %vm33, %v413
  // Predicated region
  $region14: #{gru_model_forward.7} parent=0 // pred_check
    _
  $region15: #{gru_model_forward.7} parent=0 // pred_check_branch
    %426 = sbr.rel (0) target = $region17
  $region16: #{gru_model_forward.7} parent=0 // pred_region
    _
  $region17: #{gru_model_forward.7} parent=0 // pred_fallthru
    _
  // Predicated region
  $region18: #{gru_model_forward.7} parent=0 // pred_check
    _
  $region19: #{gru_model_forward.7} parent=0 // pred_check_branch
    %428 = sbr.rel (0) target = $region21
  $region20: #{gru_model_forward.7} parent=0 // pred_region
    _
  $region21: #{gru_model_forward.7} parent=0 // pred_fallthru
    _

// kernel: gru_model_forward.6
$region0: #{gru_model_forward.6}
  #allocation0 [shape = 'u32[]', space=smem, size = 0x4, offset = 0x4, fixed_abs, tag = 'smem constant byte address 0x4 - core index']
  #allocation1 [shape = 'u32[144,128]{1,0:T(1,128)}', space=vmem, size = 0x12000, scoped, tag = 'internal scratch']
  #allocation2 [shape = 'f32[8,32]{1,0:T(8,128)}', space=vmem, size = 0x1000, scoped, tag = 'scratch operand']
  %s0 = inlined_call_operand.vmem [shape: f32[3,8,8,32], index: 0, kind: input, shape index: {}]
  %s1 = inlined_call_operand.vmem [shape: f32[3,32,32], index: 1, kind: input, shape index: {}]
  %s2 = inlined_call_operand.vmem [shape: f32[1,32], index: 2, kind: input, shape index: {}]
  %s3 = inlined_call_operand.vmem [shape: f32[8,32], index: 3, kind: input, shape index: {}]
  %s4 = inlined_call_operand.vmem [shape: f32[8,8,32], index: 4, kind: output, shape index: {0}]
  %s5 = inlined_call_operand.vmem [shape: f32[8,32], index: 5, kind: output, shape index: {1}]
  %6 = xla_tuple %s4, %s5
  %s7 = sld [smem:[#allocation0]]
  $region42: #{gru_model_forward.6} parent=0
    _
  %s9 = ssub.s32 1, %s7
  %s10 = scalar_select 0, %s9, %s7
  // Predicated region
  $region2: #{gru_model_forward.6} parent=0 // pred_check
    _
  $region3: #{gru_model_forward.6} parent=0 // pred_check_branch
    %12 = sbr.rel (0) target = $region5
  $region4: #{gru_model_forward.6} parent=0 // pred_region
    _
  $region5: #{gru_model_forward.6} parent=0 // pred_fallthru
    _
  // Predicated region
  $region6: #{gru_model_forward.6} parent=0 // pred_check
    _
  $region7: #{gru_model_forward.6} parent=0 // pred_check_branch
    %14 = sbr.rel (0) target = $region9
  $region8: #{gru_model_forward.6} parent=0 // pred_region
    _
  $region9: #{gru_model_forward.6} parent=0 // pred_fallthru
    _
  // Predicated region
  $region10: #{gru_model_forward.6} parent=0 // pred_check
    _
  $region11: #{gru_model_forward.6} parent=0 // pred_check_branch
    %16 = sbr.rel (0) target = $region13
  $region12: #{gru_model_forward.6} parent=0 // pred_region
    _
  $region13: #{gru_model_forward.6} parent=0 // pred_fallthru
    _
  // Predicated region
  $region14: #{gru_model_forward.6} parent=0 // pred_check
    _
  $region15: #{gru_model_forward.6} parent=0 // pred_check_branch
    %18 = sbr.rel (0) target = $region17
  $region16: #{gru_model_forward.6} parent=0 // pred_region
    _
  $region17: #{gru_model_forward.6} parent=0 // pred_fallthru
    _
  %p19 = scmp.eq.s32.totalorder 0, 0
  // Predicated region
  $region18: #{gru_model_forward.6} parent=0 // pred_check
    %p20 = pneg %p19
  $region19: #{gru_model_forward.6} parent=0 // pred_check_branch
    %22 = sbr.rel (%p20) target = $region21
  $region20: #{gru_model_forward.6} parent=0 // pred_region
    %v23 = vld [vmem:[%s3] sm:$0xff]
    %vm24 = vcmask 261120
    %25 = vst.msk [vmem:[#allocation2] sm:$0xff] %vm24, %v23
  $region21: #{gru_model_forward.6} parent=0 // pred_fallthru
    _
  %v26 = vld [vmem:[#allocation2] sm:$0xff]
  %v27 = vld [vmem:[%s1] sm:$0xff]
  %v28 = vld [vmem:[%s1 + $0x8] sm:$0xff]
  %v29 = vld [vmem:[%s1 + $0x10] sm:$0xff]
  %v30 = vld [vmem:[%s1 + $0x18] sm:$0xff]
  %s31 = scalar_lea.vmem %s1, 32
  %v32 = vld [vmem:[%s31] sm:$0xff]
  %v33 = vld [vmem:[%s31 + $0x8] sm:$0xff]
  %v34 = vld [vmem:[%s31 + $0x10] sm:$0xff]
  %v35 = vld [vmem:[%s31 + $0x18] sm:$0xff]
  %s36 = scalar_lea.vmem %s1, 64
  %v37 = vld [vmem:[%s36] sm:$0xff]
  %v38 = vld [vmem:[%s36 + $0x8] sm:$0xff]
  %v39 = vld [vmem:[%s36 + $0x10] sm:$0xff]
  %v40 = vld [vmem:[%s36 + $0x18] sm:$0xff]
  %v41 = vld [vmem:[%s2] sm:$0x1]
  %vm42 = vcmask 261120
  %v44 = vsel %vm42, %v26, 0
  %46 = vmatprep.subr.mxu0 0.0
  %47 = vmatpush1.msra.mxu0 0.0
  %48 = vmatprep.subr.mxu0 0.0
  %49 = vmatpush1.msra.mxu0 0.0
  %50 = vmatprep.subr.mxu0 0.0
  %51 = vmatpush1.msra.mxu0 0.0
  %52 = vmatprep.subr.mxu0 0.0
  %53 = vmatpush1.msra.mxu0 0.0
  %54 = vmatprep.subr.mxu0 0.0
  %55 = vmatpush1.msra.mxu0 0.0
  %56 = vmatprep.subr.mxu0 0.0
  %57 = vmatpush1.msra.mxu0 0.0
  %58 = vmatprep.subr.mxu0 0.0
  %59 = vmatpush1.msra.mxu0 0.0
  %60 = vmatprep.subr.mxu0 0.0
  %61 = vmatpush1.msra.mxu0 0.0
  %62 = vmatprep.subr.mxu0 0.0
  %63 = vmatpush1.msra.mxu0 0.0
  %64 = vmatprep.subr.mxu0 0.0
  %65 = vmatpush1.msra.mxu0 0.0
  %66 = vmatprep.subr.mxu0 0.0
  %67 = vmatpush1.msra.mxu0 0.0
  %68 = vmatprep.subr.mxu0 0.0
  %69 = vmatpush1.msra.mxu0 0.0
  %70 = vmatprep.subr.mxu0 0.0
  %71 = vmatpush1.msra.mxu0 %v30
  %72 = vmatprep.subr.mxu0 0.0
  %73 = vmatpush1.msra.mxu0 %v29
  %74 = vmatprep.subr.mxu0 0.0
  %75 = vmatpush1.msra.mxu0 %v28
  %76 = vmatprep.subr.mxu0 0.0
  %77 = vmatpush1.msra.mxu0 %v27
  %78 = vmatprep.subr.mxu0 0.0
  %79 = vmatpush2.msra.mxu0 0.0
  %80 = vmatprep.subr.mxu0 0.0
  %81 = vmatpush2.msra.mxu0 0.0
  %82 = vmatprep.subr.mxu0 0.0
  %83 = vmatpush2.msra.mxu0 0.0
  %84 = vmatprep.subr.mxu0 0.0
  %85 = vmatpush2.msra.mxu0 0.0
  %86 = vmatprep.subr.mxu0 0.0
  %87 = vmatpush2.msra.mxu0 0.0
  %88 = vmatprep.subr.mxu0 0.0
  %89 = vmatpush2.msra.mxu0 0.0
  %90 = vmatprep.subr.mxu0 0.0
  %91 = vmatpush2.msra.mxu0 0.0
  %92 = vmatprep.subr.mxu0 0.0
  %93 = vmatpush2.msra.mxu0 0.0
  %94 = vmatprep.subr.mxu0 0.0
  %95 = vmatpush2.msra.mxu0 0.0
  %96 = vmatprep.subr.mxu0 0.0
  %97 = vmatpush2.msra.mxu0 0.0
  %98 = vmatprep.subr.mxu0 0.0
  %99 = vmatpush2.msra.mxu0 0.0
  %100 = vmatprep.subr.mxu0 0.0
  %101 = vmatpush2.msra.mxu0 0.0
  %102 = vmatprep.subr.mxu0 0.0
  %103 = vmatpush2.msra.mxu0 0.0
  %104 = vmatprep.subr.mxu0 0.0
  %105 = vmatpush2.msra.mxu0 0.0
  %106 = vmatprep.subr.mxu0 0.0
  %107 = vmatpush2.msra.mxu0 0.0
  %108 = vmatprep.subr.mxu0 0.0
  %109 = vmatpush2.msra.mxu0 0.0
  %110 = vmatprep.mubr.f32.mxu0 0.0
  %111 = vmatmul.mubr.f32.gmra.mxu0 %v44
  %v112 = vpop.f32.mrf.mxu0
  %v113 = vadd.f32 0.0, %v112
  %v114 = vpop.f32.mrf.mxu0
  %115 = vdwg.mxu0
  %116 = vmatprep.subr.mxu0 0.0
  %117 = vmatpush1.msra.mxu0 0.0
  %118 = vmatprep.subr.mxu0 0.0
  %119 = vmatpush1.msra.mxu0 0.0
  %120 = vmatprep.subr.mxu0 0.0
  %121 = vmatpush1.msra.mxu0 0.0
  %122 = vmatprep.subr.mxu0 0.0
  %123 = vmatpush1.msra.mxu0 0.0
  %124 = vmatprep.subr.mxu0 0.0
  %125 = vmatpush1.msra.mxu0 0.0
  %126 = vmatprep.subr.mxu0 0.0
  %127 = vmatpush1.msra.mxu0 0.0
  %128 = vmatprep.subr.mxu0 0.0
  %129 = vmatpush1.msra.mxu0 0.0
  %130 = vmatprep.subr.mxu0 0.0
  %131 = vmatpush1.msra.mxu0 0.0
  %132 = vmatprep.subr.mxu0 0.0
  %133 = vmatpush1.msra.mxu0 0.0
  %134 = vmatprep.subr.mxu0 0.0
  %135 = vmatpush1.msra.mxu0 0.0
  %136 = vmatprep.subr.mxu0 0.0
  %137 = vmatpush1.msra.mxu0 0.0
  %138 = vmatprep.subr.mxu0 0.0
  %139 = vmatpush1.msra.mxu0 0.0
  %140 = vmatprep.subr.mxu0 0.0
  %141 = vmatpush1.msra.mxu0 %v35
  %142 = vmatprep.subr.mxu0 0.0
  %143 = vmatpush1.msra.mxu0 %v34
  %144 = vmatprep.subr.mxu0 0.0
  %145 = vmatpush1.msra.mxu0 %v33
  %146 = vmatprep.subr.mxu0 0.0
  %147 = vmatpush1.msra.mxu0 %v32
  %148 = vmatprep.subr.mxu0 0.0
  %149 = vmatpush2.msra.mxu0 0.0
  %150 = vmatprep.subr.mxu0 0.0
  %151 = vmatpush2.msra.mxu0 0.0
  %152 = vmatprep.subr.mxu0 0.0
  %153 = vmatpush2.msra.mxu0 0.0
  %154 = vmatprep.subr.mxu0 0.0
  %155 = vmatpush2.msra.mxu0 0.0
  %156 = vmatprep.subr.mxu0 0.0
  %157 = vmatpush2.msra.mxu0 0.0
  %158 = vmatprep.subr.mxu0 0.0
  %159 = vmatpush2.msra.mxu0 0.0
  %160 = vmatprep.subr.mxu0 0.0
  %161 = vmatpush2.msra.mxu0 0.0
  %162 = vmatprep.subr.mxu0 0.0
  %163 = vmatpush2.msra.mxu0 0.0
  %164 = vmatprep.subr.mxu0 0.0
  %165 = vmatpush2.msra.mxu0 0.0
  %166 = vmatprep.subr.mxu0 0.0
  %167 = vmatpush2.msra.mxu0 0.0
  %168 = vmatprep.subr.mxu0 0.0
  %169 = vmatpush2.msra.mxu0 0.0
  %170 = vmatprep.subr.mxu0 0.0
  %171 = vmatpush2.msra.mxu0 0.0
  %172 = vmatprep.subr.mxu0 0.0
  %173 = vmatpush2.msra.mxu0 0.0
  %174 = vmatprep.subr.mxu0 0.0
  %175 = vmatpush2.msra.mxu0 0.0
  %176 = vmatprep.subr.mxu0 0.0
  %177 = vmatpush2.msra.mxu0 0.0
  %178 = vmatprep.subr.mxu0 0.0
  %179 = vmatpush2.msra.mxu0 0.0
  %180 = vmatprep.mubr.f32.mxu0 0.0
  %181 = vmatmul.mubr.f32.gmra.mxu0 %v44
  %v182 = vpop.f32.mrf.mxu0
  %v183 = vadd.f32 0.0, %v182
  %v184 = vpop.f32.mrf.mxu0
  %185 = vdwg.mxu0
  %v186 = vld [vmem:[%s0] sm:$0xff]
  %v187 = vadd.f32 %v186, %v113
  %v188 = vxor.u32 %v187, 2147483648
  %v189 = vmul.f32 %v188, 1.442695
  %v190 = vpow.pop %v189
  %v191 = vadd.f32 %v190, 1.0
  %v192 = vrcp.pop %v191
  %v193 = vmul.f32 1.0, %v192
  %s194 = scalar_lea.vmem %s0, 64
  %v195 = vld [vmem:[%s194] sm:$0xff]
  %v196 = vadd.f32 %v195, %v183
  %v197 = vxor.u32 %v196, 2147483648
  %v198 = vmul.f32 %v197, 1.442695
  %v199 = vpow.pop %v198
  %v200 = vadd.f32 %v199, 1.0
  %v201 = vrcp.pop %v200
  %v202 = vmul.f32 1.0, %v201
  %s203 = scalar_lea.vmem %s0, 128
  %v204 = vld [vmem:[%s203] sm:$0xff]
  %v206 = vlaneseq
  %v207 = vshrl.u32 %v206, 7
  %v208 = vsub.s32 0, %v207
  %v209 = vrot.slane %v41, %v208
  %211 = vmatprep.subr.mxu0 0.0
  %212 = vmatpush1.msra.mxu0 0.0
  %213 = vmatprep.subr.mxu0 0.0
  %214 = vmatpush1.msra.mxu0 0.0
  %215 = vmatprep.subr.mxu0 0.0
  %216 = vmatpush1.msra.mxu0 0.0
  %217 = vmatprep.subr.mxu0 0.0
  %218 = vmatpush1.msra.mxu0 0.0
  %219 = vmatprep.subr.mxu0 0.0
  %220 = vmatpush1.msra.mxu0 0.0
  %221 = vmatprep.subr.mxu0 0.0
  %222 = vmatpush1.msra.mxu0 0.0
  %223 = vmatprep.subr.mxu0 0.0
  %224 = vmatpush1.msra.mxu0 0.0
  %225 = vmatprep.subr.mxu0 0.0
  %226 = vmatpush1.msra.mxu0 0.0
  %227 = vmatprep.subr.mxu0 0.0
  %228 = vmatpush1.msra.mxu0 0.0
  %229 = vmatprep.subr.mxu0 0.0
  %230 = vmatpush1.msra.mxu0 0.0
  %231 = vmatprep.subr.mxu0 0.0
  %232 = vmatpush1.msra.mxu0 0.0
  %233 = vmatprep.subr.mxu0 0.0
  %234 = vmatpush1.msra.mxu0 0.0
  %235 = vmatprep.subr.mxu0 0.0
  %236 = vmatpush1.msra.mxu0 %v40
  %237 = vmatprep.subr.mxu0 0.0
  %238 = vmatpush1.msra.mxu0 %v39
  %239 = vmatprep.subr.mxu0 0.0
  %240 = vmatpush1.msra.mxu0 %v38
  %241 = vmatprep.subr.mxu0 0.0
  %242 = vmatpush1.msra.mxu0 %v37
  %243 = vmatprep.subr.mxu0 0.0
  %244 = vmatpush2.msra.mxu0 0.0
  %245 = vmatprep.subr.mxu0 0.0
  %246 = vmatpush2.msra.mxu0 0.0
  %247 = vmatprep.subr.mxu0 0.0
  %248 = vmatpush2.msra.mxu0 0.0
  %249 = vmatprep.subr.mxu0 0.0
  %250 = vmatpush2.msra.mxu0 0.0
  %251 = vmatprep.subr.mxu0 0.0
  %252 = vmatpush2.msra.mxu0 0.0
  %253 = vmatprep.subr.mxu0 0.0
  %254 = vmatpush2.msra.mxu0 0.0
  %255 = vmatprep.subr.mxu0 0.0
  %256 = vmatpush2.msra.mxu0 0.0
  %257 = vmatprep.subr.mxu0 0.0
  %258 = vmatpush2.msra.mxu0 0.0
  %259 = vmatprep.subr.mxu0 0.0
  %260 = vmatpush2.msra.mxu0 0.0
  %261 = vmatprep.subr.mxu0 0.0
  %262 = vmatpush2.msra.mxu0 0.0
  %263 = vmatprep.subr.mxu0 0.0
  %264 = vmatpush2.msra.mxu0 0.0
  %265 = vmatprep.subr.mxu0 0.0
  %266 = vmatpush2.msra.mxu0 0.0
  %267 = vmatprep.subr.mxu0 0.0
  %268 = vmatpush2.msra.mxu0 0.0
  %269 = vmatprep.subr.mxu0 0.0
  %270 = vmatpush2.msra.mxu0 0.0
  %271 = vmatprep.subr.mxu0 0.0
  %272 = vmatpush2.msra.mxu0 0.0
  %273 = vmatprep.subr.mxu0 0.0
  %274 = vmatpush2.msra.mxu0 0.0
  %275 = vmatprep.mubr.f32.mxu0 0.0
  %276 = vmatmul.mubr.f32.gmra.mxu0 %v44
  %v277 = vpop.f32.mrf.mxu0
  %v278 = vadd.f32 %v209, %v277
  %v279 = vpop.f32.mrf.mxu0
  %280 = vdwg.mxu0
  %v281 = vmul.f32 %v193, %v278
  %v282 = vadd.f32 %v204, %v281
  %v283 = vtanh.pop %v282
  %v284 = vsub.f32 1.0, %v202
  %v285 = vmul.f32 %v284, %v283
  %v286 = vmul.f32 %v202, %v26
  %v287 = vadd.f32 %v285, %v286
  %288 = vst.msk [vmem:[%s4] sm:$0xff] %vm42, %v287
  %v290 = vsel %vm42, %v287, 0
  %292 = vmatprep.subr.mxu0 0.0
  %293 = vmatpush1.msra.mxu0 0.0
  %294 = vmatprep.subr.mxu0 0.0
  %295 = vmatpush1.msra.mxu0 0.0
  %296 = vmatprep.subr.mxu0 0.0
  %297 = vmatpush1.msra.mxu0 0.0
  %298 = vmatprep.subr.mxu0 0.0
  %299 = vmatpush1.msra.mxu0 0.0
  %300 = vmatprep.subr.mxu0 0.0
  %301 = vmatpush1.msra.mxu0 0.0
  %302 = vmatprep.subr.mxu0 0.0
  %303 = vmatpush1.msra.mxu0 0.0
  %304 = vmatprep.subr.mxu0 0.0
  %305 = vmatpush1.msra.mxu0 0.0
  %306 = vmatprep.subr.mxu0 0.0
  %307 = vmatpush1.msra.mxu0 0.0
  %308 = vmatprep.subr.mxu0 0.0
  %309 = vmatpush1.msra.mxu0 0.0
  %310 = vmatprep.subr.mxu0 0.0
  %311 = vmatpush1.msra.mxu0 0.0
  %312 = vmatprep.subr.mxu0 0.0
  %313 = vmatpush1.msra.mxu0 0.0
  %314 = vmatprep.subr.mxu0 0.0
  %315 = vmatpush1.msra.mxu0 0.0
  %316 = vmatprep.subr.mxu0 0.0
  %317 = vmatpush1.msra.mxu0 %v30
  %318 = vmatprep.subr.mxu0 0.0
  %319 = vmatpush1.msra.mxu0 %v29
  %320 = vmatprep.subr.mxu0 0.0
  %321 = vmatpush1.msra.mxu0 %v28
  %322 = vmatprep.subr.mxu0 0.0
  %323 = vmatpush1.msra.mxu0 %v27
  %324 = vmatprep.subr.mxu0 0.0
  %325 = vmatpush2.msra.mxu0 0.0
  %326 = vmatprep.subr.mxu0 0.0
  %327 = vmatpush2.msra.mxu0 0.0
  %328 = vmatprep.subr.mxu0 0.0
  %329 = vmatpush2.msra.mxu0 0.0
  %330 = vmatprep.subr.mxu0 0.0
  %331 = vmatpush2.msra.mxu0 0.0
  %332 = vmatprep.subr.mxu0 0.0
  %333 = vmatpush2.msra.mxu0 0.0
  %334 = vmatprep.subr.mxu0 0.0
  %335 = vmatpush2.msra.mxu0 0.0
  %336 = vmatprep.subr.mxu0 0.0
  %337 = vmatpush2.msra.mxu0 0.0
  %338 = vmatprep.subr.mxu0 0.0
  %339 = vmatpush2.msra.mxu0 0.0
  %340 = vmatprep.subr.mxu0 0.0
  %341 = vmatpush2.msra.mxu0 0.0
  %342 = vmatprep.subr.mxu0 0.0
  %343 = vmatpush2.msra.mxu0 0.0
  %344 = vmatprep.subr.mxu0 0.0
  %345 = vmatpush2.msra.mxu0 0.0
  %346 = vmatprep.subr.mxu0 0.0
  %347 = vmatpush2.msra.mxu0 0.0
  %348 = vmatprep.subr.mxu0 0.0
  %349 = vmatpush2.msra.mxu0 0.0
  %350 = vmatprep.subr.mxu0 0.0
  %351 = vmatpush2.msra.mxu0 0.0
  %352 = vmatprep.subr.mxu0 0.0
  %353 = vmatpush2.msra.mxu0 0.0
  %354 = vmatprep.subr.mxu0 0.0
  %355 = vmatpush2.msra.mxu0 0.0
  %356 = vmatprep.mubr.f32.mxu0 0.0
  %357 = vmatmul.mubr.f32.gmra.mxu0 %v290
  %v358 = vpop.f32.mrf.mxu0
  %v359 = vadd.f32 0.0, %v358
  %v360 = vpop.f32.mrf.mxu0
  %361 = vdwg.mxu0
  %362 = vmatprep.subr.mxu0 0.0
  %363 = vmatpush1.msra.mxu0 0.0
  %364 = vmatprep.subr.mxu0 0.0
  %365 = vmatpush1.msra.mxu0 0.0
  %366 = vmatprep.subr.mxu0 0.0
  %367 = vmatpush1.msra.mxu0 0.0
  %368 = vmatprep.subr.mxu0 0.0
  %369 = vmatpush1.msra.mxu0 0.0
  %370 = vmatprep.subr.mxu0 0.0
  %371 = vmatpush1.msra.mxu0 0.0
  %372 = vmatprep.subr.mxu0 0.0
  %373 = vmatpush1.msra.mxu0 0.0
  %374 = vmatprep.subr.mxu0 0.0
  %375 = vmatpush1.msra.mxu0 0.0
  %376 = vmatprep.subr.mxu0 0.0
  %377 = vmatpush1.msra.mxu0 0.0
  %378 = vmatprep.subr.mxu0 0.0
  %379 = vmatpush1.msra.mxu0 0.0
  %380 = vmatprep.subr.mxu0 0.0
  %381 = vmatpush1.msra.mxu0 0.0
  %382 = vmatprep.subr.mxu0 0.0
  %383 = vmatpush1.msra.mxu0 0.0
  %384 = vmatprep.subr.mxu0 0.0
  %385 = vmatpush1.msra.mxu0 0.0
  %386 = vmatprep.subr.mxu0 0.0
  %387 = vmatpush1.msra.mxu0 %v35
  %388 = vmatprep.subr.mxu0 0.0
  %389 = vmatpush1.msra.mxu0 %v34
  %390 = vmatprep.subr.mxu0 0.0
  %391 = vmatpush1.msra.mxu0 %v33
  %392 = vmatprep.subr.mxu0 0.0
  %393 = vmatpush1.msra.mxu0 %v32
  %394 = vmatprep.subr.mxu0 0.0
  %395 = vmatpush2.msra.mxu0 0.0
  %396 = vmatprep.subr.mxu0 0.0
  %397 = vmatpush2.msra.mxu0 0.0
  %398 = vmatprep.subr.mxu0 0.0
  %399 = vmatpush2.msra.mxu0 0.0
  %400 = vmatprep.subr.mxu0 0.0
  %401 = vmatpush2.msra.mxu0 0.0
  %402 = vmatprep.subr.mxu0 0.0
  %403 = vmatpush2.msra.mxu0 0.0
  %404 = vmatprep.subr.mxu0 0.0
  %405 = vmatpush2.msra.mxu0 0.0
  %406 = vmatprep.subr.mxu0 0.0
  %407 = vmatpush2.msra.mxu0 0.0
  %408 = vmatprep.subr.mxu0 0.0
  %409 = vmatpush2.msra.mxu0 0.0
  %410 = vmatprep.subr.mxu0 0.0
  %411 = vmatpush2.msra.mxu0 0.0
  %412 = vmatprep.subr.mxu0 0.0
  %413 = vmatpush2.msra.mxu0 0.0
  %414 = vmatprep.subr.mxu0 0.0
  %415 = vmatpush2.msra.mxu0 0.0
  %416 = vmatprep.subr.mxu0 0.0
  %417 = vmatpush2.msra.mxu0 0.0
  %418 = vmatprep.subr.mxu0 0.0
  %419 = vmatpush2.msra.mxu0 0.0
  %420 = vmatprep.subr.mxu0 0.0
  %421 = vmatpush2.msra.mxu0 0.0
  %422 = vmatprep.subr.mxu0 0.0
  %423 = vmatpush2.msra.mxu0 0.0
  %424 = vmatprep.subr.mxu0 0.0
  %425 = vmatpush2.msra.mxu0 0.0
  %426 = vmatprep.mubr.f32.mxu0 0.0
  %427 = vmatmul.mubr.f32.gmra.mxu0 %v290
  %v428 = vpop.f32.mrf.mxu0
  %v429 = vadd.f32 0.0, %v428
  %v430 = vpop.f32.mrf.mxu0
  %431 = vdwg.mxu0
  %s432 = scalar_lea.vmem %s0, 8
  %v433 = vld [vmem:[%s432] sm:$0xff]
  %v434 = vadd.f32 %v433, %v359
  %v435 = vxor.u32 %v434, 2147483648
  %v436 = vmul.f32 %v435, 1.442695
  %v437 = vpow.pop %v436
  %v438 = vadd.f32 %v437, 1.0
  %v439 = vrcp.pop %v438
  %v440 = vmul.f32 1.0, %v439
  %s441 = scalar_lea.vmem %s0, 72
  %v442 = vld [vmem:[%s441] sm:$0xff]
  %v443 = vadd.f32 %v442, %v429
  %v444 = vxor.u32 %v443, 2147483648
  %v445 = vmul.f32 %v444, 1.442695
  %v446 = vpow.pop %v445
  %v447 = vadd.f32 %v446, 1.0
  %v448 = vrcp.pop %v447
  %v449 = vmul.f32 1.0, %v448
  %s450 = scalar_lea.vmem %s0, 136
  %v451 = vld [vmem:[%s450] sm:$0xff]
  %452 = vmatprep.subr.mxu0 0.0
  %453 = vmatpush1.msra.mxu0 0.0
  %454 = vmatprep.subr.mxu0 0.0
  %455 = vmatpush1.msra.mxu0 0.0
  %456 = vmatprep.subr.mxu0 0.0
  %457 = vmatpush1.msra.mxu0 0.0
  %458 = vmatprep.subr.mxu0 0.0
  %459 = vmatpush1.msra.mxu0 0.0
  %460 = vmatprep.subr.mxu0 0.0
  %461 = vmatpush1.msra.mxu0 0.0
  %462 = vmatprep.subr.mxu0 0.0
  %463 = vmatpush1.msra.mxu0 0.0
  %464 = vmatprep.subr.mxu0 0.0
  %465 = vmatpush1.msra.mxu0 0.0
  %466 = vmatprep.subr.mxu0 0.0
  %467 = vmatpush1.msra.mxu0 0.0
  %468 = vmatprep.subr.mxu0 0.0
  %469 = vmatpush1.msra.mxu0 0.0
  %470 = vmatprep.subr.mxu0 0.0
  %471 = vmatpush1.msra.mxu0 0.0
  %472 = vmatprep.subr.mxu0 0.0
  %473 = vmatpush1.msra.mxu0 0.0
  %474 = vmatprep.subr.mxu0 0.0
  %475 = vmatpush1.msra.mxu0 0.0
  %476 = vmatprep.subr.mxu0 0.0
  %477 = vmatpush1.msra.mxu0 %v40
  %478 = vmatprep.subr.mxu0 0.0
  %479 = vmatpush1.msra.mxu0 %v39
  %480 = vmatprep.subr.mxu0 0.0
  %481 = vmatpush1.msra.mxu0 %v38
  %482 = vmatprep.subr.mxu0 0.0
  %483 = vmatpush1.msra.mxu0 %v37
  %484 = vmatprep.subr.mxu0 0.0
  %485 = vmatpush2.msra.mxu0 0.0
  %486 = vmatprep.subr.mxu0 0.0
  %487 = vmatpush2.msra.mxu0 0.0
  %488 = vmatprep.subr.mxu0 0.0
  %489 = vmatpush2.msra.mxu0 0.0
  %490 = vmatprep.subr.mxu0 0.0
  %491 = vmatpush2.msra.mxu0 0.0
  %492 = vmatprep.subr.mxu0 0.0
  %493 = vmatpush2.msra.mxu0 0.0
  %494 = vmatprep.subr.mxu0 0.0
  %495 = vmatpush2.msra.mxu0 0.0
  %496 = vmatprep.subr.mxu0 0.0
  %497 = vmatpush2.msra.mxu0 0.0
  %498 = vmatprep.subr.mxu0 0.0
  %499 = vmatpush2.msra.mxu0 0.0
  %500 = vmatprep.subr.mxu0 0.0
  %501 = vmatpush2.msra.mxu0 0.0
  %502 = vmatprep.subr.mxu0 0.0
  %503 = vmatpush2.msra.mxu0 0.0
  %504 = vmatprep.subr.mxu0 0.0
  %505 = vmatpush2.msra.mxu0 0.0
  %506 = vmatprep.subr.mxu0 0.0
  %507 = vmatpush2.msra.mxu0 0.0
  %508 = vmatprep.subr.mxu0 0.0
  %509 = vmatpush2.msra.mxu0 0.0
  %510 = vmatprep.subr.mxu0 0.0
  %511 = vmatpush2.msra.mxu0 0.0
  %512 = vmatprep.subr.mxu0 0.0
  %513 = vmatpush2.msra.mxu0 0.0
  %514 = vmatprep.subr.mxu0 0.0
  %515 = vmatpush2.msra.mxu0 0.0
  %516 = vmatprep.mubr.f32.mxu0 0.0
  %517 = vmatmul.mubr.f32.gmra.mxu0 %v290
  %v518 = vpop.f32.mrf.mxu0
  %v519 = vadd.f32 %v209, %v518
  %v520 = vpop.f32.mrf.mxu0
  %521 = vdwg.mxu0
  %v522 = vmul.f32 %v440, %v519
  %v523 = vadd.f32 %v451, %v522
  %v524 = vtanh.pop %v523
  %v525 = vsub.f32 1.0, %v449
  %v526 = vmul.f32 %v525, %v524
  %v527 = vmul.f32 %v449, %v287
  %v528 = vadd.f32 %v526, %v527
  %s529 = scalar_lea.vmem %s4, 8
  %530 = vst.msk [vmem:[%s529] sm:$0xff] %vm42, %v528
  %v532 = vsel %vm42, %v528, 0
  %534 = vmatprep.subr.mxu0 0.0
  %535 = vmatpush1.msra.mxu0 0.0
  %536 = vmatprep.subr.mxu0 0.0
  %537 = vmatpush1.msra.mxu0 0.0
  %538 = vmatprep.subr.mxu0 0.0
  %539 = vmatpush1.msra.mxu0 0.0
  %540 = vmatprep.subr.mxu0 0.0
  %541 = vmatpush1.msra.mxu0 0.0
  %542 = vmatprep.subr.mxu0 0.0
  %543 = vmatpush1.msra.mxu0 0.0
  %544 = vmatprep.subr.mxu0 0.0
  %545 = vmatpush1.msra.mxu0 0.0
  %546 = vmatprep.subr.mxu0 0.0
  %547 = vmatpush1.msra.mxu0 0.0
  %548 = vmatprep.subr.mxu0 0.0
  %549 = vmatpush1.msra.mxu0 0.0
  %550 = vmatprep.subr.mxu0 0.0
  %551 = vmatpush1.msra.mxu0 0.0
  %552 = vmatprep.subr.mxu0 0.0
  %553 = vmatpush1.msra.mxu0 0.0
  %554 = vmatprep.subr.mxu0 0.0
  %555 = vmatpush1.msra.mxu0 0.0
  %556 = vmatprep.subr.mxu0 0.0
  %557 = vmatpush1.msra.mxu0 0.0
  %558 = vmatprep.subr.mxu0 0.0
  %559 = vmatpush1.msra.mxu0 %v30
  %560 = vmatprep.subr.mxu0 0.0
  %561 = vmatpush1.msra.mxu0 %v29
  %562 = vmatprep.subr.mxu0 0.0
  %563 = vmatpush1.msra.mxu0 %v28
  %564 = vmatprep.subr.mxu0 0.0
  %565 = vmatpush1.msra.mxu0 %v27
  %566 = vmatprep.subr.mxu0 0.0
  %567 = vmatpush2.msra.mxu0 0.0
  %568 = vmatprep.subr.mxu0 0.0
  %569 = vmatpush2.msra.mxu0 0.0
  %570 = vmatprep.subr.mxu0 0.0
  %571 = vmatpush2.msra.mxu0 0.0
  %572 = vmatprep.subr.mxu0 0.0
  %573 = vmatpush2.msra.mxu0 0.0
  %574 = vmatprep.subr.mxu0 0.0
  %575 = vmatpush2.msra.mxu0 0.0
  %576 = vmatprep.subr.mxu0 0.0
  %577 = vmatpush2.msra.mxu0 0.0
  %578 = vmatprep.subr.mxu0 0.0
  %579 = vmatpush2.msra.mxu0 0.0
  %580 = vmatprep.subr.mxu0 0.0
  %581 = vmatpush2.msra.mxu0 0.0
  %582 = vmatprep.subr.mxu0 0.0
  %583 = vmatpush2.msra.mxu0 0.0
  %584 = vmatprep.subr.mxu0 0.0
  %585 = vmatpush2.msra.mxu0 0.0
  %586 = vmatprep.subr.mxu0 0.0
  %587 = vmatpush2.msra.mxu0 0.0
  %588 = vmatprep.subr.mxu0 0.0
  %589 = vmatpush2.msra.mxu0 0.0
  %590 = vmatprep.subr.mxu0 0.0
  %591 = vmatpush2.msra.mxu0 0.0
  %592 = vmatprep.subr.mxu0 0.0
  %593 = vmatpush2.msra.mxu0 0.0
  %594 = vmatprep.subr.mxu0 0.0
  %595 = vmatpush2.msra.mxu0 0.0
  %596 = vmatprep.subr.mxu0 0.0
  %597 = vmatpush2.msra.mxu0 0.0
  %598 = vmatprep.mubr.f32.mxu0 0.0
  %599 = vmatmul.mubr.f32.gmra.mxu0 %v532
  %v600 = vpop.f32.mrf.mxu0
  %v601 = vadd.f32 0.0, %v600
  %v602 = vpop.f32.mrf.mxu0
  %603 = vdwg.mxu0
  %604 = vmatprep.subr.mxu0 0.0
  %605 = vmatpush1.msra.mxu0 0.0
  %606 = vmatprep.subr.mxu0 0.0
  %607 = vmatpush1.msra.mxu0 0.0
  %608 = vmatprep.subr.mxu0 0.0
  %609 = vmatpush1.msra.mxu0 0.0
  %610 = vmatprep.subr.mxu0 0.0
  %611 = vmatpush1.msra.mxu0 0.0
  %612 = vmatprep.subr.mxu0 0.0
  %613 = vmatpush1.msra.mxu0 0.0
  %614 = vmatprep.subr.mxu0 0.0
  %615 = vmatpush1.msra.mxu0 0.0
  %616 = vmatprep.subr.mxu0 0.0
  %617 = vmatpush1.msra.mxu0 0.0
  %618 = vmatprep.subr.mxu0 0.0
  %619 = vmatpush1.msra.mxu0 0.0
  %620 = vmatprep.subr.mxu0 0.0
  %621 = vmatpush1.msra.mxu0 0.0
  %622 = vmatprep.subr.mxu0 0.0
  %623 = vmatpush1.msra.mxu0 0.0
  %624 = vmatprep.subr.mxu0 0.0
  %625 = vmatpush1.msra.mxu0 0.0
  %626 = vmatprep.subr.mxu0 0.0
  %627 = vmatpush1.msra.mxu0 0.0
  %628 = vmatprep.subr.mxu0 0.0
  %629 = vmatpush1.msra.mxu0 %v35
  %630 = vmatprep.subr.mxu0 0.0
  %631 = vmatpush1.msra.mxu0 %v34
  %632 = vmatprep.subr.mxu0 0.0
  %633 = vmatpush1.msra.mxu0 %v33
  %634 = vmatprep.subr.mxu0 0.0
  %635 = vmatpush1.msra.mxu0 %v32
  %636 = vmatprep.subr.mxu0 0.0
  %637 = vmatpush2.msra.mxu0 0.0
  %638 = vmatprep.subr.mxu0 0.0
  %639 = vmatpush2.msra.mxu0 0.0
  %640 = vmatprep.subr.mxu0 0.0
  %641 = vmatpush2.msra.mxu0 0.0
  %642 = vmatprep.subr.mxu0 0.0
  %643 = vmatpush2.msra.mxu0 0.0
  %644 = vmatprep.subr.mxu0 0.0
  %645 = vmatpush2.msra.mxu0 0.0
  %646 = vmatprep.subr.mxu0 0.0
  %647 = vmatpush2.msra.mxu0 0.0
  %648 = vmatprep.subr.mxu0 0.0
  %649 = vmatpush2.msra.mxu0 0.0
  %650 = vmatprep.subr.mxu0 0.0
  %651 = vmatpush2.msra.mxu0 0.0
  %652 = vmatprep.subr.mxu0 0.0
  %653 = vmatpush2.msra.mxu0 0.0
  %654 = vmatprep.subr.mxu0 0.0
  %655 = vmatpush2.msra.mxu0 0.0
  %656 = vmatprep.subr.mxu0 0.0
  %657 = vmatpush2.msra.mxu0 0.0
  %658 = vmatprep.subr.mxu0 0.0
  %659 = vmatpush2.msra.mxu0 0.0
  %660 = vmatprep.subr.mxu0 0.0
  %661 = vmatpush2.msra.mxu0 0.0
  %662 = vmatprep.subr.mxu0 0.0
  %663 = vmatpush2.msra.mxu0 0.0
  %664 = vmatprep.subr.mxu0 0.0
  %665 = vmatpush2.msra.mxu0 0.0
  %666 = vmatprep.subr.mxu0 0.0
  %667 = vmatpush2.msra.mxu0 0.0
  %668 = vmatprep.mubr.f32.mxu0 0.0
  %669 = vmatmul.mubr.f32.gmra.mxu0 %v532
  %v670 = vpop.f32.mrf.mxu0
  %v671 = vadd.f32 0.0, %v670
  %v672 = vpop.f32.mrf.mxu0
  %673 = vdwg.mxu0
  %s674 = scalar_lea.vmem %s0, 16
  %v675 = vld [vmem:[%s674] sm:$0xff]
  %v676 = vadd.f32 %v675, %v601
  %v677 = vxor.u32 %v676, 2147483648
  %v678 = vmul.f32 %v677, 1.442695
  %v679 = vpow.pop %v678
  %v680 = vadd.f32 %v679, 1.0
  %v681 = vrcp.pop %v680
  %v682 = vmul.f32 1.0, %v681
  %s683 = scalar_lea.vmem %s0, 80
  %v684 = vld [vmem:[%s683] sm:$0xff]
  %v685 = vadd.f32 %v684, %v671
  %v686 = vxor.u32 %v685, 2147483648
  %v687 = vmul.f32 %v686, 1.442695
  %v688 = vpow.pop %v687
  %v689 = vadd.f32 %v688, 1.0
  %v690 = vrcp.pop %v689
  %v691 = vmul.f32 1.0, %v690
  %s692 = scalar_lea.vmem %s0, 144
  %v693 = vld [vmem:[%s692] sm:$0xff]
  %694 = vmatprep.subr.mxu0 0.0
  %695 = vmatpush1.msra.mxu0 0.0
  %696 = vmatprep.subr.mxu0 0.0
  %697 = vmatpush1.msra.mxu0 0.0
  %698 = vmatprep.subr.mxu0 0.0
  %699 = vmatpush1.msra.mxu0 0.0
  %700 = vmatprep.subr.mxu0 0.0
  %701 = vmatpush1.msra.mxu0 0.0
  %702 = vmatprep.subr.mxu0 0.0
  %703 = vmatpush1.msra.mxu0 0.0
  %704 = vmatprep.subr.mxu0 0.0
  %705 = vmatpush1.msra.mxu0 0.0
  %706 = vmatprep.subr.mxu0 0.0
  %707 = vmatpush1.msra.mxu0 0.0
  %708 = vmatprep.subr.mxu0 0.0
  %709 = vmatpush1.msra.mxu0 0.0
  %710 = vmatprep.subr.mxu0 0.0
  %711 = vmatpush1.msra.mxu0 0.0
  %712 = vmatprep.subr.mxu0 0.0
  %713 = vmatpush1.msra.mxu0 0.0
  %714 = vmatprep.subr.mxu0 0.0
  %715 = vmatpush1.msra.mxu0 0.0
  %716 = vmatprep.subr.mxu0 0.0
  %717 = vmatpush1.msra.mxu0 0.0
  %718 = vmatprep.subr.mxu0 0.0
  %719 = vmatpush1.msra.mxu0 %v40
  %720 = vmatprep.subr.mxu0 0.0
  %721 = vmatpush1.msra.mxu0 %v39
  %722 = vmatprep.subr.mxu0 0.0
  %723 = vmatpush1.msra.mxu0 %v38
  %724 = vmatprep.subr.mxu0 0.0
  %725 = vmatpush1.msra.mxu0 %v37
  %726 = vmatprep.subr.mxu0 0.0
  %727 = vmatpush2.msra.mxu0 0.0
  %728 = vmatprep.subr.mxu0 0.0
  %729 = vmatpush2.msra.mxu0 0.0
  %730 = vmatprep.subr.mxu0 0.0
  %731 = vmatpush2.msra.mxu0 0.0
  %732 = vmatprep.subr.mxu0 0.0
  %733 = vmatpush2.msra.mxu0 0.0
  %734 = vmatprep.subr.mxu0 0.0
  %735 = vmatpush2.msra.mxu0 0.0
  %736 = vmatprep.subr.mxu0 0.0
  %737 = vmatpush2.msra.mxu0 0.0
  %738 = vmatprep.subr.mxu0 0.0
  %739 = vmatpush2.msra.mxu0 0.0
  %740 = vmatprep.subr.mxu0 0.0
  %741 = vmatpush2.msra.mxu0 0.0
  %742 = vmatprep.subr.mxu0 0.0
  %743 = vmatpush2.msra.mxu0 0.0
  %744 = vmatprep.subr.mxu0 0.0
  %745 = vmatpush2.msra.mxu0 0.0
  %746 = vmatprep.subr.mxu0 0.0
  %747 = vmatpush2.msra.mxu0 0.0
  %748 = vmatprep.subr.mxu0 0.0
  %749 = vmatpush2.msra.mxu0 0.0
  %750 = vmatprep.subr.mxu0 0.0
  %751 = vmatpush2.msra.mxu0 0.0
  %752 = vmatprep.subr.mxu0 0.0
  %753 = vmatpush2.msra.mxu0 0.0
  %754 = vmatprep.subr.mxu0 0.0
  %755 = vmatpush2.msra.mxu0 0.0
  %756 = vmatprep.subr.mxu0 0.0
  %757 = vmatpush2.msra.mxu0 0.0
  %758 = vmatprep.mubr.f32.mxu0 0.0
  %759 = vmatmul.mubr.f32.gmra.mxu0 %v532
  %v760 = vpop.f32.mrf.mxu0
  %v761 = vadd.f32 %v209, %v760
  %v762 = vpop.f32.mrf.mxu0
  %763 = vdwg.mxu0
  %v764 = vmul.f32 %v682, %v761
  %v765 = vadd.f32 %v693, %v764
  %v766 = vtanh.pop %v765
  %v767 = vsub.f32 1.0, %v691
  %v768 = vmul.f32 %v767, %v766
  %v769 = vmul.f32 %v691, %v528
  %v770 = vadd.f32 %v768, %v769
  %s771 = scalar_lea.vmem %s4, 16
  %772 = vst.msk [vmem:[%s771] sm:$0xff] %vm42, %v770
  %v774 = vsel %vm42, %v770, 0
  %776 = vmatprep.subr.mxu0 0.0
  %777 = vmatpush1.msra.mxu0 0.0
  %778 = vmatprep.subr.mxu0 0.0
  %779 = vmatpush1.msra.mxu0 0.0
  %780 = vmatprep.subr.mxu0 0.0
  %781 = vmatpush1.msra.mxu0 0.0
  %782 = vmatprep.subr.mxu0 0.0
  %783 = vmatpush1.msra.mxu0 0.0
  %784 = vmatprep.subr.mxu0 0.0
  %785 = vmatpush1.msra.mxu0 0.0
  %786 = vmatprep.subr.mxu0 0.0
  %787 = vmatpush1.msra.mxu0 0.0
  %788 = vmatprep.subr.mxu0 0.0
  %789 = vmatpush1.msra.mxu0 0.0
  %790 = vmatprep.subr.mxu0 0.0
  %791 = vmatpush1.msra.mxu0 0.0
  %792 = vmatprep.subr.mxu0 0.0
  %793 = vmatpush1.msra.mxu0 0.0
  %794 = vmatprep.subr.mxu0 0.0
  %795 = vmatpush1.msra.mxu0 0.0
  %796 = vmatprep.subr.mxu0 0.0
  %797 = vmatpush1.msra.mxu0 0.0
  %798 = vmatprep.subr.mxu0 0.0
  %799 = vmatpush1.msra.mxu0 0.0
  %800 = vmatprep.subr.mxu0 0.0
  %801 = vmatpush1.msra.mxu0 %v30
  %802 = vmatprep.subr.mxu0 0.0
  %803 = vmatpush1.msra.mxu0 %v29
  %804 = vmatprep.subr.mxu0 0.0
  %805 = vmatpush1.msra.mxu0 %v28
  %806 = vmatprep.subr.mxu0 0.0
  %807 = vmatpush1.msra.mxu0 %v27
  %808 = vmatprep.subr.mxu0 0.0
  %809 = vmatpush2.msra.mxu0 0.0
  %810 = vmatprep.subr.mxu0 0.0
  %811 = vmatpush2.msra.mxu0 0.0
  %812 = vmatprep.subr.mxu0 0.0
  %813 = vmatpush2.msra.mxu0 0.0
  %814 = vmatprep.subr.mxu0 0.0
  %815 = vmatpush2.msra.mxu0 0.0
  %816 = vmatprep.subr.mxu0 0.0
  %817 = vmatpush2.msra.mxu0 0.0
  %818 = vmatprep.subr.mxu0 0.0
  %819 = vmatpush2.msra.mxu0 0.0
  %820 = vmatprep.subr.mxu0 0.0
  %821 = vmatpush2.msra.mxu0 0.0
  %822 = vmatprep.subr.mxu0 0.0
  %823 = vmatpush2.msra.mxu0 0.0
  %824 = vmatprep.subr.mxu0 0.0
  %825 = vmatpush2.msra.mxu0 0.0
  %826 = vmatprep.subr.mxu0 0.0
  %827 = vmatpush2.msra.mxu0 0.0
  %828 = vmatprep.subr.mxu0 0.0
  %829 = vmatpush2.msra.mxu0 0.0
  %830 = vmatprep.subr.mxu0 0.0
  %831 = vmatpush2.msra.mxu0 0.0
  %832 = vmatprep.subr.mxu0 0.0
  %833 = vmatpush2.msra.mxu0 0.0
  %834 = vmatprep.subr.mxu0 0.0
  %835 = vmatpush2.msra.mxu0 0.0
  %836 = vmatprep.subr.mxu0 0.0
  %837 = vmatpush2.msra.mxu0 0.0
  %838 = vmatprep.subr.mxu0 0.0
  %839 = vmatpush2.msra.mxu0 0.0
  %840 = vmatprep.mubr.f32.mxu0 0.0
  %841 = vmatmul.mubr.f32.gmra.mxu0 %v774
  %v842 = vpop.f32.mrf.mxu0
  %v843 = vadd.f32 0.0, %v842
  %v844 = vpop.f32.mrf.mxu0
  %845 = vdwg.mxu0
  %846 = vmatprep.subr.mxu0 0.0
  %847 = vmatpush1.msra.mxu0 0.0
  %848 = vmatprep.subr.mxu0 0.0
  %849 = vmatpush1.msra.mxu0 0.0
  %850 = vmatprep.subr.mxu0 0.0
  %851 = vmatpush1.msra.mxu0 0.0
  %852 = vmatprep.subr.mxu0 0.0
  %853 = vmatpush1.msra.mxu0 0.0
  %854 = vmatprep.subr.mxu0 0.0
  %855 = vmatpush1.msra.mxu0 0.0
  %856 = vmatprep.subr.mxu0 0.0
  %857 = vmatpush1.msra.mxu0 0.0
  %858 = vmatprep.subr.mxu0 0.0
  %859 = vmatpush1.msra.mxu0 0.0
  %860 = vmatprep.subr.mxu0 0.0
  %861 = vmatpush1.msra.mxu0 0.0
  %862 = vmatprep.subr.mxu0 0.0
  %863 = vmatpush1.msra.mxu0 0.0
  %864 = vmatprep.subr.mxu0 0.0
  %865 = vmatpush1.msra.mxu0 0.0
  %866 = vmatprep.subr.mxu0 0.0
  %867 = vmatpush1.msra.mxu0 0.0
  %868 = vmatprep.subr.mxu0 0.0
  %869 = vmatpush1.msra.mxu0 0.0
  %870 = vmatprep.subr.mxu0 0.0
  %871 = vmatpush1.msra.mxu0 %v35
  %872 = vmatprep.subr.mxu0 0.0
  %873 = vmatpush1.msra.mxu0 %v34
  %874 = vmatprep.subr.mxu0 0.0
  %875 = vmatpush1.msra.mxu0 %v33
  %876 = vmatprep.subr.mxu0 0.0
  %877 = vmatpush1.msra.mxu0 %v32
  %878 = vmatprep.subr.mxu0 0.0
  %879 = vmatpush2.msra.mxu0 0.0
  %880 = vmatprep.subr.mxu0 0.0
  %881 = vmatpush2.msra.mxu0 0.0
  %882 = vmatprep.subr.mxu0 0.0
  %883 = vmatpush2.msra.mxu0 0.0
  %884 = vmatprep.subr.mxu0 0.0
  %885 = vmatpush2.msra.mxu0 0.0
  %886 = vmatprep.subr.mxu0 0.0
  %887 = vmatpush2.msra.mxu0 0.0
  %888 = vmatprep.subr.mxu0 0.0
  %889 = vmatpush2.msra.mxu0 0.0
  %890 = vmatprep.subr.mxu0 0.0
  %891 = vmatpush2.msra.mxu0 0.0
  %892 = vmatprep.subr.mxu0 0.0
  %893 = vmatpush2.msra.mxu0 0.0
  %894 = vmatprep.subr.mxu0 0.0
  %895 = vmatpush2.msra.mxu0 0.0
  %896 = vmatprep.subr.mxu0 0.0
  %897 = vmatpush2.msra.mxu0 0.0
  %898 = vmatprep.subr.mxu0 0.0
  %899 = vmatpush2.msra.mxu0 0.0
  %900 = vmatprep.subr.mxu0 0.0
  %901 = vmatpush2.msra.mxu0 0.0
  %902 = vmatprep.subr.mxu0 0.0
  %903 = vmatpush2.msra.mxu0 0.0
  %904 = vmatprep.subr.mxu0 0.0
  %905 = vmatpush2.msra.mxu0 0.0
  %906 = vmatprep.subr.mxu0 0.0
  %907 = vmatpush2.msra.mxu0 0.0
  %908 = vmatprep.subr.mxu0 0.0
  %909 = vmatpush2.msra.mxu0 0.0
  %910 = vmatprep.mubr.f32.mxu0 0.0
  %911 = vmatmul.mubr.f32.gmra.mxu0 %v774
  %v912 = vpop.f32.mrf.mxu0
  %v913 = vadd.f32 0.0, %v912
  %v914 = vpop.f32.mrf.mxu0
  %915 = vdwg.mxu0
  %s916 = scalar_lea.vmem %s0, 24
  %v917 = vld [vmem:[%s916] sm:$0xff]
  %v918 = vadd.f32 %v917, %v843
  %v919 = vxor.u32 %v918, 2147483648
  %v920 = vmul.f32 %v919, 1.442695
  %v921 = vpow.pop %v920
  %v922 = vadd.f32 %v921, 1.0
  %v923 = vrcp.pop %v922
  %v924 = vmul.f32 1.0, %v923
  %s925 = scalar_lea.vmem %s0, 88
  %v926 = vld [vmem:[%s925] sm:$0xff]
  %v927 = vadd.f32 %v926, %v913
  %v928 = vxor.u32 %v927, 2147483648
  %v929 = vmul.f32 %v928, 1.442695
  %v930 = vpow.pop %v929
  %v931 = vadd.f32 %v930, 1.0
  %v932 = vrcp.pop %v931
  %v933 = vmul.f32 1.0, %v932
  %s934 = scalar_lea.vmem %s0, 152
  %v935 = vld [vmem:[%s934] sm:$0xff]
  %936 = vmatprep.subr.mxu0 0.0
  %937 = vmatpush1.msra.mxu0 0.0
  %938 = vmatprep.subr.mxu0 0.0
  %939 = vmatpush1.msra.mxu0 0.0
  %940 = vmatprep.subr.mxu0 0.0
  %941 = vmatpush1.msra.mxu0 0.0
  %942 = vmatprep.subr.mxu0 0.0
  %943 = vmatpush1.msra.mxu0 0.0
  %944 = vmatprep.subr.mxu0 0.0
  %945 = vmatpush1.msra.mxu0 0.0
  %946 = vmatprep.subr.mxu0 0.0
  %947 = vmatpush1.msra.mxu0 0.0
  %948 = vmatprep.subr.mxu0 0.0
  %949 = vmatpush1.msra.mxu0 0.0
  %950 = vmatprep.subr.mxu0 0.0
  %951 = vmatpush1.msra.mxu0 0.0
  %952 = vmatprep.subr.mxu0 0.0
  %953 = vmatpush1.msra.mxu0 0.0
  %954 = vmatprep.subr.mxu0 0.0
  %955 = vmatpush1.msra.mxu0 0.0
  %956 = vmatprep.subr.mxu0 0.0
  %957 = vmatpush1.msra.mxu0 0.0
  %958 = vmatprep.subr.mxu0 0.0
  %959 = vmatpush1.msra.mxu0 0.0
  %960 = vmatprep.subr.mxu0 0.0
  %961 = vmatpush1.msra.mxu0 %v40
  %962 = vmatprep.subr.mxu0 0.0
  %963 = vmatpush1.msra.mxu0 %v39
  %964 = vmatprep.subr.mxu0 0.0
  %965 = vmatpush1.msra.mxu0 %v38
  %966 = vmatprep.subr.mxu0 0.0
  %967 = vmatpush1.msra.mxu0 %v37
  %968 = vmatprep.subr.mxu0 0.0
  %969 = vmatpush2.msra.mxu0 0.0
  %970 = vmatprep.subr.mxu0 0.0
  %971 = vmatpush2.msra.mxu0 0.0
  %972 = vmatprep.subr.mxu0 0.0
  %973 = vmatpush2.msra.mxu0 0.0
  %974 = vmatprep.subr.mxu0 0.0
  %975 = vmatpush2.msra.mxu0 0.0
  %976 = vmatprep.subr.mxu0 0.0
  %977 = vmatpush2.msra.mxu0 0.0
  %978 = vmatprep.subr.mxu0 0.0
  %979 = vmatpush2.msra.mxu0 0.0
  %980 = vmatprep.subr.mxu0 0.0
  %981 = vmatpush2.msra.mxu0 0.0
  %982 = vmatprep.subr.mxu0 0.0
  %983 = vmatpush2.msra.mxu0 0.0
  %984 = vmatprep.subr.mxu0 0.0
  %985 = vmatpush2.msra.mxu0 0.0
  %986 = vmatprep.subr.mxu0 0.0
  %987 = vmatpush2.msra.mxu0 0.0
  %988 = vmatprep.subr.mxu0 0.0
  %989 = vmatpush2.msra.mxu0 0.0
  %990 = vmatprep.subr.mxu0 0.0
  %991 = vmatpush2.msra.mxu0 0.0
  %992 = vmatprep.subr.mxu0 0.0
  %993 = vmatpush2.msra.mxu0 0.0
  %994 = vmatprep.subr.mxu0 0.0
  %995 = vmatpush2.msra.mxu0 0.0
  %996 = vmatprep.subr.mxu0 0.0
  %997 = vmatpush2.msra.mxu0 0.0
  %998 = vmatprep.subr.mxu0 0.0
  %999 = vmatpush2.msra.mxu0 0.0
  %1000 = vmatprep.mubr.f32.mxu0 0.0
  %1001 = vmatmul.mubr.f32.gmra.mxu0 %v774
  %v1002 = vpop.f32.mrf.mxu0
  %v1003 = vadd.f32 %v209, %v1002
  %v1004 = vpop.f32.mrf.mxu0
  %1005 = vdwg.mxu0
  %v1006 = vmul.f32 %v924, %v1003
  %v1007 = vadd.f32 %v935, %v1006
  %v1008 = vtanh.pop %v1007
  %v1009 = vsub.f32 1.0, %v933
  %v1010 = vmul.f32 %v1009, %v1008
  %v1011 = vmul.f32 %v933, %v770
  %v1012 = vadd.f32 %v1010, %v1011
  %s1013 = scalar_lea.vmem %s4, 24
  %1014 = vst.msk [vmem:[%s1013] sm:$0xff] %vm42, %v1012
  %v1016 = vsel %vm42, %v1012, 0
  %1018 = vmatprep.subr.mxu0 0.0
  %1019 = vmatpush1.msra.mxu0 0.0
  %1020 = vmatprep.subr.mxu0 0.0
  %1021 = vmatpush1.msra.mxu0 0.0
  %1022 = vmatprep.subr.mxu0 0.0
  %1023 = vmatpush1.msra.mxu0 0.0
  %1024 = vmatprep.subr.mxu0 0.0
  %1025 = vmatpush1.msra.mxu0 0.0
  %1026 = vmatprep.subr.mxu0 0.0
  %1027 = vmatpush1.msra.mxu0 0.0
  %1028 = vmatprep.subr.mxu0 0.0
  %1029 = vmatpush1.msra.mxu0 0.0
  %1030 = vmatprep.subr.mxu0 0.0
  %1031 = vmatpush1.msra.mxu0 0.0
  %1032 = vmatprep.subr.mxu0 0.0
  %1033 = vmatpush1.msra.mxu0 0.0
  %1034 = vmatprep.subr.mxu0 0.0
  %1035 = vmatpush1.msra.mxu0 0.0
  %1036 = vmatprep.subr.mxu0 0.0
  %1037 = vmatpush1.msra.mxu0 0.0
  %1038 = vmatprep.subr.mxu0 0.0
  %1039 = vmatpush1.msra.mxu0 0.0
  %1040 = vmatprep.subr.mxu0 0.0
  %1041 = vmatpush1.msra.mxu0 0.0
  %1042 = vmatprep.subr.mxu0 0.0
  %1043 = vmatpush1.msra.mxu0 %v30
  %1044 = vmatprep.subr.mxu0 0.0
  %1045 = vmatpush1.msra.mxu0 %v29
  %1046 = vmatprep.subr.mxu0 0.0
  %1047 = vmatpush1.msra.mxu0 %v28
  %1048 = vmatprep.subr.mxu0 0.0
  %1049 = vmatpush1.msra.mxu0 %v27
  %1050 = vmatprep.subr.mxu0 0.0
  %1051 = vmatpush2.msra.mxu0 0.0
  %1052 = vmatprep.subr.mxu0 0.0
  %1053 = vmatpush2.msra.mxu0 0.0
  %1054 = vmatprep.subr.mxu0 0.0
  %1055 = vmatpush2.msra.mxu0 0.0
  %1056 = vmatprep.subr.mxu0 0.0
  %1057 = vmatpush2.msra.mxu0 0.0
  %1058 = vmatprep.subr.mxu0 0.0
  %1059 = vmatpush2.msra.mxu0 0.0
  %1060 = vmatprep.subr.mxu0 0.0
  %1061 = vmatpush2.msra.mxu0 0.0
  %1062 = vmatprep.subr.mxu0 0.0
  %1063 = vmatpush2.msra.mxu0 0.0
  %1064 = vmatprep.subr.mxu0 0.0
  %1065 = vmatpush2.msra.mxu0 0.0
  %1066 = vmatprep.subr.mxu0 0.0
  %1067 = vmatpush2.msra.mxu0 0.0
  %1068 = vmatprep.subr.mxu0 0.0
  %1069 = vmatpush2.msra.mxu0 0.0
  %1070 = vmatprep.subr.mxu0 0.0
  %1071 = vmatpush2.msra.mxu0 0.0
  %1072 = vmatprep.subr.mxu0 0.0
  %1073 = vmatpush2.msra.mxu0 0.0
  %1074 = vmatprep.subr.mxu0 0.0
  %1075 = vmatpush2.msra.mxu0 0.0
  %1076 = vmatprep.subr.mxu0 0.0
  %1077 = vmatpush2.msra.mxu0 0.0
  %1078 = vmatprep.subr.mxu0 0.0
  %1079 = vmatpush2.msra.mxu0 0.0
  %1080 = vmatprep.subr.mxu0 0.0
  %1081 = vmatpush2.msra.mxu0 0.0
  %1082 = vmatprep.mubr.f32.mxu0 0.0
  %1083 = vmatmul.mubr.f32.gmra.mxu0 %v1016
  %v1084 = vpop.f32.mrf.mxu0
  %v1085 = vadd.f32 0.0, %v1084
  %v1086 = vpop.f32.mrf.mxu0
  %1087 = vdwg.mxu0
  %1088 = vmatprep.subr.mxu0 0.0
  %1089 = vmatpush1.msra.mxu0 0.0
  %1090 = vmatprep.subr.mxu0 0.0
  %1091 = vmatpush1.msra.mxu0 0.0
  %1092 = vmatprep.subr.mxu0 0.0
  %1093 = vmatpush1.msra.mxu0 0.0
  %1094 = vmatprep.subr.mxu0 0.0
  %1095 = vmatpush1.msra.mxu0 0.0
  %1096 = vmatprep.subr.mxu0 0.0
  %1097 = vmatpush1.msra.mxu0 0.0
  %1098 = vmatprep.subr.mxu0 0.0
  %1099 = vmatpush1.msra.mxu0 0.0
  %1100 = vmatprep.subr.mxu0 0.0
  %1101 = vmatpush1.msra.mxu0 0.0
  %1102 = vmatprep.subr.mxu0 0.0
  %1103 = vmatpush1.msra.mxu0 0.0
  %1104 = vmatprep.subr.mxu0 0.0
  %1105 = vmatpush1.msra.mxu0 0.0
  %1106 = vmatprep.subr.mxu0 0.0
  %1107 = vmatpush1.msra.mxu0 0.0
  %1108 = vmatprep.subr.mxu0 0.0
  %1109 = vmatpush1.msra.mxu0 0.0
  %1110 = vmatprep.subr.mxu0 0.0
  %1111 = vmatpush1.msra.mxu0 0.0
  %1112 = vmatprep.subr.mxu0 0.0
  %1113 = vmatpush1.msra.mxu0 %v35
  %1114 = vmatprep.subr.mxu0 0.0
  %1115 = vmatpush1.msra.mxu0 %v34
  %1116 = vmatprep.subr.mxu0 0.0
  %1117 = vmatpush1.msra.mxu0 %v33
  %1118 = vmatprep.subr.mxu0 0.0
  %1119 = vmatpush1.msra.mxu0 %v32
  %1120 = vmatprep.subr.mxu0 0.0
  %1121 = vmatpush2.msra.mxu0 0.0
  %1122 = vmatprep.subr.mxu0 0.0
  %1123 = vmatpush2.msra.mxu0 0.0
  %1124 = vmatprep.subr.mxu0 0.0
  %1125 = vmatpush2.msra.mxu0 0.0
  %1126 = vmatprep.subr.mxu0 0.0
  %1127 = vmatpush2.msra.mxu0 0.0
  %1128 = vmatprep.subr.mxu0 0.0
  %1129 = vmatpush2.msra.mxu0 0.0
  %1130 = vmatprep.subr.mxu0 0.0
  %1131 = vmatpush2.msra.mxu0 0.0
  %1132 = vmatprep.subr.mxu0 0.0
  %1133 = vmatpush2.msra.mxu0 0.0
  %1134 = vmatprep.subr.mxu0 0.0
  %1135 = vmatpush2.msra.mxu0 0.0
  %1136 = vmatprep.subr.mxu0 0.0
  %1137 = vmatpush2.msra.mxu0 0.0
  %1138 = vmatprep.subr.mxu0 0.0
  %1139 = vmatpush2.msra.mxu0 0.0
  %1140 = vmatprep.subr.mxu0 0.0
  %1141 = vmatpush2.msra.mxu0 0.0
  %1142 = vmatprep.subr.mxu0 0.0
  %1143 = vmatpush2.msra.mxu0 0.0
  %1144 = vmatprep.subr.mxu0 0.0
  %1145 = vmatpush2.msra.mxu0 0.0
  %1146 = vmatprep.subr.mxu0 0.0
  %1147 = vmatpush2.msra.mxu0 0.0
  %1148 = vmatprep.subr.mxu0 0.0
  %1149 = vmatpush2.msra.mxu0 0.0
  %1150 = vmatprep.subr.mxu0 0.0
  %1151 = vmatpush2.msra.mxu0 0.0
  %1152 = vmatprep.mubr.f32.mxu0 0.0
  %1153 = vmatmul.mubr.f32.gmra.mxu0 %v1016
  %v1154 = vpop.f32.mrf.mxu0
  %v1155 = vadd.f32 0.0, %v1154
  %v1156 = vpop.f32.mrf.mxu0
  %1157 = vdwg.mxu0
  %s1158 = scalar_lea.vmem %s0, 32
  %v1159 = vld [vmem:[%s1158] sm:$0xff]
  %v1160 = vadd.f32 %v1159, %v1085
  %v1161 = vxor.u32 %v1160, 2147483648
  %v1162 = vmul.f32 %v1161, 1.442695
  %v1163 = vpow.pop %v1162
  %v1164 = vadd.f32 %v1163, 1.0
  %v1165 = vrcp.pop %v1164
  %v1166 = vmul.f32 1.0, %v1165
  %s1167 = scalar_lea.vmem %s0, 96
  %v1168 = vld [vmem:[%s1167] sm:$0xff]
  %v1169 = vadd.f32 %v1168, %v1155
  %v1170 = vxor.u32 %v1169, 2147483648
  %v1171 = vmul.f32 %v1170, 1.442695
  %v1172 = vpow.pop %v1171
  %v1173 = vadd.f32 %v1172, 1.0
  %v1174 = vrcp.pop %v1173
  %v1175 = vmul.f32 1.0, %v1174
  %s1176 = scalar_lea.vmem %s0, 160
  %v1177 = vld [vmem:[%s1176] sm:$0xff]
  %1178 = vmatprep.subr.mxu0 0.0
  %1179 = vmatpush1.msra.mxu0 0.0
  %1180 = vmatprep.subr.mxu0 0.0
  %1181 = vmatpush1.msra.mxu0 0.0
  %1182 = vmatprep.subr.mxu0 0.0
  %1183 = vmatpush1.msra.mxu0 0.0
  %1184 = vmatprep.subr.mxu0 0.0
  %1185 = vmatpush1.msra.mxu0 0.0
  %1186 = vmatprep.subr.mxu0 0.0
  %1187 = vmatpush1.msra.mxu0 0.0
  %1188 = vmatprep.subr.mxu0 0.0
  %1189 = vmatpush1.msra.mxu0 0.0
  %1190 = vmatprep.subr.mxu0 0.0
  %1191 = vmatpush1.msra.mxu0 0.0
  %1192 = vmatprep.subr.mxu0 0.0
  %1193 = vmatpush1.msra.mxu0 0.0
  %1194 = vmatprep.subr.mxu0 0.0
  %1195 = vmatpush1.msra.mxu0 0.0
  %1196 = vmatprep.subr.mxu0 0.0
  %1197 = vmatpush1.msra.mxu0 0.0
  %1198 = vmatprep.subr.mxu0 0.0
  %1199 = vmatpush1.msra.mxu0 0.0
  %1200 = vmatprep.subr.mxu0 0.0
  %1201 = vmatpush1.msra.mxu0 0.0
  %1202 = vmatprep.subr.mxu0 0.0
  %1203 = vmatpush1.msra.mxu0 %v40
  %1204 = vmatprep.subr.mxu0 0.0
  %1205 = vmatpush1.msra.mxu0 %v39
  %1206 = vmatprep.subr.mxu0 0.0
  %1207 = vmatpush1.msra.mxu0 %v38
  %1208 = vmatprep.subr.mxu0 0.0
  %1209 = vmatpush1.msra.mxu0 %v37
  %1210 = vmatprep.subr.mxu0 0.0
  %1211 = vmatpush2.msra.mxu0 0.0
  %1212 = vmatprep.subr.mxu0 0.0
  %1213 = vmatpush2.msra.mxu0 0.0
  %1214 = vmatprep.subr.mxu0 0.0
  %1215 = vmatpush2.msra.mxu0 0.0
  %1216 = vmatprep.subr.mxu0 0.0
  %1217 = vmatpush2.msra.mxu0 0.0
  %1218 = vmatprep.subr.mxu0 0.0
  %1219 = vmatpush2.msra.mxu0 0.0
  %1220 = vmatprep.subr.mxu0 0.0
  %1221 = vmatpush2.msra.mxu0 0.0
  %1222 = vmatprep.subr.mxu0 0.0
  %1223 = vmatpush2.msra.mxu0 0.0
  %1224 = vmatprep.subr.mxu0 0.0
  %1225 = vmatpush2.msra.mxu0 0.0
  %1226 = vmatprep.subr.mxu0 0.0
  %1227 = vmatpush2.msra.mxu0 0.0
  %1228 = vmatprep.subr.mxu0 0.0
  %1229 = vmatpush2.msra.mxu0 0.0
  %1230 = vmatprep.subr.mxu0 0.0
  %1231 = vmatpush2.msra.mxu0 0.0
  %1232 = vmatprep.subr.mxu0 0.0
  %1233 = vmatpush2.msra.mxu0 0.0
  %1234 = vmatprep.subr.mxu0 0.0
  %1235 = vmatpush2.msra.mxu0 0.0
  %1236 = vmatprep.subr.mxu0 0.0
  %1237 = vmatpush2.msra.mxu0 0.0
  %1238 = vmatprep.subr.mxu0 0.0
  %1239 = vmatpush2.msra.mxu0 0.0
  %1240 = vmatprep.subr.mxu0 0.0
  %1241 = vmatpush2.msra.mxu0 0.0
  %1242 = vmatprep.mubr.f32.mxu0 0.0
  %1243 = vmatmul.mubr.f32.gmra.mxu0 %v1016
  %v1244 = vpop.f32.mrf.mxu0
  %v1245 = vadd.f32 %v209, %v1244
  %v1246 = vpop.f32.mrf.mxu0
  %1247 = vdwg.mxu0
  %v1248 = vmul.f32 %v1166, %v1245
  %v1249 = vadd.f32 %v1177, %v1248
  %v1250 = vtanh.pop %v1249
  %v1251 = vsub.f32 1.0, %v1175
  %v1252 = vmul.f32 %v1251, %v1250
  %v1253 = vmul.f32 %v1175, %v1012
  %v1254 = vadd.f32 %v1252, %v1253
  %s1255 = scalar_lea.vmem %s4, 32
  %1256 = vst.msk [vmem:[%s1255] sm:$0xff] %vm42, %v1254
  %v1258 = vsel %vm42, %v1254, 0
  %1260 = vmatprep.subr.mxu0 0.0
  %1261 = vmatpush1.msra.mxu0 0.0
  %1262 = vmatprep.subr.mxu0 0.0
  %1263 = vmatpush1.msra.mxu0 0.0
  %1264 = vmatprep.subr.mxu0 0.0
  %1265 = vmatpush1.msra.mxu0 0.0
  %1266 = vmatprep.subr.mxu0 0.0
  %1267 = vmatpush1.msra.mxu0 0.0
  %1268 = vmatprep.subr.mxu0 0.0
  %1269 = vmatpush1.msra.mxu0 0.0
  %1270 = vmatprep.subr.mxu0 0.0
  %1271 = vmatpush1.msra.mxu0 0.0
  %1272 = vmatprep.subr.mxu0 0.0
  %1273 = vmatpush1.msra.mxu0 0.0
  %1274 = vmatprep.subr.mxu0 0.0
  %1275 = vmatpush1.msra.mxu0 0.0
  %1276 = vmatprep.subr.mxu0 0.0
  %1277 = vmatpush1.msra.mxu0 0.0
  %1278 = vmatprep.subr.mxu0 0.0
  %1279 = vmatpush1.msra.mxu0 0.0
  %1280 = vmatprep.subr.mxu0 0.0
  %1281 = vmatpush1.msra.mxu0 0.0
  %1282 = vmatprep.subr.mxu0 0.0
  %1283 = vmatpush1.msra.mxu0 0.0
  %1284 = vmatprep.subr.mxu0 0.0
  %1285 = vmatpush1.msra.mxu0 %v30
  %1286 = vmatprep.subr.mxu0 0.0
  %1287 = vmatpush1.msra.mxu0 %v29
  %1288 = vmatprep.subr.mxu0 0.0
  %1289 = vmatpush1.msra.mxu0 %v28
  %1290 = vmatprep.subr.mxu0 0.0
  %1291 = vmatpush1.msra.mxu0 %v27
  %1292 = vmatprep.subr.mxu0 0.0
  %1293 = vmatpush2.msra.mxu0 0.0
  %1294 = vmatprep.subr.mxu0 0.0
  %1295 = vmatpush2.msra.mxu0 0.0
  %1296 = vmatprep.subr.mxu0 0.0
  %1297 = vmatpush2.msra.mxu0 0.0
  %1298 = vmatprep.subr.mxu0 0.0
  %1299 = vmatpush2.msra.mxu0 0.0
  %1300 = vmatprep.subr.mxu0 0.0
  %1301 = vmatpush2.msra.mxu0 0.0
  %1302 = vmatprep.subr.mxu0 0.0
  %1303 = vmatpush2.msra.mxu0 0.0
  %1304 = vmatprep.subr.mxu0 0.0
  %1305 = vmatpush2.msra.mxu0 0.0
  %1306 = vmatprep.subr.mxu0 0.0
  %1307 = vmatpush2.msra.mxu0 0.0
  %1308 = vmatprep.subr.mxu0 0.0
  %1309 = vmatpush2.msra.mxu0 0.0
  %1310 = vmatprep.subr.mxu0 0.0
  %1311 = vmatpush2.msra.mxu0 0.0
  %1312 = vmatprep.subr.mxu0 0.0
  %1313 = vmatpush2.msra.mxu0 0.0
  %1314 = vmatprep.subr.mxu0 0.0
  %1315 = vmatpush2.msra.mxu0 0.0
  %1316 = vmatprep.subr.mxu0 0.0
  %1317 = vmatpush2.msra.mxu0 0.0
  %1318 = vmatprep.subr.mxu0 0.0
  %1319 = vmatpush2.msra.mxu0 0.0
  %1320 = vmatprep.subr.mxu0 0.0
  %1321 = vmatpush2.msra.mxu0 0.0
  %1322 = vmatprep.subr.mxu0 0.0
  %1323 = vmatpush2.msra.mxu0 0.0
  %1324 = vmatprep.mubr.f32.mxu0 0.0
  %1325 = vmatmul.mubr.f32.gmra.mxu0 %v1258
  %v1326 = vpop.f32.mrf.mxu0
  %v1327 = vadd.f32 0.0, %v1326
  %v1328 = vpop.f32.mrf.mxu0
  %1329 = vdwg.mxu0
  %1330 = vmatprep.subr.mxu0 0.0
  %1331 = vmatpush1.msra.mxu0 0.0
  %1332 = vmatprep.subr.mxu0 0.0
  %1333 = vmatpush1.msra.mxu0 0.0
  %1334 = vmatprep.subr.mxu0 0.0
  %1335 = vmatpush1.msra.mxu0 0.0
  %1336 = vmatprep.subr.mxu0 0.0
  %1337 = vmatpush1.msra.mxu0 0.0
  %1338 = vmatprep.subr.mxu0 0.0
  %1339 = vmatpush1.msra.mxu0 0.0
  %1340 = vmatprep.subr.mxu0 0.0
  %1341 = vmatpush1.msra.mxu0 0.0
  %1342 = vmatprep.subr.mxu0 0.0
  %1343 = vmatpush1.msra.mxu0 0.0
  %1344 = vmatprep.subr.mxu0 0.0
  %1345 = vmatpush1.msra.mxu0 0.0
  %1346 = vmatprep.subr.mxu0 0.0
  %1347 = vmatpush1.msra.mxu0 0.0
  %1348 = vmatprep.subr.mxu0 0.0
  %1349 = vmatpush1.msra.mxu0 0.0
  %1350 = vmatprep.subr.mxu0 0.0
  %1351 = vmatpush1.msra.mxu0 0.0
  %1352 = vmatprep.subr.mxu0 0.0
  %1353 = vmatpush1.msra.mxu0 0.0
  %1354 = vmatprep.subr.mxu0 0.0
  %1355 = vmatpush1.msra.mxu0 %v35
  %1356 = vmatprep.subr.mxu0 0.0
  %1357 = vmatpush1.msra.mxu0 %v34
  %1358 = vmatprep.subr.mxu0 0.0
  %1359 = vmatpush1.msra.mxu0 %v33
  %1360 = vmatprep.subr.mxu0 0.0
  %1361 = vmatpush1.msra.mxu0 %v32
  %1362 = vmatprep.subr.mxu0 0.0
  %1363 = vmatpush2.msra.mxu0 0.0
  %1364 = vmatprep.subr.mxu0 0.0
  %1365 = vmatpush2.msra.mxu0 0.0
  %1366 = vmatprep.subr.mxu0 0.0
  %1367 = vmatpush2.msra.mxu0 0.0
  %1368 = vmatprep.subr.mxu0 0.0
  %1369 = vmatpush2.msra.mxu0 0.0
  %1370 = vmatprep.subr.mxu0 0.0
  %1371 = vmatpush2.msra.mxu0 0.0
  %1372 = vmatprep.subr.mxu0 0.0
  %1373 = vmatpush2.msra.mxu0 0.0
  %1374 = vmatprep.subr.mxu0 0.0
  %1375 = vmatpush2.msra.mxu0 0.0
  %1376 = vmatprep.subr.mxu0 0.0
  %1377 = vmatpush2.msra.mxu0 0.0
  %1378 = vmatprep.subr.mxu0 0.0
  %1379 = vmatpush2.msra.mxu0 0.0
  %1380 = vmatprep.subr.mxu0 0.0
  %1381 = vmatpush2.msra.mxu0 0.0
  %1382 = vmatprep.subr.mxu0 0.0
  %1383 = vmatpush2.msra.mxu0 0.0
  %1384 = vmatprep.subr.mxu0 0.0
  %1385 = vmatpush2.msra.mxu0 0.0
  %1386 = vmatprep.subr.mxu0 0.0
  %1387 = vmatpush2.msra.mxu0 0.0
  %1388 = vmatprep.subr.mxu0 0.0
  %1389 = vmatpush2.msra.mxu0 0.0
  %1390 = vmatprep.subr.mxu0 0.0
  %1391 = vmatpush2.msra.mxu0 0.0
  %1392 = vmatprep.subr.mxu0 0.0
  %1393 = vmatpush2.msra.mxu0 0.0
  %1394 = vmatprep.mubr.f32.mxu0 0.0
  %1395 = vmatmul.mubr.f32.gmra.mxu0 %v1258
  %v1396 = vpop.f32.mrf.mxu0
  %v1397 = vadd.f32 0.0, %v1396
  %v1398 = vpop.f32.mrf.mxu0
  %1399 = vdwg.mxu0
  %s1400 = scalar_lea.vmem %s0, 40
  %v1401 = vld [vmem:[%s1400] sm:$0xff]
  %v1402 = vadd.f32 %v1401, %v1327
  %v1403 = vxor.u32 %v1402, 2147483648
  %v1404 = vmul.f32 %v1403, 1.442695
  %v1405 = vpow.pop %v1404
  %v1406 = vadd.f32 %v1405, 1.0
  %v1407 = vrcp.pop %v1406
  %v1408 = vmul.f32 1.0, %v1407
  %s1409 = scalar_lea.vmem %s0, 104
  %v1410 = vld [vmem:[%s1409] sm:$0xff]
  %v1411 = vadd.f32 %v1410, %v1397
  %v1412 = vxor.u32 %v1411, 2147483648
  %v1413 = vmul.f32 %v1412, 1.442695
  %v1414 = vpow.pop %v1413
  %v1415 = vadd.f32 %v1414, 1.0
  %v1416 = vrcp.pop %v1415
  %v1417 = vmul.f32 1.0, %v1416
  %s1418 = scalar_lea.vmem %s0, 168
  %v1419 = vld [vmem:[%s1418] sm:$0xff]
  %1420 = vmatprep.subr.mxu0 0.0
  %1421 = vmatpush1.msra.mxu0 0.0
  %1422 = vmatprep.subr.mxu0 0.0
  %1423 = vmatpush1.msra.mxu0 0.0
  %1424 = vmatprep.subr.mxu0 0.0
  %1425 = vmatpush1.msra.mxu0 0.0
  %1426 = vmatprep.subr.mxu0 0.0
  %1427 = vmatpush1.msra.mxu0 0.0
  %1428 = vmatprep.subr.mxu0 0.0
  %1429 = vmatpush1.msra.mxu0 0.0
  %1430 = vmatprep.subr.mxu0 0.0
  %1431 = vmatpush1.msra.mxu0 0.0
  %1432 = vmatprep.subr.mxu0 0.0
  %1433 = vmatpush1.msra.mxu0 0.0
  %1434 = vmatprep.subr.mxu0 0.0
  %1435 = vmatpush1.msra.mxu0 0.0
  %1436 = vmatprep.subr.mxu0 0.0
  %1437 = vmatpush1.msra.mxu0 0.0
  %1438 = vmatprep.subr.mxu0 0.0
  %1439 = vmatpush1.msra.mxu0 0.0
  %1440 = vmatprep.subr.mxu0 0.0
  %1441 = vmatpush1.msra.mxu0 0.0
  %1442 = vmatprep.subr.mxu0 0.0
  %1443 = vmatpush1.msra.mxu0 0.0
  %1444 = vmatprep.subr.mxu0 0.0
  %1445 = vmatpush1.msra.mxu0 %v40
  %1446 = vmatprep.subr.mxu0 0.0
  %1447 = vmatpush1.msra.mxu0 %v39
  %1448 = vmatprep.subr.mxu0 0.0
  %1449 = vmatpush1.msra.mxu0 %v38
  %1450 = vmatprep.subr.mxu0 0.0
  %1451 = vmatpush1.msra.mxu0 %v37
  %1452 = vmatprep.subr.mxu0 0.0
  %1453 = vmatpush2.msra.mxu0 0.0
  %1454 = vmatprep.subr.mxu0 0.0
  %1455 = vmatpush2.msra.mxu0 0.0
  %1456 = vmatprep.subr.mxu0 0.0
  %1457 = vmatpush2.msra.mxu0 0.0
  %1458 = vmatprep.subr.mxu0 0.0
  %1459 = vmatpush2.msra.mxu0 0.0
  %1460 = vmatprep.subr.mxu0 0.0
  %1461 = vmatpush2.msra.mxu0 0.0
  %1462 = vmatprep.subr.mxu0 0.0
  %1463 = vmatpush2.msra.mxu0 0.0
  %1464 = vmatprep.subr.mxu0 0.0
  %1465 = vmatpush2.msra.mxu0 0.0
  %1466 = vmatprep.subr.mxu0 0.0
  %1467 = vmatpush2.msra.mxu0 0.0
  %1468 = vmatprep.subr.mxu0 0.0
  %1469 = vmatpush2.msra.mxu0 0.0
  %1470 = vmatprep.subr.mxu0 0.0
  %1471 = vmatpush2.msra.mxu0 0.0
  %1472 = vmatprep.subr.mxu0 0.0
  %1473 = vmatpush2.msra.mxu0 0.0
  %1474 = vmatprep.subr.mxu0 0.0
  %1475 = vmatpush2.msra.mxu0 0.0
  %1476 = vmatprep.subr.mxu0 0.0
  %1477 = vmatpush2.msra.mxu0 0.0
  %1478 = vmatprep.subr.mxu0 0.0
  %1479 = vmatpush2.msra.mxu0 0.0
  %1480 = vmatprep.subr.mxu0 0.0
  %1481 = vmatpush2.msra.mxu0 0.0
  %1482 = vmatprep.subr.mxu0 0.0
  %1483 = vmatpush2.msra.mxu0 0.0
  %1484 = vmatprep.mubr.f32.mxu0 0.0
  %1485 = vmatmul.mubr.f32.gmra.mxu0 %v1258
  %v1486 = vpop.f32.mrf.mxu0
  %v1487 = vadd.f32 %v209, %v1486
  %v1488 = vpop.f32.mrf.mxu0
  %1489 = vdwg.mxu0
  %v1490 = vmul.f32 %v1408, %v1487
  %v1491 = vadd.f32 %v1419, %v1490
  %v1492 = vtanh.pop %v1491
  %v1493 = vsub.f32 1.0, %v1417
  %v1494 = vmul.f32 %v1493, %v1492
  %v1495 = vmul.f32 %v1417, %v1254
  %v1496 = vadd.f32 %v1494, %v1495
  %s1497 = scalar_lea.vmem %s4, 40
  %1498 = vst.msk [vmem:[%s1497] sm:$0xff] %vm42, %v1496
  %v1500 = vsel %vm42, %v1496, 0
  %1502 = vmatprep.subr.mxu0 0.0
  %1503 = vmatpush1.msra.mxu0 0.0
  %1504 = vmatprep.subr.mxu0 0.0
  %1505 = vmatpush1.msra.mxu0 0.0
  %1506 = vmatprep.subr.mxu0 0.0
  %1507 = vmatpush1.msra.mxu0 0.0
  %1508 = vmatprep.subr.mxu0 0.0
  %1509 = vmatpush1.msra.mxu0 0.0
  %1510 = vmatprep.subr.mxu0 0.0
  %1511 = vmatpush1.msra.mxu0 0.0
  %1512 = vmatprep.subr.mxu0 0.0
  %1513 = vmatpush1.msra.mxu0 0.0
  %1514 = vmatprep.subr.mxu0 0.0
  %1515 = vmatpush1.msra.mxu0 0.0
  %1516 = vmatprep.subr.mxu0 0.0
  %1517 = vmatpush1.msra.mxu0 0.0
  %1518 = vmatprep.subr.mxu0 0.0
  %1519 = vmatpush1.msra.mxu0 0.0
  %1520 = vmatprep.subr.mxu0 0.0
  %1521 = vmatpush1.msra.mxu0 0.0
  %1522 = vmatprep.subr.mxu0 0.0
  %1523 = vmatpush1.msra.mxu0 0.0
  %1524 = vmatprep.subr.mxu0 0.0
  %1525 = vmatpush1.msra.mxu0 0.0
  %1526 = vmatprep.subr.mxu0 0.0
  %1527 = vmatpush1.msra.mxu0 %v30
  %1528 = vmatprep.subr.mxu0 0.0
  %1529 = vmatpush1.msra.mxu0 %v29
  %1530 = vmatprep.subr.mxu0 0.0
  %1531 = vmatpush1.msra.mxu0 %v28
  %1532 = vmatprep.subr.mxu0 0.0
  %1533 = vmatpush1.msra.mxu0 %v27
  %1534 = vmatprep.subr.mxu0 0.0
  %1535 = vmatpush2.msra.mxu0 0.0
  %1536 = vmatprep.subr.mxu0 0.0
  %1537 = vmatpush2.msra.mxu0 0.0
  %1538 = vmatprep.subr.mxu0 0.0
  %1539 = vmatpush2.msra.mxu0 0.0
  %1540 = vmatprep.subr.mxu0 0.0
  %1541 = vmatpush2.msra.mxu0 0.0
  %1542 = vmatprep.subr.mxu0 0.0
  %1543 = vmatpush2.msra.mxu0 0.0
  %1544 = vmatprep.subr.mxu0 0.0
  %1545 = vmatpush2.msra.mxu0 0.0
  %1546 = vmatprep.subr.mxu0 0.0
  %1547 = vmatpush2.msra.mxu0 0.0
  %1548 = vmatprep.subr.mxu0 0.0
  %1549 = vmatpush2.msra.mxu0 0.0
  %1550 = vmatprep.subr.mxu0 0.0
  %1551 = vmatpush2.msra.mxu0 0.0
  %1552 = vmatprep.subr.mxu0 0.0
  %1553 = vmatpush2.msra.mxu0 0.0
  %1554 = vmatprep.subr.mxu0 0.0
  %1555 = vmatpush2.msra.mxu0 0.0
  %1556 = vmatprep.subr.mxu0 0.0
  %1557 = vmatpush2.msra.mxu0 0.0
  %1558 = vmatprep.subr.mxu0 0.0
  %1559 = vmatpush2.msra.mxu0 0.0
  %1560 = vmatprep.subr.mxu0 0.0
  %1561 = vmatpush2.msra.mxu0 0.0
  %1562 = vmatprep.subr.mxu0 0.0
  %1563 = vmatpush2.msra.mxu0 0.0
  %1564 = vmatprep.subr.mxu0 0.0
  %1565 = vmatpush2.msra.mxu0 0.0
  %1566 = vmatprep.mubr.f32.mxu0 0.0
  %1567 = vmatmul.mubr.f32.gmra.mxu0 %v1500
  %v1568 = vpop.f32.mrf.mxu0
  %v1569 = vadd.f32 0.0, %v1568
  %v1570 = vpop.f32.mrf.mxu0
  %1571 = vdwg.mxu0
  %1572 = vmatprep.subr.mxu0 0.0
  %1573 = vmatpush1.msra.mxu0 0.0
  %1574 = vmatprep.subr.mxu0 0.0
  %1575 = vmatpush1.msra.mxu0 0.0
  %1576 = vmatprep.subr.mxu0 0.0
  %1577 = vmatpush1.msra.mxu0 0.0
  %1578 = vmatprep.subr.mxu0 0.0
  %1579 = vmatpush1.msra.mxu0 0.0
  %1580 = vmatprep.subr.mxu0 0.0
  %1581 = vmatpush1.msra.mxu0 0.0
  %1582 = vmatprep.subr.mxu0 0.0
  %1583 = vmatpush1.msra.mxu0 0.0
  %1584 = vmatprep.subr.mxu0 0.0
  %1585 = vmatpush1.msra.mxu0 0.0
  %1586 = vmatprep.subr.mxu0 0.0
  %1587 = vmatpush1.msra.mxu0 0.0
  %1588 = vmatprep.subr.mxu0 0.0
  %1589 = vmatpush1.msra.mxu0 0.0
  %1590 = vmatprep.subr.mxu0 0.0
  %1591 = vmatpush1.msra.mxu0 0.0
  %1592 = vmatprep.subr.mxu0 0.0
  %1593 = vmatpush1.msra.mxu0 0.0
  %1594 = vmatprep.subr.mxu0 0.0
  %1595 = vmatpush1.msra.mxu0 0.0
  %1596 = vmatprep.subr.mxu0 0.0
  %1597 = vmatpush1.msra.mxu0 %v35
  %1598 = vmatprep.subr.mxu0 0.0
  %1599 = vmatpush1.msra.mxu0 %v34
  %1600 = vmatprep.subr.mxu0 0.0
  %1601 = vmatpush1.msra.mxu0 %v33
  %1602 = vmatprep.subr.mxu0 0.0
  %1603 = vmatpush1.msra.mxu0 %v32
  %1604 = vmatprep.subr.mxu0 0.0
  %1605 = vmatpush2.msra.mxu0 0.0
  %1606 = vmatprep.subr.mxu0 0.0
  %1607 = vmatpush2.msra.mxu0 0.0
  %1608 = vmatprep.subr.mxu0 0.0
  %1609 = vmatpush2.msra.mxu0 0.0
  %1610 = vmatprep.subr.mxu0 0.0
  %1611 = vmatpush2.msra.mxu0 0.0
  %1612 = vmatprep.subr.mxu0 0.0
  %1613 = vmatpush2.msra.mxu0 0.0
  %1614 = vmatprep.subr.mxu0 0.0
  %1615 = vmatpush2.msra.mxu0 0.0
  %1616 = vmatprep.subr.mxu0 0.0
  %1617 = vmatpush2.msra.mxu0 0.0
  %1618 = vmatprep.subr.mxu0 0.0
  %1619 = vmatpush2.msra.mxu0 0.0
  %1620 = vmatprep.subr.mxu0 0.0
  %1621 = vmatpush2.msra.mxu0 0.0
  %1622 = vmatprep.subr.mxu0 0.0
  %1623 = vmatpush2.msra.mxu0 0.0
  %1624 = vmatprep.subr.mxu0 0.0
  %1625 = vmatpush2.msra.mxu0 0.0
  %1626 = vmatprep.subr.mxu0 0.0
  %1627 = vmatpush2.msra.mxu0 0.0
  %1628 = vmatprep.subr.mxu0 0.0
  %1629 = vmatpush2.msra.mxu0 0.0
  %1630 = vmatprep.subr.mxu0 0.0
  %1631 = vmatpush2.msra.mxu0 0.0
  %1632 = vmatprep.subr.mxu0 0.0
  %1633 = vmatpush2.msra.mxu0 0.0
  %1634 = vmatprep.subr.mxu0 0.0
  %1635 = vmatpush2.msra.mxu0 0.0
  %1636 = vmatprep.mubr.f32.mxu0 0.0
  %1637 = vmatmul.mubr.f32.gmra.mxu0 %v1500
  %v1638 = vpop.f32.mrf.mxu0
  %v1639 = vadd.f32 0.0, %v1638
  %v1640 = vpop.f32.mrf.mxu0
  %1641 = vdwg.mxu0
  %s1642 = scalar_lea.vmem %s0, 48
  %v1643 = vld [vmem:[%s1642] sm:$0xff]
  %v1644 = vadd.f32 %v1643, %v1569
  %v1645 = vxor.u32 %v1644, 2147483648
  %v1646 = vmul.f32 %v1645, 1.442695
  %v1647 = vpow.pop %v1646
  %v1648 = vadd.f32 %v1647, 1.0
  %v1649 = vrcp.pop %v1648
  %v1650 = vmul.f32 1.0, %v1649
  %s1651 = scalar_lea.vmem %s0, 112
  %v1652 = vld [vmem:[%s1651] sm:$0xff]
  %v1653 = vadd.f32 %v1652, %v1639
  %v1654 = vxor.u32 %v1653, 2147483648
  %v1655 = vmul.f32 %v1654, 1.442695
  %v1656 = vpow.pop %v1655
  %v1657 = vadd.f32 %v1656, 1.0
  %v1658 = vrcp.pop %v1657
  %v1659 = vmul.f32 1.0, %v1658
  %s1660 = scalar_lea.vmem %s0, 176
  %v1661 = vld [vmem:[%s1660] sm:$0xff]
  %1662 = vmatprep.subr.mxu0 0.0
  %1663 = vmatpush1.msra.mxu0 0.0
  %1664 = vmatprep.subr.mxu0 0.0
  %1665 = vmatpush1.msra.mxu0 0.0
  %1666 = vmatprep.subr.mxu0 0.0
  %1667 = vmatpush1.msra.mxu0 0.0
  %1668 = vmatprep.subr.mxu0 0.0
  %1669 = vmatpush1.msra.mxu0 0.0
  %1670 = vmatprep.subr.mxu0 0.0
  %1671 = vmatpush1.msra.mxu0 0.0
  %1672 = vmatprep.subr.mxu0 0.0
  %1673 = vmatpush1.msra.mxu0 0.0
  %1674 = vmatprep.subr.mxu0 0.0
  %1675 = vmatpush1.msra.mxu0 0.0
  %1676 = vmatprep.subr.mxu0 0.0
  %1677 = vmatpush1.msra.mxu0 0.0
  %1678 = vmatprep.subr.mxu0 0.0
  %1679 = vmatpush1.msra.mxu0 0.0
  %1680 = vmatprep.subr.mxu0 0.0
  %1681 = vmatpush1.msra.mxu0 0.0
  %1682 = vmatprep.subr.mxu0 0.0
  %1683 = vmatpush1.msra.mxu0 0.0
  %1684 = vmatprep.subr.mxu0 0.0
  %1685 = vmatpush1.msra.mxu0 0.0
  %1686 = vmatprep.subr.mxu0 0.0
  %1687 = vmatpush1.msra.mxu0 %v40
  %1688 = vmatprep.subr.mxu0 0.0
  %1689 = vmatpush1.msra.mxu0 %v39
  %1690 = vmatprep.subr.mxu0 0.0
  %1691 = vmatpush1.msra.mxu0 %v38
  %1692 = vmatprep.subr.mxu0 0.0
  %1693 = vmatpush1.msra.mxu0 %v37
  %1694 = vmatprep.subr.mxu0 0.0
  %1695 = vmatpush2.msra.mxu0 0.0
  %1696 = vmatprep.subr.mxu0 0.0
  %1697 = vmatpush2.msra.mxu0 0.0
  %1698 = vmatprep.subr.mxu0 0.0
  %1699 = vmatpush2.msra.mxu0 0.0
  %1700 = vmatprep.subr.mxu0 0.0
  %1701 = vmatpush2.msra.mxu0 0.0
  %1702 = vmatprep.subr.mxu0 0.0
  %1703 = vmatpush2.msra.mxu0 0.0
  %1704 = vmatprep.subr.mxu0 0.0
  %1705 = vmatpush2.msra.mxu0 0.0
  %1706 = vmatprep.subr.mxu0 0.0
  %1707 = vmatpush2.msra.mxu0 0.0
  %1708 = vmatprep.subr.mxu0 0.0
  %1709 = vmatpush2.msra.mxu0 0.0
  %1710 = vmatprep.subr.mxu0 0.0
  %1711 = vmatpush2.msra.mxu0 0.0
  %1712 = vmatprep.subr.mxu0 0.0
  %1713 = vmatpush2.msra.mxu0 0.0
  %1714 = vmatprep.subr.mxu0 0.0
  %1715 = vmatpush2.msra.mxu0 0.0
  %1716 = vmatprep.subr.mxu0 0.0
  %1717 = vmatpush2.msra.mxu0 0.0
  %1718 = vmatprep.subr.mxu0 0.0
  %1719 = vmatpush2.msra.mxu0 0.0
  %1720 = vmatprep.subr.mxu0 0.0
  %1721 = vmatpush2.msra.mxu0 0.0
  %1722 = vmatprep.subr.mxu0 0.0
  %1723 = vmatpush2.msra.mxu0 0.0
  %1724 = vmatprep.subr.mxu0 0.0
  %1725 = vmatpush2.msra.mxu0 0.0
  %1726 = vmatprep.mubr.f32.mxu0 0.0
  %1727 = vmatmul.mubr.f32.gmra.mxu0 %v1500
  %v1728 = vpop.f32.mrf.mxu0
  %v1729 = vadd.f32 %v209, %v1728
  %v1730 = vpop.f32.mrf.mxu0
  %1731 = vdwg.mxu0
  %v1732 = vmul.f32 %v1650, %v1729
  %v1733 = vadd.f32 %v1661, %v1732
  %v1734 = vtanh.pop %v1733
  %v1735 = vsub.f32 1.0, %v1659
  %v1736 = vmul.f32 %v1735, %v1734
  %v1737 = vmul.f32 %v1659, %v1496
  %v1738 = vadd.f32 %v1736, %v1737
  %s1739 = scalar_lea.vmem %s4, 48
  %1740 = vst.msk [vmem:[%s1739] sm:$0xff] %vm42, %v1738
  %v1742 = vsel %vm42, %v1738, 0
  %1744 = vmatprep.subr.mxu0 0.0
  %1745 = vmatpush1.msra.mxu0 0.0
  %1746 = vmatprep.subr.mxu0 0.0
  %1747 = vmatpush1.msra.mxu0 0.0
  %1748 = vmatprep.subr.mxu0 0.0
  %1749 = vmatpush1.msra.mxu0 0.0
  %1750 = vmatprep.subr.mxu0 0.0
  %1751 = vmatpush1.msra.mxu0 0.0
  %1752 = vmatprep.subr.mxu0 0.0
  %1753 = vmatpush1.msra.mxu0 0.0
  %1754 = vmatprep.subr.mxu0 0.0
  %1755 = vmatpush1.msra.mxu0 0.0
  %1756 = vmatprep.subr.mxu0 0.0
  %1757 = vmatpush1.msra.mxu0 0.0
  %1758 = vmatprep.subr.mxu0 0.0
  %1759 = vmatpush1.msra.mxu0 0.0
  %1760 = vmatprep.subr.mxu0 0.0
  %1761 = vmatpush1.msra.mxu0 0.0
  %1762 = vmatprep.subr.mxu0 0.0
  %1763 = vmatpush1.msra.mxu0 0.0
  %1764 = vmatprep.subr.mxu0 0.0
  %1765 = vmatpush1.msra.mxu0 0.0
  %1766 = vmatprep.subr.mxu0 0.0
  %1767 = vmatpush1.msra.mxu0 0.0
  %1768 = vmatprep.subr.mxu0 0.0
  %1769 = vmatpush1.msra.mxu0 %v30
  %1770 = vmatprep.subr.mxu0 0.0
  %1771 = vmatpush1.msra.mxu0 %v29
  %1772 = vmatprep.subr.mxu0 0.0
  %1773 = vmatpush1.msra.mxu0 %v28
  %1774 = vmatprep.subr.mxu0 0.0
  %1775 = vmatpush1.msra.mxu0 %v27
  %1776 = vmatprep.subr.mxu0 0.0
  %1777 = vmatpush2.msra.mxu0 0.0
  %1778 = vmatprep.subr.mxu0 0.0
  %1779 = vmatpush2.msra.mxu0 0.0
  %1780 = vmatprep.subr.mxu0 0.0
  %1781 = vmatpush2.msra.mxu0 0.0
  %1782 = vmatprep.subr.mxu0 0.0
  %1783 = vmatpush2.msra.mxu0 0.0
  %1784 = vmatprep.subr.mxu0 0.0
  %1785 = vmatpush2.msra.mxu0 0.0
  %1786 = vmatprep.subr.mxu0 0.0
  %1787 = vmatpush2.msra.mxu0 0.0
  %1788 = vmatprep.subr.mxu0 0.0
  %1789 = vmatpush2.msra.mxu0 0.0
  %1790 = vmatprep.subr.mxu0 0.0
  %1791 = vmatpush2.msra.mxu0 0.0
  %1792 = vmatprep.subr.mxu0 0.0
  %1793 = vmatpush2.msra.mxu0 0.0
  %1794 = vmatprep.subr.mxu0 0.0
  %1795 = vmatpush2.msra.mxu0 0.0
  %1796 = vmatprep.subr.mxu0 0.0
  %1797 = vmatpush2.msra.mxu0 0.0
  %1798 = vmatprep.subr.mxu0 0.0
  %1799 = vmatpush2.msra.mxu0 0.0
  %1800 = vmatprep.subr.mxu0 0.0
  %1801 = vmatpush2.msra.mxu0 0.0
  %1802 = vmatprep.subr.mxu0 0.0
  %1803 = vmatpush2.msra.mxu0 0.0
  %1804 = vmatprep.subr.mxu0 0.0
  %1805 = vmatpush2.msra.mxu0 0.0
  %1806 = vmatprep.subr.mxu0 0.0
  %1807 = vmatpush2.msra.mxu0 0.0
  %1808 = vmatprep.mubr.f32.mxu0 0.0
  %1809 = vmatmul.mubr.f32.gmra.mxu0 %v1742
  %v1810 = vpop.f32.mrf.mxu0
  %v1811 = vadd.f32 0.0, %v1810
  %v1812 = vpop.f32.mrf.mxu0
  %1813 = vdwg.mxu0
  %1814 = vmatprep.subr.mxu0 0.0
  %1815 = vmatpush1.msra.mxu0 0.0
  %1816 = vmatprep.subr.mxu0 0.0
  %1817 = vmatpush1.msra.mxu0 0.0
  %1818 = vmatprep.subr.mxu0 0.0
  %1819 = vmatpush1.msra.mxu0 0.0
  %1820 = vmatprep.subr.mxu0 0.0
  %1821 = vmatpush1.msra.mxu0 0.0
  %1822 = vmatprep.subr.mxu0 0.0
  %1823 = vmatpush1.msra.mxu0 0.0
  %1824 = vmatprep.subr.mxu0 0.0
  %1825 = vmatpush1.msra.mxu0 0.0
  %1826 = vmatprep.subr.mxu0 0.0
  %1827 = vmatpush1.msra.mxu0 0.0
  %1828 = vmatprep.subr.mxu0 0.0
  %1829 = vmatpush1.msra.mxu0 0.0
  %1830 = vmatprep.subr.mxu0 0.0
  %1831 = vmatpush1.msra.mxu0 0.0
  %1832 = vmatprep.subr.mxu0 0.0
  %1833 = vmatpush1.msra.mxu0 0.0
  %1834 = vmatprep.subr.mxu0 0.0
  %1835 = vmatpush1.msra.mxu0 0.0
  %1836 = vmatprep.subr.mxu0 0.0
  %1837 = vmatpush1.msra.mxu0 0.0
  %1838 = vmatprep.subr.mxu0 0.0
  %1839 = vmatpush1.msra.mxu0 %v35
  %1840 = vmatprep.subr.mxu0 0.0
  %1841 = vmatpush1.msra.mxu0 %v34
  %1842 = vmatprep.subr.mxu0 0.0
  %1843 = vmatpush1.msra.mxu0 %v33
  %1844 = vmatprep.subr.mxu0 0.0
  %1845 = vmatpush1.msra.mxu0 %v32
  %1846 = vmatprep.subr.mxu0 0.0
  %1847 = vmatpush2.msra.mxu0 0.0
  %1848 = vmatprep.subr.mxu0 0.0
  %1849 = vmatpush2.msra.mxu0 0.0
  %1850 = vmatprep.subr.mxu0 0.0
  %1851 = vmatpush2.msra.mxu0 0.0
  %1852 = vmatprep.subr.mxu0 0.0
  %1853 = vmatpush2.msra.mxu0 0.0
  %1854 = vmatprep.subr.mxu0 0.0
  %1855 = vmatpush2.msra.mxu0 0.0
  %1856 = vmatprep.subr.mxu0 0.0
  %1857 = vmatpush2.msra.mxu0 0.0
  %1858 = vmatprep.subr.mxu0 0.0
  %1859 = vmatpush2.msra.mxu0 0.0
  %1860 = vmatprep.subr.mxu0 0.0
  %1861 = vmatpush2.msra.mxu0 0.0
  %1862 = vmatprep.subr.mxu0 0.0
  %1863 = vmatpush2.msra.mxu0 0.0
  %1864 = vmatprep.subr.mxu0 0.0
  %1865 = vmatpush2.msra.mxu0 0.0
  %1866 = vmatprep.subr.mxu0 0.0
  %1867 = vmatpush2.msra.mxu0 0.0
  %1868 = vmatprep.subr.mxu0 0.0
  %1869 = vmatpush2.msra.mxu0 0.0
  %1870 = vmatprep.subr.mxu0 0.0
  %1871 = vmatpush2.msra.mxu0 0.0
  %1872 = vmatprep.subr.mxu0 0.0
  %1873 = vmatpush2.msra.mxu0 0.0
  %1874 = vmatprep.subr.mxu0 0.0
  %1875 = vmatpush2.msra.mxu0 0.0
  %1876 = vmatprep.subr.mxu0 0.0
  %1877 = vmatpush2.msra.mxu0 0.0
  %1878 = vmatprep.mubr.f32.mxu0 0.0
  %1879 = vmatmul.mubr.f32.gmra.mxu0 %v1742
  %v1880 = vpop.f32.mrf.mxu0
  %v1881 = vadd.f32 0.0, %v1880
  %v1882 = vpop.f32.mrf.mxu0
  %1883 = vdwg.mxu0
  %s1884 = scalar_lea.vmem %s0, 56
  %v1885 = vld [vmem:[%s1884] sm:$0xff]
  %v1886 = vadd.f32 %v1885, %v1811
  %v1887 = vxor.u32 %v1886, 2147483648
  %v1888 = vmul.f32 %v1887, 1.442695
  %v1889 = vpow.pop %v1888
  %v1890 = vadd.f32 %v1889, 1.0
  %v1891 = vrcp.pop %v1890
  %v1892 = vmul.f32 1.0, %v1891
  %s1893 = scalar_lea.vmem %s0, 120
  %v1894 = vld [vmem:[%s1893] sm:$0xff]
  %v1895 = vadd.f32 %v1894, %v1881
  %v1896 = vxor.u32 %v1895, 2147483648
  %v1897 = vmul.f32 %v1896, 1.442695
  %v1898 = vpow.pop %v1897
  %v1899 = vadd.f32 %v1898, 1.0
  %v1900 = vrcp.pop %v1899
  %v1901 = vmul.f32 1.0, %v1900
  %s1902 = scalar_lea.vmem %s0, 184
  %v1903 = vld [vmem:[%s1902] sm:$0xff]
  %1904 = vmatprep.subr.mxu0 0.0
  %1905 = vmatpush1.msra.mxu0 0.0
  %1906 = vmatprep.subr.mxu0 0.0
  %1907 = vmatpush1.msra.mxu0 0.0
  %1908 = vmatprep.subr.mxu0 0.0
  %1909 = vmatpush1.msra.mxu0 0.0
  %1910 = vmatprep.subr.mxu0 0.0
  %1911 = vmatpush1.msra.mxu0 0.0
  %1912 = vmatprep.subr.mxu0 0.0
  %1913 = vmatpush1.msra.mxu0 0.0
  %1914 = vmatprep.subr.mxu0 0.0
  %1915 = vmatpush1.msra.mxu0 0.0
  %1916 = vmatprep.subr.mxu0 0.0
  %1917 = vmatpush1.msra.mxu0 0.0
  %1918 = vmatprep.subr.mxu0 0.0
  %1919 = vmatpush1.msra.mxu0 0.0
  %1920 = vmatprep.subr.mxu0 0.0
  %1921 = vmatpush1.msra.mxu0 0.0
  %1922 = vmatprep.subr.mxu0 0.0
  %1923 = vmatpush1.msra.mxu0 0.0
  %1924 = vmatprep.subr.mxu0 0.0
  %1925 = vmatpush1.msra.mxu0 0.0
  %1926 = vmatprep.subr.mxu0 0.0
  %1927 = vmatpush1.msra.mxu0 0.0
  %1928 = vmatprep.subr.mxu0 0.0
  %1929 = vmatpush1.msra.mxu0 %v40
  %1930 = vmatprep.subr.mxu0 0.0
  %1931 = vmatpush1.msra.mxu0 %v39
  %1932 = vmatprep.subr.mxu0 0.0
  %1933 = vmatpush1.msra.mxu0 %v38
  %1934 = vmatprep.subr.mxu0 0.0
  %1935 = vmatpush1.msra.mxu0 %v37
  %1936 = vmatprep.subr.mxu0 0.0
  %1937 = vmatpush2.msra.mxu0 0.0
  %1938 = vmatprep.subr.mxu0 0.0
  %1939 = vmatpush2.msra.mxu0 0.0
  %1940 = vmatprep.subr.mxu0 0.0
  %1941 = vmatpush2.msra.mxu0 0.0
  %1942 = vmatprep.subr.mxu0 0.0
  %1943 = vmatpush2.msra.mxu0 0.0
  %1944 = vmatprep.subr.mxu0 0.0
  %1945 = vmatpush2.msra.mxu0 0.0
  %1946 = vmatprep.subr.mxu0 0.0
  %1947 = vmatpush2.msra.mxu0 0.0
  %1948 = vmatprep.subr.mxu0 0.0
  %1949 = vmatpush2.msra.mxu0 0.0
  %1950 = vmatprep.subr.mxu0 0.0
  %1951 = vmatpush2.msra.mxu0 0.0
  %1952 = vmatprep.subr.mxu0 0.0
  %1953 = vmatpush2.msra.mxu0 0.0
  %1954 = vmatprep.subr.mxu0 0.0
  %1955 = vmatpush2.msra.mxu0 0.0
  %1956 = vmatprep.subr.mxu0 0.0
  %1957 = vmatpush2.msra.mxu0 0.0
  %1958 = vmatprep.subr.mxu0 0.0
  %1959 = vmatpush2.msra.mxu0 0.0
  %1960 = vmatprep.subr.mxu0 0.0
  %1961 = vmatpush2.msra.mxu0 0.0
  %1962 = vmatprep.subr.mxu0 0.0
  %1963 = vmatpush2.msra.mxu0 0.0
  %1964 = vmatprep.subr.mxu0 0.0
  %1965 = vmatpush2.msra.mxu0 0.0
  %1966 = vmatprep.subr.mxu0 0.0
  %1967 = vmatpush2.msra.mxu0 0.0
  %1968 = vmatprep.mubr.f32.mxu0 0.0
  %1969 = vmatmul.mubr.f32.gmra.mxu0 %v1742
  %v1970 = vpop.f32.mrf.mxu0
  %v1971 = vadd.f32 %v209, %v1970
  %v1972 = vpop.f32.mrf.mxu0
  %1973 = vdwg.mxu0
  %v1974 = vmul.f32 %v1892, %v1971
  %v1975 = vadd.f32 %v1903, %v1974
  %v1976 = vtanh.pop %v1975
  %v1977 = vsub.f32 1.0, %v1901
  %v1978 = vmul.f32 %v1977, %v1976
  %v1979 = vmul.f32 %v1901, %v1738
  %v1980 = vadd.f32 %v1978, %v1979
  %s1981 = scalar_lea.vmem %s4, 56
  %1982 = vst.msk [vmem:[%s1981] sm:$0xff] %vm42, %v1980
  %1983 = vst.msk [vmem:[#allocation2] sm:$0xff] %vm42, %v1980
  // Predicated region
  $region22: #{gru_model_forward.6} parent=0 // pred_check
    %p1984 = pneg %p19
  $region23: #{gru_model_forward.6} parent=0 // pred_check_branch
    %1986 = sbr.rel (%p1984) target = $region25
  $region24: #{gru_model_forward.6} parent=0 // pred_region
    %1987 = vst.msk [vmem:[%s5] sm:$0xff] %vm42, %v1980
  $region25: #{gru_model_forward.6} parent=0 // pred_fallthru
    _
  // Predicated region
  $region26: #{gru_model_forward.6} parent=0 // pred_check
    _
  $region27: #{gru_model_forward.6} parent=0 // pred_check_branch
    %1989 = sbr.rel (0) target = $region29
  $region28: #{gru_model_forward.6} parent=0 // pred_region
    _
  $region29: #{gru_model_forward.6} parent=0 // pred_fallthru
    _
  // Predicated region
  $region30: #{gru_model_forward.6} parent=0 // pred_check
    _
  $region31: #{gru_model_forward.6} parent=0 // pred_check_branch
    %1991 = sbr.rel (0) target = $region33
  $region32: #{gru_model_forward.6} parent=0 // pred_region
    _
  $region33: #{gru_model_forward.6} parent=0 // pred_fallthru
    _
  // Predicated region
  $region34: #{gru_model_forward.6} parent=0 // pred_check
    _
  $region35: #{gru_model_forward.6} parent=0 // pred_check_branch
    %1993 = sbr.rel (0) target = $region37
  $region36: #{gru_model_forward.6} parent=0 // pred_region
    _
  $region37: #{gru_model_forward.6} parent=0 // pred_fallthru
    _
  // Predicated region
  $region38: #{gru_model_forward.6} parent=0 // pred_check
    _
  $region39: #{gru_model_forward.6} parent=0 // pred_check_branch
    %1995 = sbr.rel (0) target = $region41
  $region40: #{gru_model_forward.6} parent=0 // pred_region
    _
  $region41: #{gru_model_forward.6} parent=0 // pred_fallthru
    _

</llo_original>
